<compile_context>
chip_gen: v5e
topology: v5e:2x2
jax: 0.10.0
libtpu: 0.0.40
codegen_flags: <defaults>
</compile_context>

<pallas_src>
import math
import jax
import jax.numpy as jnp
from jax.experimental import pallas as pl
from jax.experimental.pallas import tpu as pltpu


def _make_act(name):
    """Activation epilogue (module's `activations` dict)."""
    if name == 'relu':
        return lambda x: jnp.maximum(x, 0.0)
    if name == 'leaky_relu':
        return lambda x: jnp.where(x >= 0, x, 0.05 * x)
    if name == 'sigmoid':
        return jax.nn.sigmoid
    if name == 'tanh':
        return jnp.tanh
    if name == 'gelu':
        return lambda x: jax.nn.gelu(x, approximate=True)
    # TODO(synk): 'prelu' has a learnable negative slope parameter; not wired here.
    raise ValueError(f"unsupported activation: {name}")


def _make_convblock_kernel(H, W, Cin, Cout, act_fn, mxu_dtype):
    """Fused ConvBlock kernel (one batch element per grid step).

    Refs per step:
      x_ref : (1, H, W, Cin)     unpadded NHWC input block
      w0_ref: (9*Cin, Cout)      conv0 weights as a single K=9*Cin matrix
      b0_ref: (1, Cout)
      w1_ref: (9*Cout, Cout)     conv1 weights as a single K=9*Cout matrix
      b1_ref: (1, Cout)
      o_ref : (1, H, W*Cout)     lane-dense output block
    Scratch (VMEM):
      xpad_ref: (H+2, W+2, Cin)  zero-padded input
      mpad_ref: (H+2, W+2, Cout) zero-padded intermediate activation
      col0_ref: (H*W, 9*Cin)     im2col matrix for conv0
      col1_ref: (H*W, 9*Cout)    im2col matrix for conv1
    """

    def conv3x3(src, col_ref, w_ref, b_ref, cin):
        # Build im2col in VMEM: 9 shifted windows -> one (H*W, 9*cin) matrix.
        for t in range(9):
            kh, kw = divmod(t, 3)
            col_ref[:, t * cin:(t + 1) * cin] = (
                src[kh:kh + H, kw:kw + W, :].reshape(H * W, cin))
        col = col_ref[...]
        w = w_ref[...]
        if mxu_dtype is not None:            # optional bf16 MXU inputs (v6e/v7x)
            col = col.astype(mxu_dtype)
            w = w.astype(mxu_dtype)
        # Single K = 9*cin contraction on the MXU, f32 accumulate.
        y = jnp.dot(col, w, preferred_element_type=jnp.float32)
        y = y + b_ref[0, :][None, :]
        return act_fn(y)                     # (H*W, Cout) float32

    def kernel(x_ref, w0_ref, b0_ref, w1_ref, b1_ref, o_ref,
               xpad_ref, mpad_ref, col0_ref, col1_ref):
        # padding=1 handled in-kernel: zero-pad input into VMEM (no HBM pad pass).
        xpad_ref[...] = jnp.zeros_like(xpad_ref)
        xpad_ref[1:H + 1, 1:W + 1, :] = x_ref[0]

        # conv0 + act; intermediate stays entirely in VMEM (no HBM round trip).
        h0 = conv3x3(xpad_ref[...], col0_ref, w0_ref, b0_ref, Cin)
        mpad_ref[...] = jnp.zeros_like(mpad_ref)
        mpad_ref[1:H + 1, 1:W + 1, :] = h0.reshape(H, W, Cout)

        # conv1 + act.
        h1 = conv3x3(mpad_ref[...], col1_ref, w1_ref, b1_ref, Cout)

        # Lane-dense store: flatten (W, Cout) into the last (lane) dim of the block.
        h1r = h1.reshape(H, W, Cout)
        for w in range(W):
            o_ref[0, :, w * Cout:(w + 1) * Cout] = h1r[:, w, :].astype(o_ref.dtype)

    return kernel


def conv_block_forward(x_nchw, params, activation='relu', mxu_dtype=None):
    """ConvBlock forward (conv0 -> act -> conv1 -> act, use_bn=False), NCHW in/out."""
    (w0, b0), (w1, b1) = params
    N, Cin, H, W = x_nchw.shape
    Cout = w0.shape[0]
    assert w0.shape == (Cout, Cin, 3, 3) and w1.shape == (Cout, Cout, 3, 3)

    # NCHW -> NHWC once at the module boundary; kernel is NHWC internally.
    x_nhwc = jnp.transpose(x_nchw, (0, 2, 3, 1)).astype(jnp.float32)

    # (Cout, Cin, 3, 3) -> (kh, kw, cin, cout) -> (9*Cin, Cout): single-K weight matrix.
    w0_mat = jnp.transpose(w0, (2, 3, 1, 0)).reshape(9 * Cin, Cout)
    w1_mat = jnp.transpose(w1, (2, 3, 1, 0)).reshape(9 * Cout, Cout)
    b0_2d = b0.reshape(1, Cout)
    b1_2d = b1.reshape(1, Cout)

    kernel = _make_convblock_kernel(H, W, Cin, Cout, _make_act(activation), mxu_dtype)

    out_flat = pl.pallas_call(
        kernel,
        out_shape=jax.ShapeDtypeStruct((N, H, W * Cout), jnp.float32),
        grid_spec=pltpu.PrefetchScalarGridSpec(
            num_scalar_prefetch=0,
            grid=(N,),                                   # whole ConvBlock per step
            in_specs=[
                pl.BlockSpec((1, H, W, Cin), lambda n: (n, 0, 0, 0)),
                # Grid-invariant weights/bias (constant index_map -> fetched once).
                pl.BlockSpec((9 * Cin, Cout), lambda n: (0, 0)),
                pl.BlockSpec((1, Cout), lambda n: (0, 0)),
                pl.BlockSpec((9 * Cout, Cout), lambda n: (0, 0)),
                pl.BlockSpec((1, Cout), lambda n: (0, 0)),
            ],
            out_specs=pl.BlockSpec((1, H, W * Cout), lambda n: (n, 0, 0)),
            scratch_shapes=[
                pltpu.VMEM((H + 2, W + 2, Cin), jnp.float32),    # padded input
                pltpu.VMEM((H + 2, W + 2, Cout), jnp.float32),   # padded intermediate
                pltpu.VMEM((H * W, 9 * Cin), jnp.float32),       # im2col conv0
                pltpu.VMEM((H * W, 9 * Cout), jnp.float32),      # im2col conv1
            ],
        ),
        compiler_params=pltpu.CompilerParams(
            dimension_semantics=("parallel",)),          # batch steps -> megacore
    )(x_nhwc, w0_mat, b0_2d, w1_mat, b1_2d)

    # (N, H, W*Cout) -> (N, H, W, Cout) -> NCHW once at the module boundary.
    return jnp.transpose(out_flat.reshape(N, H, W, Cout), (0, 3, 1, 2))


def init_conv_params(key, in_ch, out_ch, ksize=3):
    """Deterministic init mimicking PyTorch Conv2d default (kaiming-uniform-ish)."""
    kw_key, kb_key = jax.random.split(key)
    fan_in = in_ch * ksize * ksize
    bound = 1.0 / math.sqrt(fan_in)
    w = jax.random.uniform(kw_key, (out_ch, in_ch, ksize, ksize),
                           jnp.float32, -bound, bound)
    b = jax.random.uniform(kb_key, (out_ch,), jnp.float32, -bound, bound)
    return w, b


if __name__ == "__main__":
    key = jax.random.PRNGKey(0)
    k_x, k_c0, k_c1 = jax.random.split(key, 3)

    N, Cin, H, W = 2, 4, 16, 16
    Cout = 8

    x = jax.random.normal(k_x, (N, Cin, H, W), jnp.float32)
    params = (init_conv_params(k_c0, Cin, Cout),
              init_conv_params(k_c1, Cout, Cout))

    out = conv_block_forward(x, params)        # default activation='relu', use_bn=False
    out = jax.block_until_ready(out)
    assert out.shape == (N, Cout, H, W), out.shape

    # Sanity check against pure-JAX reference conv.
    def ref_conv(xn, w, b):
        y = jax.lax.conv_general_dilated(
            xn, w, window_strides=(1, 1), padding=((1, 1), (1, 1)),
            dimension_numbers=("NCHW", "OIHW", "NCHW"))
        return jnp.maximum(y + b[None, :, None, None], 0.0)

    ref = ref_conv(ref_conv(x, *params[0]), *params[1])
    assert jnp.allclose(out, ref, atol=1e-4, rtol=1e-4), \
        float(jnp.max(jnp.abs(out - ref)))

    print("KERNEL_OK")
</pallas_src>

<mosaic_0001>
module attributes {stable_mosaic.version = 11 : i64} {
  func.func @kernel(%arg0: i32, %arg1: memref<1x16x16x4xf32, #tpu.memory_space<vmem>>, %arg2: memref<36x8xf32, #tpu.memory_space<vmem>>, %arg3: memref<1x8xf32, #tpu.memory_space<vmem>>, %arg4: memref<72x8xf32, #tpu.memory_space<vmem>>, %arg5: memref<1x8xf32, #tpu.memory_space<vmem>>, %arg6: memref<1x16x128xf32, #tpu.memory_space<vmem>>, %arg7: memref<18x18x4xf32, #tpu.memory_space<vmem>>, %arg8: memref<18x18x8xf32, #tpu.memory_space<vmem>>, %arg9: memref<256x36xf32, #tpu.memory_space<vmem>>, %arg10: memref<256x72xf32, #tpu.memory_space<vmem>>) attributes {dimension_semantics = [#tpu.dimension_semantics<parallel>], iteration_bounds = array<i64: 2>, scalar_prefetch = 0 : i64, scratch_operands = 4 : i64, tpu.core_type = #tpu.core_type<tc>, window_params = [{transform_indices = @transform_0, window_bounds = array<i64: 1, 16, 16, 4>}, {pipeline_mode = #tpu.pipeline_mode<synchronous>, transform_indices = @transform_1, window_bounds = array<i64: 36, 8>}, {pipeline_mode = #tpu.pipeline_mode<synchronous>, transform_indices = @transform_2, window_bounds = array<i64: 1, 8>}, {pipeline_mode = #tpu.pipeline_mode<synchronous>, transform_indices = @transform_3, window_bounds = array<i64: 72, 8>}, {pipeline_mode = #tpu.pipeline_mode<synchronous>, transform_indices = @transform_4, window_bounds = array<i64: 1, 8>}, {transform_indices = @transform_5, window_bounds = array<i64: 1, 16, 128>}]} {
    %cst = arith.constant 0.000000e+00 : f32
    %0 = vector.broadcast %cst : f32 to vector<18x18x4xf32>
    %c0 = arith.constant 0 : index
    %c0_0 = arith.constant 0 : index
    %c0_1 = arith.constant 0 : index
    %1 = vector.load %arg7[%c0, %c0_0, %c0_1] : memref<18x18x4xf32, #tpu.memory_space<vmem>>, vector<18x18x4xf32>
    tpu.vector_store %arg7[%c0, %c0_0, %c0_1], %0 {strides = array<i32>} : memref<18x18x4xf32, #tpu.memory_space<vmem>>, vector<18x18x4xf32>,
    %c0_2 = arith.constant 0 : index
    %c0_3 = arith.constant 0 : index
    %c0_4 = arith.constant 0 : index
    %c0_5 = arith.constant 0 : index
    %2 = vector.load %arg1[%c0_2, %c0_3, %c0_4, %c0_5] : memref<1x16x16x4xf32, #tpu.memory_space<vmem>>, vector<1x16x16x4xf32>
    %3 = vector.shape_cast %2 : vector<1x16x16x4xf32> to vector<16x16x4xf32>
    %c1 = arith.constant 1 : index
    %c1_6 = arith.constant 1 : index
    %c0_7 = arith.constant 0 : index
    %4 = vector.load %arg7[%c1, %c1_6, %c0_7] : memref<18x18x4xf32, #tpu.memory_space<vmem>>, vector<16x16x4xf32>
    tpu.vector_store %arg7[%c1, %c1_6, %c0_7], %3 {strides = array<i32>} : memref<18x18x4xf32, #tpu.memory_space<vmem>>, vector<16x16x4xf32>,
    %c0_8 = arith.constant 0 : index
    %c0_9 = arith.constant 0 : index
    %c0_10 = arith.constant 0 : index
    %5 = vector.load %arg7[%c0_8, %c0_9, %c0_10] : memref<18x18x4xf32, #tpu.memory_space<vmem>>, vector<18x18x4xf32>
    %6 = vector.extract_strided_slice %5 {offsets = [0, 0, 0], sizes = [16, 16, 4], strides = [1, 1, 1]} : vector<18x18x4xf32> to vector<16x16x4xf32>
    %7 = vector.shape_cast %6 : vector<16x16x4xf32> to vector<256x4xf32>
    %c0_11 = arith.constant 0 : index
    %c0_12 = arith.constant 0 : index
    %8 = vector.load %arg9[%c0_11, %c0_12] : memref<256x36xf32, #tpu.memory_space<vmem>>, vector<256x4xf32>
    tpu.vector_store %arg9[%c0_11, %c0_12], %7 {strides = array<i32>} : memref<256x36xf32, #tpu.memory_space<vmem>>, vector<256x4xf32>,
    %9 = vector.extract_strided_slice %5 {offsets = [0, 1, 0], sizes = [16, 16, 4], strides = [1, 1, 1]} : vector<18x18x4xf32> to vector<16x16x4xf32>
    %10 = vector.shape_cast %9 : vector<16x16x4xf32> to vector<256x4xf32>
    %c0_13 = arith.constant 0 : index
    %c4 = arith.constant 4 : index
    %11 = vector.load %arg9[%c0_13, %c4] : memref<256x36xf32, #tpu.memory_space<vmem>>, vector<256x4xf32>
    tpu.vector_store %arg9[%c0_13, %c4], %10 {strides = array<i32>} : memref<256x36xf32, #tpu.memory_space<vmem>>, vector<256x4xf32>,
    %12 = vector.extract_strided_slice %5 {offsets = [0, 2, 0], sizes = [16, 16, 4], strides = [1, 1, 1]} : vector<18x18x4xf32> to vector<16x16x4xf32>
    %13 = vector.shape_cast %12 : vector<16x16x4xf32> to vector<256x4xf32>
    %c0_14 = arith.constant 0 : index
    %c8 = arith.constant 8 : index
    %14 = vector.load %arg9[%c0_14, %c8] : memref<256x36xf32, #tpu.memory_space<vmem>>, vector<256x4xf32>
    tpu.vector_store %arg9[%c0_14, %c8], %13 {strides = array<i32>} : memref<256x36xf32, #tpu.memory_space<vmem>>, vector<256x4xf32>,
    %15 = vector.extract_strided_slice %5 {offsets = [1, 0, 0], sizes = [16, 16, 4], strides = [1, 1, 1]} : vector<18x18x4xf32> to vector<16x16x4xf32>
    %16 = vector.shape_cast %15 : vector<16x16x4xf32> to vector<256x4xf32>
    %c0_15 = arith.constant 0 : index
    %c12 = arith.constant 12 : index
    %17 = vector.load %arg9[%c0_15, %c12] : memref<256x36xf32, #tpu.memory_space<vmem>>, vector<256x4xf32>
    tpu.vector_store %arg9[%c0_15, %c12], %16 {strides = array<i32>} : memref<256x36xf32, #tpu.memory_space<vmem>>, vector<256x4xf32>,
    %18 = vector.extract_strided_slice %5 {offsets = [1, 1, 0], sizes = [16, 16, 4], strides = [1, 1, 1]} : vector<18x18x4xf32> to vector<16x16x4xf32>
    %19 = vector.shape_cast %18 : vector<16x16x4xf32> to vector<256x4xf32>
    %c0_16 = arith.constant 0 : index
    %c16 = arith.constant 16 : index
    %20 = vector.load %arg9[%c0_16, %c16] : memref<256x36xf32, #tpu.memory_space<vmem>>, vector<256x4xf32>
    tpu.vector_store %arg9[%c0_16, %c16], %19 {strides = array<i32>} : memref<256x36xf32, #tpu.memory_space<vmem>>, vector<256x4xf32>,
    %21 = vector.extract_strided_slice %5 {offsets = [1, 2, 0], sizes = [16, 16, 4], strides = [1, 1, 1]} : vector<18x18x4xf32> to vector<16x16x4xf32>
    %22 = vector.shape_cast %21 : vector<16x16x4xf32> to vector<256x4xf32>
    %c0_17 = arith.constant 0 : index
    %c20 = arith.constant 20 : index
    %23 = vector.load %arg9[%c0_17, %c20] : memref<256x36xf32, #tpu.memory_space<vmem>>, vector<256x4xf32>
    tpu.vector_store %arg9[%c0_17, %c20], %22 {strides = array<i32>} : memref<256x36xf32, #tpu.memory_space<vmem>>, vector<256x4xf32>,
    %24 = vector.extract_strided_slice %5 {offsets = [2, 0, 0], sizes = [16, 16, 4], strides = [1, 1, 1]} : vector<18x18x4xf32> to vector<16x16x4xf32>
    %25 = vector.shape_cast %24 : vector<16x16x4xf32> to vector<256x4xf32>
    %c0_18 = arith.constant 0 : index
    %c24 = arith.constant 24 : index
    %26 = vector.load %arg9[%c0_18, %c24] : memref<256x36xf32, #tpu.memory_space<vmem>>, vector<256x4xf32>
    tpu.vector_store %arg9[%c0_18, %c24], %25 {strides = array<i32>} : memref<256x36xf32, #tpu.memory_space<vmem>>, vector<256x4xf32>,
    %27 = vector.extract_strided_slice %5 {offsets = [2, 1, 0], sizes = [16, 16, 4], strides = [1, 1, 1]} : vector<18x18x4xf32> to vector<16x16x4xf32>
    %28 = vector.shape_cast %27 : vector<16x16x4xf32> to vector<256x4xf32>
    %c0_19 = arith.constant 0 : index
    %c28 = arith.constant 28 : index
    %29 = vector.load %arg9[%c0_19, %c28] : memref<256x36xf32, #tpu.memory_space<vmem>>, vector<256x4xf32>
    tpu.vector_store %arg9[%c0_19, %c28], %28 {strides = array<i32>} : memref<256x36xf32, #tpu.memory_space<vmem>>, vector<256x4xf32>,
    %30 = vector.extract_strided_slice %5 {offsets = [2, 2, 0], sizes = [16, 16, 4], strides = [1, 1, 1]} : vector<18x18x4xf32> to vector<16x16x4xf32>
    %31 = vector.shape_cast %30 : vector<16x16x4xf32> to vector<256x4xf32>
    %c0_20 = arith.constant 0 : index
    %c32 = arith.constant 32 : index
    %32 = vector.load %arg9[%c0_20, %c32] : memref<256x36xf32, #tpu.memory_space<vmem>>, vector<256x4xf32>
    tpu.vector_store %arg9[%c0_20, %c32], %31 {strides = array<i32>} : memref<256x36xf32, #tpu.memory_space<vmem>>, vector<256x4xf32>,
    %c0_21 = arith.constant 0 : index
    %c0_22 = arith.constant 0 : index
    %33 = vector.load %arg9[%c0_21, %c0_22] : memref<256x36xf32, #tpu.memory_space<vmem>>, vector<256x36xf32>
    %c0_23 = arith.constant 0 : index
    %c0_24 = arith.constant 0 : index
    %34 = vector.load %arg2[%c0_23, %c0_24] : memref<36x8xf32, #tpu.memory_space<vmem>>, vector<36x8xf32>
    %cst_25 = arith.constant dense<0.000000e+00> : vector<256x8xf32>
    %35 = tpu.matmul %33, %34, %cst_25 {dimension_numbers = #tpu.dot_dimension_numbers<[1], [0], [0], [1], [0, 0, 1, 1], [], []>} : vector<256x36xf32>, vector<36x8xf32>, vector<256x8xf32> -> vector<256x8xf32>
    %c0_26 = arith.constant 0 : index
    %c0_27 = arith.constant 0 : index
    %36 = vector.load %arg3[%c0_26, %c0_27] : memref<1x8xf32, #tpu.memory_space<vmem>>, vector<1x8xf32>
    %37 = vector.shape_cast %36 : vector<1x8xf32> to vector<8xf32>
    %38 = vector.shape_cast %37 : vector<8xf32> to vector<1x8xf32>
    %39 = vector.broadcast %38 : vector<1x8xf32> to vector<256x8xf32>
    %40 = arith.addf %35, %39 : vector<256x8xf32>
    %cst_28 = arith.constant 0.000000e+00 : f32
    %41 = vector.broadcast %cst_28 : f32 to vector<256x8xf32>
    %42 = arith.maximumf %40, %41 : vector<256x8xf32>
    %cst_29 = arith.constant 0.000000e+00 : f32
    %43 = vector.broadcast %cst_29 : f32 to vector<18x18x8xf32>
    %c0_30 = arith.constant 0 : index
    %c0_31 = arith.constant 0 : index
    %c0_32 = arith.constant 0 : index
    %44 = vector.load %arg8[%c0_30, %c0_31, %c0_32] : memref<18x18x8xf32, #tpu.memory_space<vmem>>, vector<18x18x8xf32>
    tpu.vector_store %arg8[%c0_30, %c0_31, %c0_32], %43 {strides = array<i32>} : memref<18x18x8xf32, #tpu.memory_space<vmem>>, vector<18x18x8xf32>,
    %45 = vector.shape_cast %42 : vector<256x8xf32> to vector<16x16x8xf32>
    %c1_33 = arith.constant 1 : index
    %c1_34 = arith.constant 1 : index
    %c0_35 = arith.constant 0 : index
    %46 = vector.load %arg8[%c1_33, %c1_34, %c0_35] : memref<18x18x8xf32, #tpu.memory_space<vmem>>, vector<16x16x8xf32>
    tpu.vector_store %arg8[%c1_33, %c1_34, %c0_35], %45 {strides = array<i32>} : memref<18x18x8xf32, #tpu.memory_space<vmem>>, vector<16x16x8xf32>,
    %c0_36 = arith.constant 0 : index
    %c0_37 = arith.constant 0 : index
    %c0_38 = arith.constant 0 : index
    %47 = vector.load %arg8[%c0_36, %c0_37, %c0_38] : memref<18x18x8xf32, #tpu.memory_space<vmem>>, vector<18x18x8xf32>
    %48 = vector.extract_strided_slice %47 {offsets = [0, 0, 0], sizes = [16, 16, 8], strides = [1, 1, 1]} : vector<18x18x8xf32> to vector<16x16x8xf32>
    %49 = vector.shape_cast %48 : vector<16x16x8xf32> to vector<256x8xf32>
    %c0_39 = arith.constant 0 : index
    %c0_40 = arith.constant 0 : index
    %50 = vector.load %arg10[%c0_39, %c0_40] : memref<256x72xf32, #tpu.memory_space<vmem>>, vector<256x8xf32>
    tpu.vector_store %arg10[%c0_39, %c0_40], %49 {strides = array<i32>} : memref<256x72xf32, #tpu.memory_space<vmem>>, vector<256x8xf32>,
    %51 = vector.extract_strided_slice %47 {offsets = [0, 1, 0], sizes = [16, 16, 8], strides = [1, 1, 1]} : vector<18x18x8xf32> to vector<16x16x8xf32>
    %52 = vector.shape_cast %51 : vector<16x16x8xf32> to vector<256x8xf32>
    %c0_41 = arith.constant 0 : index
    %c8_42 = arith.constant 8 : index
    %53 = vector.load %arg10[%c0_41, %c8_42] : memref<256x72xf32, #tpu.memory_space<vmem>>, vector<256x8xf32>
    tpu.vector_store %arg10[%c0_41, %c8_42], %52 {strides = array<i32>} : memref<256x72xf32, #tpu.memory_space<vmem>>, vector<256x8xf32>,
    %54 = vector.extract_strided_slice %47 {offsets = [0, 2, 0], sizes = [16, 16, 8], strides = [1, 1, 1]} : vector<18x18x8xf32> to vector<16x16x8xf32>
    %55 = vector.shape_cast %54 : vector<16x16x8xf32> to vector<256x8xf32>
    %c0_43 = arith.constant 0 : index
    %c16_44 = arith.constant 16 : index
    %56 = vector.load %arg10[%c0_43, %c16_44] : memref<256x72xf32, #tpu.memory_space<vmem>>, vector<256x8xf32>
    tpu.vector_store %arg10[%c0_43, %c16_44], %55 {strides = array<i32>} : memref<256x72xf32, #tpu.memory_space<vmem>>, vector<256x8xf32>,
    %57 = vector.extract_strided_slice %47 {offsets = [1, 0, 0], sizes = [16, 16, 8], strides = [1, 1, 1]} : vector<18x18x8xf32> to vector<16x16x8xf32>
    %58 = vector.shape_cast %57 : vector<16x16x8xf32> to vector<256x8xf32>
    %c0_45 = arith.constant 0 : index
    %c24_46 = arith.constant 24 : index
    %59 = vector.load %arg10[%c0_45, %c24_46] : memref<256x72xf32, #tpu.memory_space<vmem>>, vector<256x8xf32>
    tpu.vector_store %arg10[%c0_45, %c24_46], %58 {strides = array<i32>} : memref<256x72xf32, #tpu.memory_space<vmem>>, vector<256x8xf32>,
    %60 = vector.extract_strided_slice %47 {offsets = [1, 1, 0], sizes = [16, 16, 8], strides = [1, 1, 1]} : vector<18x18x8xf32> to vector<16x16x8xf32>
    %61 = vector.shape_cast %60 : vector<16x16x8xf32> to vector<256x8xf32>
    %c0_47 = arith.constant 0 : index
    %c32_48 = arith.constant 32 : index
    %62 = vector.load %arg10[%c0_47, %c32_48] : memref<256x72xf32, #tpu.memory_space<vmem>>, vector<256x8xf32>
    tpu.vector_store %arg10[%c0_47, %c32_48], %61 {strides = array<i32>} : memref<256x72xf32, #tpu.memory_space<vmem>>, vector<256x8xf32>,
    %63 = vector.extract_strided_slice %47 {offsets = [1, 2, 0], sizes = [16, 16, 8], strides = [1, 1, 1]} : vector<18x18x8xf32> to vector<16x16x8xf32>
    %64 = vector.shape_cast %63 : vector<16x16x8xf32> to vector<256x8xf32>
    %c0_49 = arith.constant 0 : index
    %c40 = arith.constant 40 : index
    %65 = vector.load %arg10[%c0_49, %c40] : memref<256x72xf32, #tpu.memory_space<vmem>>, vector<256x8xf32>
    tpu.vector_store %arg10[%c0_49, %c40], %64 {strides = array<i32>} : memref<256x72xf32, #tpu.memory_space<vmem>>, vector<256x8xf32>,
    %66 = vector.extract_strided_slice %47 {offsets = [2, 0, 0], sizes = [16, 16, 8], strides = [1, 1, 1]} : vector<18x18x8xf32> to vector<16x16x8xf32>
    %67 = vector.shape_cast %66 : vector<16x16x8xf32> to vector<256x8xf32>
    %c0_50 = arith.constant 0 : index
    %c48 = arith.constant 48 : index
    %68 = vector.load %arg10[%c0_50, %c48] : memref<256x72xf32, #tpu.memory_space<vmem>>, vector<256x8xf32>
    tpu.vector_store %arg10[%c0_50, %c48], %67 {strides = array<i32>} : memref<256x72xf32, #tpu.memory_space<vmem>>, vector<256x8xf32>,
    %69 = vector.extract_strided_slice %47 {offsets = [2, 1, 0], sizes = [16, 16, 8], strides = [1, 1, 1]} : vector<18x18x8xf32> to vector<16x16x8xf32>
    %70 = vector.shape_cast %69 : vector<16x16x8xf32> to vector<256x8xf32>
    %c0_51 = arith.constant 0 : index
    %c56 = arith.constant 56 : index
    %71 = vector.load %arg10[%c0_51, %c56] : memref<256x72xf32, #tpu.memory_space<vmem>>, vector<256x8xf32>
    tpu.vector_store %arg10[%c0_51, %c56], %70 {strides = array<i32>} : memref<256x72xf32, #tpu.memory_space<vmem>>, vector<256x8xf32>,
    %72 = vector.extract_strided_slice %47 {offsets = [2, 2, 0], sizes = [16, 16, 8], strides = [1, 1, 1]} : vector<18x18x8xf32> to vector<16x16x8xf32>
    %73 = vector.shape_cast %72 : vector<16x16x8xf32> to vector<256x8xf32>
    %c0_52 = arith.constant 0 : index
    %c64 = arith.constant 64 : index
    %74 = vector.load %arg10[%c0_52, %c64] : memref<256x72xf32, #tpu.memory_space<vmem>>, vector<256x8xf32>
    tpu.vector_store %arg10[%c0_52, %c64], %73 {strides = array<i32>} : memref<256x72xf32, #tpu.memory_space<vmem>>, vector<256x8xf32>,
    %c0_53 = arith.constant 0 : index
    %c0_54 = arith.constant 0 : index
    %75 = vector.load %arg10[%c0_53, %c0_54] : memref<256x72xf32, #tpu.memory_space<vmem>>, vector<256x72xf32>
    %c0_55 = arith.constant 0 : index
    %c0_56 = arith.constant 0 : index
    %76 = vector.load %arg4[%c0_55, %c0_56] : memref<72x8xf32, #tpu.memory_space<vmem>>, vector<72x8xf32>
    %cst_57 = arith.constant dense<0.000000e+00> : vector<256x8xf32>
    %77 = tpu.matmul %75, %76, %cst_57 {dimension_numbers = #tpu.dot_dimension_numbers<[1], [0], [0], [1], [0, 0, 1, 1], [], []>} : vector<256x72xf32>, vector<72x8xf32>, vector<256x8xf32> -> vector<256x8xf32>
    %c0_58 = arith.constant 0 : index
    %c0_59 = arith.constant 0 : index
    %78 = vector.load %arg5[%c0_58, %c0_59] : memref<1x8xf32, #tpu.memory_space<vmem>>, vector<1x8xf32>
    %79 = vector.shape_cast %78 : vector<1x8xf32> to vector<8xf32>
    %80 = vector.shape_cast %79 : vector<8xf32> to vector<1x8xf32>
    %81 = vector.broadcast %80 : vector<1x8xf32> to vector<256x8xf32>
    %82 = arith.addf %77, %81 : vector<256x8xf32>
    %cst_60 = arith.constant 0.000000e+00 : f32
    %83 = vector.broadcast %cst_60 : f32 to vector<256x8xf32>
    %84 = arith.maximumf %82, %83 : vector<256x8xf32>
    %85 = vector.shape_cast %84 : vector<256x8xf32> to vector<16x16x8xf32>
    %86 = vector.extract_strided_slice %85 {offsets = [0, 0, 0], sizes = [16, 1, 8], strides = [1, 1, 1]} : vector<16x16x8xf32> to vector<16x1x8xf32>
    %87 = vector.shape_cast %86 : vector<16x1x8xf32> to vector<16x8xf32>
    %c0_61 = arith.constant 0 : index
    %c0_62 = arith.constant 0 : index
    %c0_63 = arith.constant 0 : index
    %88 = vector.load %arg6[%c0_61, %c0_62, %c0_63] : memref<1x16x128xf32, #tpu.memory_space<vmem>>, vector<1x16x8xf32>
    %89 = vector.shape_cast %88 : vector<1x16x8xf32> to vector<16x8xf32>
    %90 = vector.shape_cast %87 : vector<16x8xf32> to vector<1x16x8xf32>
    tpu.vector_store %arg6[%c0_61, %c0_62, %c0_63], %90 {strides = array<i32>} : memref<1x16x128xf32, #tpu.memory_space<vmem>>, vector<1x16x8xf32>,
    %91 = vector.extract_strided_slice %85 {offsets = [0, 1, 0], sizes = [16, 1, 8], strides = [1, 1, 1]} : vector<16x16x8xf32> to vector<16x1x8xf32>
    %92 = vector.shape_cast %91 : vector<16x1x8xf32> to vector<16x8xf32>
    %c0_64 = arith.constant 0 : index
    %c0_65 = arith.constant 0 : index
    %c8_66 = arith.constant 8 : index
    %93 = vector.load %arg6[%c0_64, %c0_65, %c8_66] : memref<1x16x128xf32, #tpu.memory_space<vmem>>, vector<1x16x8xf32>
    %94 = vector.shape_cast %93 : vector<1x16x8xf32> to vector<16x8xf32>
    %95 = vector.shape_cast %92 : vector<16x8xf32> to vector<1x16x8xf32>
    tpu.vector_store %arg6[%c0_64, %c0_65, %c8_66], %95 {strides = array<i32>} : memref<1x16x128xf32, #tpu.memory_space<vmem>>, vector<1x16x8xf32>,
    %96 = vector.extract_strided_slice %85 {offsets = [0, 2, 0], sizes = [16, 1, 8], strides = [1, 1, 1]} : vector<16x16x8xf32> to vector<16x1x8xf32>
    %97 = vector.shape_cast %96 : vector<16x1x8xf32> to vector<16x8xf32>
    %c0_67 = arith.constant 0 : index
    %c0_68 = arith.constant 0 : index
    %c16_69 = arith.constant 16 : index
    %98 = vector.load %arg6[%c0_67, %c0_68, %c16_69] : memref<1x16x128xf32, #tpu.memory_space<vmem>>, vector<1x16x8xf32>
    %99 = vector.shape_cast %98 : vector<1x16x8xf32> to vector<16x8xf32>
    %100 = vector.shape_cast %97 : vector<16x8xf32> to vector<1x16x8xf32>
    tpu.vector_store %arg6[%c0_67, %c0_68, %c16_69], %100 {strides = array<i32>} : memref<1x16x128xf32, #tpu.memory_space<vmem>>, vector<1x16x8xf32>,
    %101 = vector.extract_strided_slice %85 {offsets = [0, 3, 0], sizes = [16, 1, 8], strides = [1, 1, 1]} : vector<16x16x8xf32> to vector<16x1x8xf32>
    %102 = vector.shape_cast %101 : vector<16x1x8xf32> to vector<16x8xf32>
    %c0_70 = arith.constant 0 : index
    %c0_71 = arith.constant 0 : index
    %c24_72 = arith.constant 24 : index
    %103 = vector.load %arg6[%c0_70, %c0_71, %c24_72] : memref<1x16x128xf32, #tpu.memory_space<vmem>>, vector<1x16x8xf32>
    %104 = vector.shape_cast %103 : vector<1x16x8xf32> to vector<16x8xf32>
    %105 = vector.shape_cast %102 : vector<16x8xf32> to vector<1x16x8xf32>
    tpu.vector_store %arg6[%c0_70, %c0_71, %c24_72], %105 {strides = array<i32>} : memref<1x16x128xf32, #tpu.memory_space<vmem>>, vector<1x16x8xf32>,
    %106 = vector.extract_strided_slice %85 {offsets = [0, 4, 0], sizes = [16, 1, 8], strides = [1, 1, 1]} : vector<16x16x8xf32> to vector<16x1x8xf32>
    %107 = vector.shape_cast %106 : vector<16x1x8xf32> to vector<16x8xf32>
    %c0_73 = arith.constant 0 : index
    %c0_74 = arith.constant 0 : index
    %c32_75 = arith.constant 32 : index
    %108 = vector.load %arg6[%c0_73, %c0_74, %c32_75] : memref<1x16x128xf32, #tpu.memory_space<vmem>>, vector<1x16x8xf32>
    %109 = vector.shape_cast %108 : vector<1x16x8xf32> to vector<16x8xf32>
    %110 = vector.shape_cast %107 : vector<16x8xf32> to vector<1x16x8xf32>
    tpu.vector_store %arg6[%c0_73, %c0_74, %c32_75], %110 {strides = array<i32>} : memref<1x16x128xf32, #tpu.memory_space<vmem>>, vector<1x16x8xf32>,
    %111 = vector.extract_strided_slice %85 {offsets = [0, 5, 0], sizes = [16, 1, 8], strides = [1, 1, 1]} : vector<16x16x8xf32> to vector<16x1x8xf32>
    %112 = vector.shape_cast %111 : vector<16x1x8xf32> to vector<16x8xf32>
    %c0_76 = arith.constant 0 : index
    %c0_77 = arith.constant 0 : index
    %c40_78 = arith.constant 40 : index
    %113 = vector.load %arg6[%c0_76, %c0_77, %c40_78] : memref<1x16x128xf32, #tpu.memory_space<vmem>>, vector<1x16x8xf32>
    %114 = vector.shape_cast %113 : vector<1x16x8xf32> to vector<16x8xf32>
    %115 = vector.shape_cast %112 : vector<16x8xf32> to vector<1x16x8xf32>
    tpu.vector_store %arg6[%c0_76, %c0_77, %c40_78], %115 {strides = array<i32>} : memref<1x16x128xf32, #tpu.memory_space<vmem>>, vector<1x16x8xf32>,
    %116 = vector.extract_strided_slice %85 {offsets = [0, 6, 0], sizes = [16, 1, 8], strides = [1, 1, 1]} : vector<16x16x8xf32> to vector<16x1x8xf32>
    %117 = vector.shape_cast %116 : vector<16x1x8xf32> to vector<16x8xf32>
    %c0_79 = arith.constant 0 : index
    %c0_80 = arith.constant 0 : index
    %c48_81 = arith.constant 48 : index
    %118 = vector.load %arg6[%c0_79, %c0_80, %c48_81] : memref<1x16x128xf32, #tpu.memory_space<vmem>>, vector<1x16x8xf32>
    %119 = vector.shape_cast %118 : vector<1x16x8xf32> to vector<16x8xf32>
    %120 = vector.shape_cast %117 : vector<16x8xf32> to vector<1x16x8xf32>
    tpu.vector_store %arg6[%c0_79, %c0_80, %c48_81], %120 {strides = array<i32>} : memref<1x16x128xf32, #tpu.memory_space<vmem>>, vector<1x16x8xf32>,
    %121 = vector.extract_strided_slice %85 {offsets = [0, 7, 0], sizes = [16, 1, 8], strides = [1, 1, 1]} : vector<16x16x8xf32> to vector<16x1x8xf32>
    %122 = vector.shape_cast %121 : vector<16x1x8xf32> to vector<16x8xf32>
    %c0_82 = arith.constant 0 : index
    %c0_83 = arith.constant 0 : index
    %c56_84 = arith.constant 56 : index
    %123 = vector.load %arg6[%c0_82, %c0_83, %c56_84] : memref<1x16x128xf32, #tpu.memory_space<vmem>>, vector<1x16x8xf32>
    %124 = vector.shape_cast %123 : vector<1x16x8xf32> to vector<16x8xf32>
    %125 = vector.shape_cast %122 : vector<16x8xf32> to vector<1x16x8xf32>
    tpu.vector_store %arg6[%c0_82, %c0_83, %c56_84], %125 {strides = array<i32>} : memref<1x16x128xf32, #tpu.memory_space<vmem>>, vector<1x16x8xf32>,
    %126 = vector.extract_strided_slice %85 {offsets = [0, 8, 0], sizes = [16, 1, 8], strides = [1, 1, 1]} : vector<16x16x8xf32> to vector<16x1x8xf32>
    %127 = vector.shape_cast %126 : vector<16x1x8xf32> to vector<16x8xf32>
    %c0_85 = arith.constant 0 : index
    %c0_86 = arith.constant 0 : index
    %c64_87 = arith.constant 64 : index
    %128 = vector.load %arg6[%c0_85, %c0_86, %c64_87] : memref<1x16x128xf32, #tpu.memory_space<vmem>>, vector<1x16x8xf32>
    %129 = vector.shape_cast %128 : vector<1x16x8xf32> to vector<16x8xf32>
    %130 = vector.shape_cast %127 : vector<16x8xf32> to vector<1x16x8xf32>
    tpu.vector_store %arg6[%c0_85, %c0_86, %c64_87], %130 {strides = array<i32>} : memref<1x16x128xf32, #tpu.memory_space<vmem>>, vector<1x16x8xf32>,
    %131 = vector.extract_strided_slice %85 {offsets = [0, 9, 0], sizes = [16, 1, 8], strides = [1, 1, 1]} : vector<16x16x8xf32> to vector<16x1x8xf32>
    %132 = vector.shape_cast %131 : vector<16x1x8xf32> to vector<16x8xf32>
    %c0_88 = arith.constant 0 : index
    %c0_89 = arith.constant 0 : index
    %c72 = arith.constant 72 : index
    %133 = vector.load %arg6[%c0_88, %c0_89, %c72] : memref<1x16x128xf32, #tpu.memory_space<vmem>>, vector<1x16x8xf32>
    %134 = vector.shape_cast %133 : vector<1x16x8xf32> to vector<16x8xf32>
    %135 = vector.shape_cast %132 : vector<16x8xf32> to vector<1x16x8xf32>
    tpu.vector_store %arg6[%c0_88, %c0_89, %c72], %135 {strides = array<i32>} : memref<1x16x128xf32, #tpu.memory_space<vmem>>, vector<1x16x8xf32>,
    %136 = vector.extract_strided_slice %85 {offsets = [0, 10, 0], sizes = [16, 1, 8], strides = [1, 1, 1]} : vector<16x16x8xf32> to vector<16x1x8xf32>
    %137 = vector.shape_cast %136 : vector<16x1x8xf32> to vector<16x8xf32>
    %c0_90 = arith.constant 0 : index
    %c0_91 = arith.constant 0 : index
    %c80 = arith.constant 80 : index
    %138 = vector.load %arg6[%c0_90, %c0_91, %c80] : memref<1x16x128xf32, #tpu.memory_space<vmem>>, vector<1x16x8xf32>
    %139 = vector.shape_cast %138 : vector<1x16x8xf32> to vector<16x8xf32>
    %140 = vector.shape_cast %137 : vector<16x8xf32> to vector<1x16x8xf32>
    tpu.vector_store %arg6[%c0_90, %c0_91, %c80], %140 {strides = array<i32>} : memref<1x16x128xf32, #tpu.memory_space<vmem>>, vector<1x16x8xf32>,
    %141 = vector.extract_strided_slice %85 {offsets = [0, 11, 0], sizes = [16, 1, 8], strides = [1, 1, 1]} : vector<16x16x8xf32> to vector<16x1x8xf32>
    %142 = vector.shape_cast %141 : vector<16x1x8xf32> to vector<16x8xf32>
    %c0_92 = arith.constant 0 : index
    %c0_93 = arith.constant 0 : index
    %c88 = arith.constant 88 : index
    %143 = vector.load %arg6[%c0_92, %c0_93, %c88] : memref<1x16x128xf32, #tpu.memory_space<vmem>>, vector<1x16x8xf32>
    %144 = vector.shape_cast %143 : vector<1x16x8xf32> to vector<16x8xf32>
    %145 = vector.shape_cast %142 : vector<16x8xf32> to vector<1x16x8xf32>
    tpu.vector_store %arg6[%c0_92, %c0_93, %c88], %145 {strides = array<i32>} : memref<1x16x128xf32, #tpu.memory_space<vmem>>, vector<1x16x8xf32>,
    %146 = vector.extract_strided_slice %85 {offsets = [0, 12, 0], sizes = [16, 1, 8], strides = [1, 1, 1]} : vector<16x16x8xf32> to vector<16x1x8xf32>
    %147 = vector.shape_cast %146 : vector<16x1x8xf32> to vector<16x8xf32>
    %c0_94 = arith.constant 0 : index
    %c0_95 = arith.constant 0 : index
    %c96 = arith.constant 96 : index
    %148 = vector.load %arg6[%c0_94, %c0_95, %c96] : memref<1x16x128xf32, #tpu.memory_space<vmem>>, vector<1x16x8xf32>
    %149 = vector.shape_cast %148 : vector<1x16x8xf32> to vector<16x8xf32>
    %150 = vector.shape_cast %147 : vector<16x8xf32> to vector<1x16x8xf32>
    tpu.vector_store %arg6[%c0_94, %c0_95, %c96], %150 {strides = array<i32>} : memref<1x16x128xf32, #tpu.memory_space<vmem>>, vector<1x16x8xf32>,
    %151 = vector.extract_strided_slice %85 {offsets = [0, 13, 0], sizes = [16, 1, 8], strides = [1, 1, 1]} : vector<16x16x8xf32> to vector<16x1x8xf32>
    %152 = vector.shape_cast %151 : vector<16x1x8xf32> to vector<16x8xf32>
    %c0_96 = arith.constant 0 : index
    %c0_97 = arith.constant 0 : index
    %c104 = arith.constant 104 : index
    %153 = vector.load %arg6[%c0_96, %c0_97, %c104] : memref<1x16x128xf32, #tpu.memory_space<vmem>>, vector<1x16x8xf32>
    %154 = vector.shape_cast %153 : vector<1x16x8xf32> to vector<16x8xf32>
    %155 = vector.shape_cast %152 : vector<16x8xf32> to vector<1x16x8xf32>
    tpu.vector_store %arg6[%c0_96, %c0_97, %c104], %155 {strides = array<i32>} : memref<1x16x128xf32, #tpu.memory_space<vmem>>, vector<1x16x8xf32>,
    %156 = vector.extract_strided_slice %85 {offsets = [0, 14, 0], sizes = [16, 1, 8], strides = [1, 1, 1]} : vector<16x16x8xf32> to vector<16x1x8xf32>
    %157 = vector.shape_cast %156 : vector<16x1x8xf32> to vector<16x8xf32>
    %c0_98 = arith.constant 0 : index
    %c0_99 = arith.constant 0 : index
    %c112 = arith.constant 112 : index
    %158 = vector.load %arg6[%c0_98, %c0_99, %c112] : memref<1x16x128xf32, #tpu.memory_space<vmem>>, vector<1x16x8xf32>
    %159 = vector.shape_cast %158 : vector<1x16x8xf32> to vector<16x8xf32>
    %160 = vector.shape_cast %157 : vector<16x8xf32> to vector<1x16x8xf32>
    tpu.vector_store %arg6[%c0_98, %c0_99, %c112], %160 {strides = array<i32>} : memref<1x16x128xf32, #tpu.memory_space<vmem>>, vector<1x16x8xf32>,
    %161 = vector.extract_strided_slice %85 {offsets = [0, 15, 0], sizes = [16, 1, 8], strides = [1, 1, 1]} : vector<16x16x8xf32> to vector<16x1x8xf32>
    %162 = vector.shape_cast %161 : vector<16x1x8xf32> to vector<16x8xf32>
    %c0_100 = arith.constant 0 : index
    %c0_101 = arith.constant 0 : index
    %c120 = arith.constant 120 : index
    %163 = vector.load %arg6[%c0_100, %c0_101, %c120] : memref<1x16x128xf32, #tpu.memory_space<vmem>>, vector<1x16x8xf32>
    %164 = vector.shape_cast %163 : vector<1x16x8xf32> to vector<16x8xf32>
    %165 = vector.shape_cast %162 : vector<16x8xf32> to vector<1x16x8xf32>
    tpu.vector_store %arg6[%c0_100, %c0_101, %c120], %165 {strides = array<i32>} : memref<1x16x128xf32, #tpu.memory_space<vmem>>, vector<1x16x8xf32>,
    return
  }
  func.func @transform_0(%arg0: i32) -> (i32, i32, i32, i32) {
    %c0_i32 = arith.constant 0 : i32
    %c0_i32_0 = arith.constant 0 : i32
    %c0_i32_1 = arith.constant 0 : i32
    %c0_i32_2 = arith.constant 0 : i32
    return %arg0, %c0_i32, %c0_i32_0, %c0_i32_1 : i32, i32, i32, i32
  }
  func.func @transform_1(%arg0: i32) -> (i32, i32) {
    %c0_i32 = arith.constant 0 : i32
    %c0_i32_0 = arith.constant 0 : i32
    %c0_i32_1 = arith.constant 0 : i32
    return %c0_i32, %c0_i32_0 : i32, i32
  }
  func.func @transform_2(%arg0: i32) -> (i32, i32) {
    %c0_i32 = arith.constant 0 : i32
    %c0_i32_0 = arith.constant 0 : i32
    %c0_i32_1 = arith.constant 0 : i32
    return %c0_i32, %c0_i32_0 : i32, i32
  }
  func.func @transform_3(%arg0: i32) -> (i32, i32) {
    %c0_i32 = arith.constant 0 : i32
    %c0_i32_0 = arith.constant 0 : i32
    %c0_i32_1 = arith.constant 0 : i32
    return %c0_i32, %c0_i32_0 : i32, i32
  }
  func.func @transform_4(%arg0: i32) -> (i32, i32) {
    %c0_i32 = arith.constant 0 : i32
    %c0_i32_0 = arith.constant 0 : i32
    %c0_i32_1 = arith.constant 0 : i32
    return %c0_i32, %c0_i32_0 : i32, i32
  }
  func.func @transform_5(%arg0: i32) -> (i32, i32, i32) {
    %c0_i32 = arith.constant 0 : i32
    %c0_i32_0 = arith.constant 0 : i32
    %c0_i32_1 = arith.constant 0 : i32
    return %arg0, %c0_i32, %c0_i32_0 : i32, i32, i32
  }
}

</mosaic_0001>

<llo_original>
// kernel: tpu_custom_call.1
$region0: #{tpu_custom_call.1}
  #allocation0 [shape = 'u32[]', space=smem, size = 0x4, offset = 0x4, fixed_abs, tag = 'smem constant byte address 0x4 - core index']
  #allocation1 [shape = 'u32[72,128]{1,0:T(1,128)}', space=vmem, size = 0x9000, scoped, tag = 'internal scratch']
  #allocation2 [shape = 'f32[18,18,4]{2,1,0:T(8,128)}', space=vmem, size = 0x36000, scoped, tag = 'scratch operand']
  #allocation3 [shape = 'f32[18,18,8]{2,1,0:T(8,128)}', space=vmem, size = 0x36000, scoped, tag = 'scratch operand']
  #allocation4 [shape = 'f32[256,36]{1,0:T(8,128)}', space=vmem, size = 0x20000, scoped, tag = 'scratch operand']
  #allocation5 [shape = 'f32[256,72]{1,0:T(8,128)}', space=vmem, size = 0x20000, scoped, tag = 'scratch operand']
  %s0 = inlined_call_operand.vmem [shape: f32[2,16,16,4], index: 0, kind: input, shape index: {}]
  %s1 = inlined_call_operand.vmem [shape: f32[36,8], index: 1, kind: input, shape index: {}]
  %s2 = inlined_call_operand.vmem [shape: f32[1,8], index: 2, kind: input, shape index: {}]
  %s3 = inlined_call_operand.vmem [shape: f32[72,8], index: 3, kind: input, shape index: {}]
  %s4 = inlined_call_operand.vmem [shape: f32[1,8], index: 4, kind: input, shape index: {}]
  %s5 = inlined_call_operand.hbm [shape: f32[2,16,128], index: 5, kind: output, shape index: {}]
  %s6 = sld [smem:[#allocation0]]
  $region53: #{tpu_custom_call.1} parent=0
    _
  %s8 = ssub.s32 1, %s6
  %s9 = scalar_select 0, %s8, %s6
  $region1: #{tpu_custom_call.1} parent=0
    #allocation6 [shape = 'u8[16384]{0}', space=vmem, size = 0x4000, scoped, tag = 'output window, operand 0']
    #allocation7 [shape = 's32[2]{0}', space=sflag, size = 0x8, scoped, tag = 'scoped memory for tpu_custom_call.1']
    %10 = vsyncpa [#allocation7], 0
    %s11 = scalar_lea.sflag [#allocation7], 1
    %12 = vsyncpa %s11, 0
    loop: start=0, step=1, limit=4
    $region2: #{tpu_custom_call.1} parent=1 // loop_pre_header
      _
    $region3: #{tpu_custom_call.1} parent=1 // loop_header
      %s14 = sphi 0, %s18
      %p15 = scmp.ge.s32.totalorder %s14, 4
      %s24 = sphi 0, %s26
      %s27 = sphi 0, %s24
      %s28 = sphi 0, %s27
      %s44 = sphi 0, %s28
      %s48 = sphi 0, %s48
      %s50 = sphi 0, %s48
      %s51 = sphi 0, %s50
      %s65 = sphi 0, %s51
      %s69 = sphi 0, %s69
      %s71 = sphi 0, %s69
      %s72 = sphi 0, %s71
      %s86 = sphi 0, %s72
      %s90 = sphi 0, %s90
      %s92 = sphi 0, %s90
      %s93 = sphi 0, %s92
      %s107 = sphi 0, %s93
      %s111 = sphi 0, %s111
      %s113 = sphi 0, %s111
      %s114 = sphi 0, %s113
      %s128 = sphi 0, %s114
      %s134 = sphi 0, %s136
      %s137 = sphi 0, %s134
      %s138 = sphi 0, %s137
      %s154 = sphi 0, %s138
    $region4: #{tpu_custom_call.1} parent=1 // loop_header_branch
      %17 = sbr.rel (%p15) target = $region8
    $region5: #{tpu_custom_call.1} parent=1 // loop_body
      %s19 = ssub.s32 %s14, 1
      %s20 = ssub.s32 %s14, 2
      %s21 = sadd.s32 %s14, 1
      %s22 = ssub.s32 %s14, %s21
      %p23 = scmp.eq.s32.totalorder %s22, 0
      %s25 = sadd.s32 %s24, 1
      %s26 = scalar_select %p23, %s24, %s25
      %p29 = pneg %p23
      %p30 = scmp.eq.s32.totalorder %s14, 1
      %p31 = por %p29, %p30
      %p32 = scmp.ne.s32.totalorder %s24, %s27
      %p33 = scmp.eq.s32.totalorder %s14, 0
      %p34 = por %p32, %p33
      %p35 = scmp.ne.s32.totalorder %s24, %s27
      %p36 = scmp.eq.s32.totalorder %s19, 1
      %p37 = por %p35, %p36
      %p38 = scmp.ne.s32.totalorder %s27, %s28
      %p39 = scmp.eq.s32.totalorder %s19, 0
      %p40 = por %p38, %p39
      %p41 = scmp.ne.s32.totalorder %s27, %s28
      %p42 = scmp.eq.s32.totalorder %s20, 1
      %p43 = por %p41, %p42
      %p45 = scmp.ne.s32.totalorder %s28, %s44
      %p46 = scmp.eq.s32.totalorder %s20, 0
      %p47 = por %p45, %p46
      %s49 = sadd.s32 %s48, 1
      %p52 = scmp.eq.s32.totalorder %s14, 1
      %p53 = scmp.ne.s32.totalorder %s48, %s50
      %p54 = scmp.eq.s32.totalorder %s14, 0
      %p55 = por %p53, %p54
      %p56 = scmp.ne.s32.totalorder %s48, %s50
      %p57 = scmp.eq.s32.totalorder %s19, 1
      %p58 = por %p56, %p57
      %p59 = scmp.ne.s32.totalorder %s50, %s51
      %p60 = scmp.eq.s32.totalorder %s19, 0
      %p61 = por %p59, %p60
      %p62 = scmp.ne.s32.totalorder %s50, %s51
      %p63 = scmp.eq.s32.totalorder %s20, 1
      %p64 = por %p62, %p63
      %p66 = scmp.ne.s32.totalorder %s51, %s65
      %p67 = scmp.eq.s32.totalorder %s20, 0
      %p68 = por %p66, %p67
      %s70 = sadd.s32 %s69, 1
      %p73 = scmp.eq.s32.totalorder %s14, 1
      %p74 = scmp.ne.s32.totalorder %s69, %s71
      %p75 = scmp.eq.s32.totalorder %s14, 0
      %p76 = por %p74, %p75
      %p77 = scmp.ne.s32.totalorder %s69, %s71
      %p78 = scmp.eq.s32.totalorder %s19, 1
      %p79 = por %p77, %p78
      %p80 = scmp.ne.s32.totalorder %s71, %s72
      %p81 = scmp.eq.s32.totalorder %s19, 0
      %p82 = por %p80, %p81
      %p83 = scmp.ne.s32.totalorder %s71, %s72
      %p84 = scmp.eq.s32.totalorder %s20, 1
      %p85 = por %p83, %p84
      %p87 = scmp.ne.s32.totalorder %s72, %s86
      %p88 = scmp.eq.s32.totalorder %s20, 0
      %p89 = por %p87, %p88
      %s91 = sadd.s32 %s90, 1
      %p94 = scmp.eq.s32.totalorder %s14, 1
      %p95 = scmp.ne.s32.totalorder %s90, %s92
      %p96 = scmp.eq.s32.totalorder %s14, 0
      %p97 = por %p95, %p96
      %p98 = scmp.ne.s32.totalorder %s90, %s92
      %p99 = scmp.eq.s32.totalorder %s19, 1
      %p100 = por %p98, %p99
      %p101 = scmp.ne.s32.totalorder %s92, %s93
      %p102 = scmp.eq.s32.totalorder %s19, 0
      %p103 = por %p101, %p102
      %p104 = scmp.ne.s32.totalorder %s92, %s93
      %p105 = scmp.eq.s32.totalorder %s20, 1
      %p106 = por %p104, %p105
      %p108 = scmp.ne.s32.totalorder %s93, %s107
      %p109 = scmp.eq.s32.totalorder %s20, 0
      %p110 = por %p108, %p109
      %s112 = sadd.s32 %s111, 1
      %p115 = scmp.eq.s32.totalorder %s14, 1
      %p116 = scmp.ne.s32.totalorder %s111, %s113
      %p117 = scmp.eq.s32.totalorder %s14, 0
      %p118 = por %p116, %p117
      %p119 = scmp.ne.s32.totalorder %s111, %s113
      %p120 = scmp.eq.s32.totalorder %s19, 1
      %p121 = por %p119, %p120
      %p122 = scmp.ne.s32.totalorder %s113, %s114
      %p123 = scmp.eq.s32.totalorder %s19, 0
      %p124 = por %p122, %p123
      %p125 = scmp.ne.s32.totalorder %s113, %s114
      %p126 = scmp.eq.s32.totalorder %s20, 1
      %p127 = por %p125, %p126
      %p129 = scmp.ne.s32.totalorder %s114, %s128
      %p130 = scmp.eq.s32.totalorder %s20, 0
      %p131 = por %p129, %p130
      %s132 = ssub.s32 %s14, %s21
      %p133 = scmp.eq.s32.totalorder %s132, 0
      %s135 = sadd.s32 %s134, 1
      %s136 = scalar_select %p133, %s134, %s135
      %p139 = pneg %p133
      %p140 = scmp.eq.s32.totalorder %s14, 1
      %p141 = por %p139, %p140
      %p142 = scmp.ne.s32.totalorder %s134, %s137
      %p143 = scmp.eq.s32.totalorder %s14, 0
      %p144 = por %p142, %p143
      %p145 = scmp.ne.s32.totalorder %s134, %s137
      %p146 = scmp.eq.s32.totalorder %s19, 1
      %p147 = por %p145, %p146
      %p148 = scmp.ne.s32.totalorder %s137, %s138
      %p149 = scmp.eq.s32.totalorder %s19, 0
      %p150 = por %p148, %p149
      %p151 = scmp.ne.s32.totalorder %s137, %s138
      %p152 = scmp.eq.s32.totalorder %s20, 1
      %p153 = por %p151, %p152
      %p155 = scmp.ne.s32.totalorder %s138, %s154
      %p156 = scmp.eq.s32.totalorder %s20, 0
      %p157 = por %p155, %p156
      %p158 = scmp.le.s32.totalorder 1, %s14
      %p159 = scmp.lt.s32.totalorder %s14, 3
      %p160 = pnand %p158, %p159
      %p161 = pneg %p160
      // Predicated region
      $region9: #{tpu_custom_call.1} parent=5 // pred_check
        _
      $region10: #{tpu_custom_call.1} parent=5 // pred_check_branch
        %163 = sbr.rel (%p160) target = $region12
      $region11: #{tpu_custom_call.1} parent=5 // pred_region
        %s164 = ssub.s32 %s14, 1
        // Predicated region
        $region13: #{tpu_custom_call.1} parent=11 // pred_check
          %p165 = pneg %p61
        $region14: #{tpu_custom_call.1} parent=11 // pred_check_branch
          %167 = sbr.rel (%p165) target = $region16
        $region15: #{tpu_custom_call.1} parent=11 // pred_region
          _
        $region16: #{tpu_custom_call.1} parent=11 // pred_fallthru
          _
        // Predicated region
        $region17: #{tpu_custom_call.1} parent=11 // pred_check
          %p168 = pneg %p82
        $region18: #{tpu_custom_call.1} parent=11 // pred_check_branch
          %170 = sbr.rel (%p168) target = $region20
        $region19: #{tpu_custom_call.1} parent=11 // pred_region
          _
        $region20: #{tpu_custom_call.1} parent=11 // pred_fallthru
          _
        // Predicated region
        $region21: #{tpu_custom_call.1} parent=11 // pred_check
          %p171 = pneg %p103
        $region22: #{tpu_custom_call.1} parent=11 // pred_check_branch
          %173 = sbr.rel (%p171) target = $region24
        $region23: #{tpu_custom_call.1} parent=11 // pred_region
          _
        $region24: #{tpu_custom_call.1} parent=11 // pred_fallthru
          _
        // Predicated region
        $region25: #{tpu_custom_call.1} parent=11 // pred_check
          %p174 = pneg %p124
        $region26: #{tpu_custom_call.1} parent=11 // pred_check_branch
          %176 = sbr.rel (%p174) target = $region28
        $region27: #{tpu_custom_call.1} parent=11 // pred_region
          _
        $region28: #{tpu_custom_call.1} parent=11 // pred_fallthru
          _
      $region12: #{tpu_custom_call.1} parent=5 // pred_fallthru
        _
      %p177 = scmp.lt.s32.totalorder %s14, 2
      // Predicated region
      $region29: #{tpu_custom_call.1} parent=5 // pred_check
        %p178 = pneg %p177
      $region30: #{tpu_custom_call.1} parent=5 // pred_check_branch
        %180 = sbr.rel (%p178) target = $region32
      $region31: #{tpu_custom_call.1} parent=5 // pred_region
        // Predicated region
        $region33: #{tpu_custom_call.1} parent=31 // pred_check
          %p181 = pneg %p34
        $region34: #{tpu_custom_call.1} parent=31 // pred_check_branch
          %183 = sbr.rel (%p181) target = $region36
        $region35: #{tpu_custom_call.1} parent=31 // pred_region
          %p184 = scmp.lt.s32.totalorder %s14, 1
          %s185 = scalar_select %p184, %s14, 1
          %s186 = smul.addr %s185, 32
          %s187 = smul.addr %s186, 8
          %s188 = scalar_lea.vmem %s0, %s187
        $region36: #{tpu_custom_call.1} parent=31 // pred_fallthru
          _
      $region32: #{tpu_custom_call.1} parent=5 // pred_fallthru
        _
      %p189 = scmp.le.s32.totalorder 1, %s14
      %p190 = scmp.lt.s32.totalorder %s14, 3
      %p191 = pnand %p189, %p190
      %p192 = pneg %p191
      // Predicated region
      $region37: #{tpu_custom_call.1} parent=5 // pred_check
        _
      $region38: #{tpu_custom_call.1} parent=5 // pred_check_branch
        %194 = sbr.rel (%p191) target = $region40
      $region39: #{tpu_custom_call.1} parent=5 // pred_region
        %s195 = ssub.s32 %s14, 1
        %p196 = scmp.lt.s32.totalorder %s19, 1
        %s197 = scalar_select %p196, %s19, 1
        %s198 = smul.addr %s197, 32
        %s199 = smul.addr %s198, 8
        %s200 = scalar_lea.vmem %s0, %s199
        %p201 = pneg %p40
        %p202 = pneg %p37
        %p203 = pneg %p61
        %p204 = pneg %p58
        %p205 = pneg %p82
        %p206 = pneg %p79
        %p207 = pneg %p103
        %p208 = pneg %p100
        %p209 = pneg %p124
        %p210 = pneg %p121
        %p211 = pneg %p150
        %p212 = pneg %p147
        %s213 = sand.u32 %s137, 1
        %s214 = scalar_lea.sflag [#allocation7], %s213
        %s215 = sand.u32 %s137, 1
        %s216 = smul.addr %s215, 16
        %s217 = scalar_lea.vmem [#allocation6], %s216
        %p218 = scmp.lt.s32.totalorder %s19, 1
        %s219 = scalar_select %p218, %s19, 1
        %s220 = smul.addr %s219, 32
        %s221 = smul.addr %s220, 8
        %s222 = scalar_lea.vmem %s0, %s221
        %vm223 = vcmask 31744
        %224 = vst.msk [vmem:[#allocation2] sm:$0xff] %vm223, 0.0
        %225 = vst.msk [vmem:[#allocation2 + $0x8] sm:$0xff] %vm223, 0.0
        %vm226 = vcmask 25600
        %227 = vst.msk [vmem:[#allocation2 + $0x10] sm:$0x3] %vm226, 0.0
        %228 = vst.msk [vmem:[#allocation2 + $0x18] sm:$0xff] %vm223, 0.0
        %229 = vst.msk [vmem:[#allocation2 + $0x20] sm:$0xff] %vm223, 0.0
        %230 = vst.msk [vmem:[#allocation2 + $0x28] sm:$0x3] %vm226, 0.0
        %231 = vst.msk [vmem:[#allocation2 + $0x30] sm:$0xff] %vm223, 0.0
        %232 = vst.msk [vmem:[#allocation2 + $0x38] sm:$0xff] %vm223, 0.0
        %233 = vst.msk [vmem:[#allocation2 + $0x40] sm:$0x3] %vm226, 0.0
        %234 = vst.msk [vmem:[#allocation2 + $0x48] sm:$0xff] %vm223, 0.0
        %235 = vst.msk [vmem:[#allocation2 + $0x50] sm:$0xff] %vm223, 0.0
        %236 = vst.msk [vmem:[#allocation2 + $0x58] sm:$0x3] %vm226, 0.0
        %237 = vst.msk [vmem:[#allocation2 + $0x60] sm:$0xff] %vm223, 0.0
        %238 = vst.msk [vmem:[#allocation2 + $0x68] sm:$0xff] %vm223, 0.0
        %239 = vst.msk [vmem:[#allocation2 + $0x70] sm:$0x3] %vm226, 0.0
        %240 = vst.msk [vmem:[#allocation2 + $0x78] sm:$0xff] %vm223, 0.0
        %241 = vst.msk [vmem:[#allocation2 + $0x80] sm:$0xff] %vm223, 0.0
        %242 = vst.msk [vmem:[#allocation2 + $0x88] sm:$0x3] %vm226, 0.0
        %243 = vst.msk [vmem:[#allocation2 + $0x90] sm:$0xff] %vm223, 0.0
        %244 = vst.msk [vmem:[#allocation2 + $0x98] sm:$0xff] %vm223, 0.0
        %245 = vst.msk [vmem:[#allocation2 + $0xa0] sm:$0x3] %vm226, 0.0
        %246 = vst.msk [vmem:[#allocation2 + $0xa8] sm:$0xff] %vm223, 0.0
        %247 = vst.msk [vmem:[#allocation2 + $0xb0] sm:$0xff] %vm223, 0.0
        %248 = vst.msk [vmem:[#allocation2 + $0xb8] sm:$0x3] %vm226, 0.0
        %249 = vst.msk [vmem:[#allocation2 + $0xc0] sm:$0xff] %vm223, 0.0
        %250 = vst.msk [vmem:[#allocation2 + $0xc8] sm:$0xff] %vm223, 0.0
        %251 = vst.msk [vmem:[#allocation2 + $0xd0] sm:$0x3] %vm226, 0.0
        %252 = vst.msk [vmem:[#allocation2 + $0xd8] sm:$0xff] %vm223, 0.0
        %253 = vst.msk [vmem:[#allocation2 + $0xe0] sm:$0xff] %vm223, 0.0
        %254 = vst.msk [vmem:[#allocation2 + $0xe8] sm:$0x3] %vm226, 0.0
        %255 = vst.msk [vmem:[#allocation2 + $0xf0] sm:$0xff] %vm223, 0.0
        %256 = vst.msk [vmem:[#allocation2 + $0xf8] sm:$0xff] %vm223, 0.0
        %257 = vst.msk [vmem:[#allocation2 + $0x100] sm:$0x3] %vm226, 0.0
        %258 = vst.msk [vmem:[#allocation2 + $0x108] sm:$0xff] %vm223, 0.0
        %259 = vst.msk [vmem:[#allocation2 + $0x110] sm:$0xff] %vm223, 0.0
        %260 = vst.msk [vmem:[#allocation2 + $0x118] sm:$0x3] %vm226, 0.0
        %261 = vst.msk [vmem:[#allocation2 + $0x120] sm:$0xff] %vm223, 0.0
        %262 = vst.msk [vmem:[#allocation2 + $0x128] sm:$0xff] %vm223, 0.0
        %263 = vst.msk [vmem:[#allocation2 + $0x130] sm:$0x3] %vm226, 0.0
        %264 = vst.msk [vmem:[#allocation2 + $0x138] sm:$0xff] %vm223, 0.0
        %265 = vst.msk [vmem:[#allocation2 + $0x140] sm:$0xff] %vm223, 0.0
        %266 = vst.msk [vmem:[#allocation2 + $0x148] sm:$0x3] %vm226, 0.0
        %267 = vst.msk [vmem:[#allocation2 + $0x150] sm:$0xff] %vm223, 0.0
        %268 = vst.msk [vmem:[#allocation2 + $0x158] sm:$0xff] %vm223, 0.0
        %269 = vst.msk [vmem:[#allocation2 + $0x160] sm:$0x3] %vm226, 0.0
        %270 = vst.msk [vmem:[#allocation2 + $0x168] sm:$0xff] %vm223, 0.0
        %271 = vst.msk [vmem:[#allocation2 + $0x170] sm:$0xff] %vm223, 0.0
        %272 = vst.msk [vmem:[#allocation2 + $0x178] sm:$0x3] %vm226, 0.0
        %273 = vst.msk [vmem:[#allocation2 + $0x180] sm:$0xff] %vm223, 0.0
        %274 = vst.msk [vmem:[#allocation2 + $0x188] sm:$0xff] %vm223, 0.0
        %275 = vst.msk [vmem:[#allocation2 + $0x190] sm:$0x3] %vm226, 0.0
        %276 = vst.msk [vmem:[#allocation2 + $0x198] sm:$0xff] %vm223, 0.0
        %277 = vst.msk [vmem:[#allocation2 + $0x1a0] sm:$0xff] %vm223, 0.0
        %278 = vst.msk [vmem:[#allocation2 + $0x1a8] sm:$0x3] %vm226, 0.0
        %v279 = vld [vmem:[%s222] sm:$0xff]
        %v280 = vld [vmem:[%s222 + $0x8] sm:$0xff]
        %v281 = vld [vmem:[%s222 + $0x10] sm:$0xff]
        %v282 = vld [vmem:[%s222 + $0x18] sm:$0xff]
        %v283 = vld [vmem:[%s222 + $0x20] sm:$0xff]
        %v284 = vld [vmem:[%s222 + $0x28] sm:$0xff]
        %v285 = vld [vmem:[%s222 + $0x30] sm:$0xff]
        %v286 = vld [vmem:[%s222 + $0x38] sm:$0xff]
        %v287 = vld [vmem:[%s222 + $0x40] sm:$0xff]
        %v288 = vld [vmem:[%s222 + $0x48] sm:$0xff]
        %v289 = vld [vmem:[%s222 + $0x50] sm:$0xff]
        %v290 = vld [vmem:[%s222 + $0x58] sm:$0xff]
        %v291 = vld [vmem:[%s222 + $0x60] sm:$0xff]
        %v292 = vld [vmem:[%s222 + $0x68] sm:$0xff]
        %v293 = vld [vmem:[%s222 + $0x70] sm:$0xff]
        %v294 = vld [vmem:[%s222 + $0x78] sm:$0xff]
        %v295 = vld [vmem:[%s222 + $0x80] sm:$0xff]
        %v296 = vld [vmem:[%s222 + $0x88] sm:$0xff]
        %v297 = vld [vmem:[%s222 + $0x90] sm:$0xff]
        %v298 = vld [vmem:[%s222 + $0x98] sm:$0xff]
        %v299 = vld [vmem:[%s222 + $0xa0] sm:$0xff]
        %v300 = vld [vmem:[%s222 + $0xa8] sm:$0xff]
        %v301 = vld [vmem:[%s222 + $0xb0] sm:$0xff]
        %v302 = vld [vmem:[%s222 + $0xb8] sm:$0xff]
        %v303 = vld [vmem:[%s222 + $0xc0] sm:$0xff]
        %v304 = vld [vmem:[%s222 + $0xc8] sm:$0xff]
        %v305 = vld [vmem:[%s222 + $0xd0] sm:$0xff]
        %v306 = vld [vmem:[%s222 + $0xd8] sm:$0xff]
        %v307 = vld [vmem:[%s222 + $0xe0] sm:$0xff]
        %v308 = vld [vmem:[%s222 + $0xe8] sm:$0xff]
        %v309 = vld [vmem:[%s222 + $0xf0] sm:$0xff]
        %v310 = vld [vmem:[%s222 + $0xf8] sm:$0xff]
        %s311 = scalar_lea.vmem [#allocation2], 24
        %312 = vst.msk [vmem:[%s311 + $0x1] sm:$0xff] %vm223, %v279
        %313 = vst.msk [vmem:[%s311 + $0x9] sm:$0xff] %vm223, %v280
        %314 = vst.msk [vmem:[%s311 + $0x19] sm:$0xff] %vm223, %v281
        %315 = vst.msk [vmem:[%s311 + $0x21] sm:$0xff] %vm223, %v282
        %316 = vst.msk [vmem:[%s311 + $0x31] sm:$0xff] %vm223, %v283
        %317 = vst.msk [vmem:[%s311 + $0x39] sm:$0xff] %vm223, %v284
        %318 = vst.msk [vmem:[%s311 + $0x49] sm:$0xff] %vm223, %v285
        %319 = vst.msk [vmem:[%s311 + $0x51] sm:$0xff] %vm223, %v286
        %320 = vst.msk [vmem:[%s311 + $0x61] sm:$0xff] %vm223, %v287
        %321 = vst.msk [vmem:[%s311 + $0x69] sm:$0xff] %vm223, %v288
        %322 = vst.msk [vmem:[%s311 + $0x79] sm:$0xff] %vm223, %v289
        %323 = vst.msk [vmem:[%s311 + $0x81] sm:$0xff] %vm223, %v290
        %324 = vst.msk [vmem:[%s311 + $0x91] sm:$0xff] %vm223, %v291
        %325 = vst.msk [vmem:[%s311 + $0x99] sm:$0xff] %vm223, %v292
        %326 = vst.msk [vmem:[%s311 + $0xa9] sm:$0xff] %vm223, %v293
        %327 = vst.msk [vmem:[%s311 + $0xb1] sm:$0xff] %vm223, %v294
        %328 = vst.msk [vmem:[%s311 + $0xc1] sm:$0xff] %vm223, %v295
        %329 = vst.msk [vmem:[%s311 + $0xc9] sm:$0xff] %vm223, %v296
        %330 = vst.msk [vmem:[%s311 + $0xd9] sm:$0xff] %vm223, %v297
        %331 = vst.msk [vmem:[%s311 + $0xe1] sm:$0xff] %vm223, %v298
        %332 = vst.msk [vmem:[%s311 + $0xf1] sm:$0xff] %vm223, %v299
        %333 = vst.msk [vmem:[%s311 + $0xf9] sm:$0xff] %vm223, %v300
        %334 = vst.msk [vmem:[%s311 + $0x109] sm:$0xff] %vm223, %v301
        %335 = vst.msk [vmem:[%s311 + $0x111] sm:$0xff] %vm223, %v302
        %336 = vst.msk [vmem:[%s311 + $0x121] sm:$0xff] %vm223, %v303
        %337 = vst.msk [vmem:[%s311 + $0x129] sm:$0xff] %vm223, %v304
        %338 = vst.msk [vmem:[%s311 + $0x139] sm:$0xff] %vm223, %v305
        %339 = vst.msk [vmem:[%s311 + $0x141] sm:$0xff] %vm223, %v306
        %340 = vst.msk [vmem:[%s311 + $0x151] sm:$0xff] %vm223, %v307
        %341 = vst.msk [vmem:[%s311 + $0x159] sm:$0xff] %vm223, %v308
        %342 = vst.msk [vmem:[%s311 + $0x169] sm:$0xff] %vm223, %v309
        %343 = vst.msk [vmem:[%s311 + $0x171] sm:$0xff] %vm223, %v310
        %v344 = vld [vmem:[#allocation2] sm:$0xff]
        %v345 = vld [vmem:[#allocation2 + $0x8] sm:$0xff]
        %v346 = vld [vmem:[#allocation2 + $0x10] sm:$0x3]
        %v347 = vld [vmem:[#allocation2 + $0x18] sm:$0xff]
        %v348 = vld [vmem:[#allocation2 + $0x20] sm:$0xff]
        %v349 = vld [vmem:[#allocation2 + $0x28] sm:$0x3]
        %v350 = vld [vmem:[#allocation2 + $0x30] sm:$0xff]
        %v351 = vld [vmem:[#allocation2 + $0x38] sm:$0xff]
        %v352 = vld [vmem:[#allocation2 + $0x40] sm:$0x3]
        %v353 = vld [vmem:[#allocation2 + $0x48] sm:$0xff]
        %v354 = vld [vmem:[#allocation2 + $0x50] sm:$0xff]
        %v355 = vld [vmem:[#allocation2 + $0x58] sm:$0x3]
        %v356 = vld [vmem:[#allocation2 + $0x60] sm:$0xff]
        %v357 = vld [vmem:[#allocation2 + $0x68] sm:$0xff]
        %v358 = vld [vmem:[#allocation2 + $0x70] sm:$0x3]
        %v359 = vld [vmem:[#allocation2 + $0x78] sm:$0xff]
        %v360 = vld [vmem:[#allocation2 + $0x80] sm:$0xff]
        %v361 = vld [vmem:[#allocation2 + $0x88] sm:$0x3]
        %v362 = vld [vmem:[#allocation2 + $0x90] sm:$0xff]
        %v363 = vld [vmem:[#allocation2 + $0x98] sm:$0xff]
        %v364 = vld [vmem:[#allocation2 + $0xa0] sm:$0x3]
        %v365 = vld [vmem:[#allocation2 + $0xa8] sm:$0xff]
        %v366 = vld [vmem:[#allocation2 + $0xb0] sm:$0xff]
        %v367 = vld [vmem:[#allocation2 + $0xb8] sm:$0x3]
        %v368 = vld [vmem:[#allocation2 + $0xc0] sm:$0xff]
        %v369 = vld [vmem:[#allocation2 + $0xc8] sm:$0xff]
        %v370 = vld [vmem:[#allocation2 + $0xd0] sm:$0x3]
        %v371 = vld [vmem:[#allocation2 + $0xd8] sm:$0xff]
        %v372 = vld [vmem:[#allocation2 + $0xe0] sm:$0xff]
        %v373 = vld [vmem:[#allocation2 + $0xe8] sm:$0x3]
        %v374 = vld [vmem:[#allocation2 + $0xf0] sm:$0xff]
        %v375 = vld [vmem:[#allocation2 + $0xf8] sm:$0xff]
        %v376 = vld [vmem:[#allocation2 + $0x100] sm:$0x3]
        %v377 = vld [vmem:[#allocation2 + $0x108] sm:$0xff]
        %v378 = vld [vmem:[#allocation2 + $0x110] sm:$0xff]
        %v379 = vld [vmem:[#allocation2 + $0x118] sm:$0x3]
        %v380 = vld [vmem:[#allocation2 + $0x120] sm:$0xff]
        %v381 = vld [vmem:[#allocation2 + $0x128] sm:$0xff]
        %v382 = vld [vmem:[#allocation2 + $0x130] sm:$0x3]
        %v383 = vld [vmem:[#allocation2 + $0x138] sm:$0xff]
        %v384 = vld [vmem:[#allocation2 + $0x140] sm:$0xff]
        %v385 = vld [vmem:[#allocation2 + $0x148] sm:$0x3]
        %v386 = vld [vmem:[#allocation2 + $0x150] sm:$0xff]
        %v387 = vld [vmem:[#allocation2 + $0x158] sm:$0xff]
        %v388 = vld [vmem:[#allocation2 + $0x160] sm:$0x3]
        %v389 = vld [vmem:[#allocation2 + $0x168] sm:$0xff]
        %v390 = vld [vmem:[#allocation2 + $0x170] sm:$0xff]
        %v391 = vld [vmem:[#allocation2 + $0x178] sm:$0x3]
        %v392 = vld [vmem:[#allocation2 + $0x180] sm:$0xff]
        %v393 = vld [vmem:[#allocation2 + $0x188] sm:$0xff]
        %v394 = vld [vmem:[#allocation2 + $0x190] sm:$0x3]
        %v395 = vld [vmem:[#allocation2 + $0x198] sm:$0xff]
        %v396 = vld [vmem:[#allocation2 + $0x1a0] sm:$0xff]
        %v397 = vld [vmem:[#allocation2 + $0x1a8] sm:$0x3]
        %398 = vst.msk [vmem:[#allocation4] sm:$0xff] %vm223, %v344
        %399 = vst.msk [vmem:[#allocation4 + $0x8] sm:$0xff] %vm223, %v345
        %400 = vst.msk [vmem:[#allocation4 + $0x10] sm:$0xff] %vm223, %v347
        %401 = vst.msk [vmem:[#allocation4 + $0x18] sm:$0xff] %vm223, %v348
        %402 = vst.msk [vmem:[#allocation4 + $0x20] sm:$0xff] %vm223, %v350
        %403 = vst.msk [vmem:[#allocation4 + $0x28] sm:$0xff] %vm223, %v351
        %404 = vst.msk [vmem:[#allocation4 + $0x30] sm:$0xff] %vm223, %v353
        %405 = vst.msk [vmem:[#allocation4 + $0x38] sm:$0xff] %vm223, %v354
        %406 = vst.msk [vmem:[#allocation4 + $0x40] sm:$0xff] %vm223, %v356
        %407 = vst.msk [vmem:[#allocation4 + $0x48] sm:$0xff] %vm223, %v357
        %408 = vst.msk [vmem:[#allocation4 + $0x50] sm:$0xff] %vm223, %v359
        %409 = vst.msk [vmem:[#allocation4 + $0x58] sm:$0xff] %vm223, %v360
        %410 = vst.msk [vmem:[#allocation4 + $0x60] sm:$0xff] %vm223, %v362
        %411 = vst.msk [vmem:[#allocation4 + $0x68] sm:$0xff] %vm223, %v363
        %412 = vst.msk [vmem:[#allocation4 + $0x70] sm:$0xff] %vm223, %v365
        %413 = vst.msk [vmem:[#allocation4 + $0x78] sm:$0xff] %vm223, %v366
        %414 = vst.msk [vmem:[#allocation4 + $0x80] sm:$0xff] %vm223, %v368
        %415 = vst.msk [vmem:[#allocation4 + $0x88] sm:$0xff] %vm223, %v369
        %416 = vst.msk [vmem:[#allocation4 + $0x90] sm:$0xff] %vm223, %v371
        %417 = vst.msk [vmem:[#allocation4 + $0x98] sm:$0xff] %vm223, %v372
        %418 = vst.msk [vmem:[#allocation4 + $0xa0] sm:$0xff] %vm223, %v374
        %419 = vst.msk [vmem:[#allocation4 + $0xa8] sm:$0xff] %vm223, %v375
        %420 = vst.msk [vmem:[#allocation4 + $0xb0] sm:$0xff] %vm223, %v377
        %421 = vst.msk [vmem:[#allocation4 + $0xb8] sm:$0xff] %vm223, %v378
        %422 = vst.msk [vmem:[#allocation4 + $0xc0] sm:$0xff] %vm223, %v380
        %423 = vst.msk [vmem:[#allocation4 + $0xc8] sm:$0xff] %vm223, %v381
        %424 = vst.msk [vmem:[#allocation4 + $0xd0] sm:$0xff] %vm223, %v383
        %425 = vst.msk [vmem:[#allocation4 + $0xd8] sm:$0xff] %vm223, %v384
        %426 = vst.msk [vmem:[#allocation4 + $0xe0] sm:$0xff] %vm223, %v386
        %427 = vst.msk [vmem:[#allocation4 + $0xe8] sm:$0xff] %vm223, %v387
        %428 = vst.msk [vmem:[#allocation4 + $0xf0] sm:$0xff] %vm223, %v389
        %429 = vst.msk [vmem:[#allocation4 + $0xf8] sm:$0xff] %vm223, %v390
        %vm478 = vcmask 1046528
        %v479 = vrot.slane %v344, 1
        %v480 = vrot.slane %v345, 1
        %v481 = vsel %vm478, %v479, %v480
        %v482 = vrot.slane %v346, 1
        %v483 = vsel %vm478, %v480, %v482
        %v484 = vrot.slane %v347, 1
        %v485 = vrot.slane %v348, 1
        %v486 = vsel %vm478, %v484, %v485
        %v487 = vrot.slane %v349, 1
        %v488 = vsel %vm478, %v485, %v487
        %v489 = vrot.slane %v350, 1
        %v490 = vrot.slane %v351, 1
        %v491 = vsel %vm478, %v489, %v490
        %v492 = vrot.slane %v352, 1
        %v493 = vsel %vm478, %v490, %v492
        %v494 = vrot.slane %v353, 1
        %v495 = vrot.slane %v354, 1
        %v496 = vsel %vm478, %v494, %v495
        %v497 = vrot.slane %v355, 1
        %v498 = vsel %vm478, %v495, %v497
        %v499 = vrot.slane %v356, 1
        %v500 = vrot.slane %v357, 1
        %v501 = vsel %vm478, %v499, %v500
        %v502 = vrot.slane %v358, 1
        %v503 = vsel %vm478, %v500, %v502
        %v504 = vrot.slane %v359, 1
        %v505 = vrot.slane %v360, 1
        %v506 = vsel %vm478, %v504, %v505
        %v507 = vrot.slane %v361, 1
        %v508 = vsel %vm478, %v505, %v507
        %v509 = vrot.slane %v362, 1
        %v510 = vrot.slane %v363, 1
        %v511 = vsel %vm478, %v509, %v510
        %v512 = vrot.slane %v364, 1
        %v513 = vsel %vm478, %v510, %v512
        %v514 = vrot.slane %v365, 1
        %v515 = vrot.slane %v366, 1
        %v516 = vsel %vm478, %v514, %v515
        %v517 = vrot.slane %v367, 1
        %v518 = vsel %vm478, %v515, %v517
        %v519 = vrot.slane %v368, 1
        %v520 = vrot.slane %v369, 1
        %v521 = vsel %vm478, %v519, %v520
        %v522 = vrot.slane %v370, 1
        %v523 = vsel %vm478, %v520, %v522
        %v524 = vrot.slane %v371, 1
        %v525 = vrot.slane %v372, 1
        %v526 = vsel %vm478, %v524, %v525
        %v527 = vrot.slane %v373, 1
        %v528 = vsel %vm478, %v525, %v527
        %v529 = vrot.slane %v374, 1
        %v530 = vrot.slane %v375, 1
        %v531 = vsel %vm478, %v529, %v530
        %v532 = vrot.slane %v376, 1
        %v533 = vsel %vm478, %v530, %v532
        %v534 = vrot.slane %v377, 1
        %v535 = vrot.slane %v378, 1
        %v536 = vsel %vm478, %v534, %v535
        %v537 = vrot.slane %v379, 1
        %v538 = vsel %vm478, %v535, %v537
        %v539 = vrot.slane %v380, 1
        %v540 = vrot.slane %v381, 1
        %v541 = vsel %vm478, %v539, %v540
        %v542 = vrot.slane %v382, 1
        %v543 = vsel %vm478, %v540, %v542
        %v544 = vrot.slane %v383, 1
        %v545 = vrot.slane %v384, 1
        %v546 = vsel %vm478, %v544, %v545
        %v547 = vrot.slane %v385, 1
        %v548 = vsel %vm478, %v545, %v547
        %v549 = vrot.slane %v386, 1
        %v550 = vrot.slane %v387, 1
        %v551 = vsel %vm478, %v549, %v550
        %v552 = vrot.slane %v388, 1
        %v553 = vsel %vm478, %v550, %v552
        %v554 = vrot.slane %v389, 1
        %v555 = vrot.slane %v390, 1
        %v556 = vsel %vm478, %v554, %v555
        %v557 = vrot.slane %v391, 1
        %v558 = vsel %vm478, %v555, %v557
        %559 = vrot.lane.b32.xlu0 %v481, 4
        %v560 = vpop.permute.xlu0 %559
        %561 = vrot.lane.b32.xlu0 %v483, 4
        %v562 = vpop.permute.xlu0 %561
        %563 = vrot.lane.b32.xlu0 %v486, 4
        %v564 = vpop.permute.xlu0 %563
        %565 = vrot.lane.b32.xlu0 %v488, 4
        %v566 = vpop.permute.xlu0 %565
        %567 = vrot.lane.b32.xlu0 %v491, 4
        %v568 = vpop.permute.xlu0 %567
        %569 = vrot.lane.b32.xlu0 %v493, 4
        %v570 = vpop.permute.xlu0 %569
        %571 = vrot.lane.b32.xlu0 %v496, 4
        %v572 = vpop.permute.xlu0 %571
        %573 = vrot.lane.b32.xlu0 %v498, 4
        %v574 = vpop.permute.xlu0 %573
        %575 = vrot.lane.b32.xlu0 %v501, 4
        %v576 = vpop.permute.xlu0 %575
        %577 = vrot.lane.b32.xlu0 %v503, 4
        %v578 = vpop.permute.xlu0 %577
        %579 = vrot.lane.b32.xlu0 %v506, 4
        %v580 = vpop.permute.xlu0 %579
        %581 = vrot.lane.b32.xlu0 %v508, 4
        %v582 = vpop.permute.xlu0 %581
        %583 = vrot.lane.b32.xlu0 %v511, 4
        %v584 = vpop.permute.xlu0 %583
        %585 = vrot.lane.b32.xlu0 %v513, 4
        %v586 = vpop.permute.xlu0 %585
        %587 = vrot.lane.b32.xlu0 %v516, 4
        %v588 = vpop.permute.xlu0 %587
        %589 = vrot.lane.b32.xlu0 %v518, 4
        %v590 = vpop.permute.xlu0 %589
        %591 = vrot.lane.b32.xlu0 %v521, 4
        %v592 = vpop.permute.xlu0 %591
        %593 = vrot.lane.b32.xlu0 %v523, 4
        %v594 = vpop.permute.xlu0 %593
        %595 = vrot.lane.b32.xlu0 %v526, 4
        %v596 = vpop.permute.xlu0 %595
        %597 = vrot.lane.b32.xlu0 %v528, 4
        %v598 = vpop.permute.xlu0 %597
        %599 = vrot.lane.b32.xlu0 %v531, 4
        %v600 = vpop.permute.xlu0 %599
        %601 = vrot.lane.b32.xlu0 %v533, 4
        %v602 = vpop.permute.xlu0 %601
        %603 = vrot.lane.b32.xlu0 %v536, 4
        %v604 = vpop.permute.xlu0 %603
        %605 = vrot.lane.b32.xlu0 %v538, 4
        %v606 = vpop.permute.xlu0 %605
        %607 = vrot.lane.b32.xlu0 %v541, 4
        %v608 = vpop.permute.xlu0 %607
        %609 = vrot.lane.b32.xlu0 %v543, 4
        %v610 = vpop.permute.xlu0 %609
        %611 = vrot.lane.b32.xlu0 %v546, 4
        %v612 = vpop.permute.xlu0 %611
        %613 = vrot.lane.b32.xlu0 %v548, 4
        %v614 = vpop.permute.xlu0 %613
        %615 = vrot.lane.b32.xlu0 %v551, 4
        %v616 = vpop.permute.xlu0 %615
        %617 = vrot.lane.b32.xlu0 %v553, 4
        %v618 = vpop.permute.xlu0 %617
        %619 = vrot.lane.b32.xlu0 %v556, 4
        %v620 = vpop.permute.xlu0 %619
        %621 = vrot.lane.b32.xlu0 %v558, 4
        %v622 = vpop.permute.xlu0 %621
        %vm655 = vcmask 64544
        %656 = vst.msk [vmem:[#allocation4] sm:$0xff] %vm655, %v560
        %657 = vst.msk [vmem:[#allocation4 + $0x8] sm:$0xff] %vm655, %v562
        %658 = vst.msk [vmem:[#allocation4 + $0x10] sm:$0xff] %vm655, %v564
        %659 = vst.msk [vmem:[#allocation4 + $0x18] sm:$0xff] %vm655, %v566
        %660 = vst.msk [vmem:[#allocation4 + $0x20] sm:$0xff] %vm655, %v568
        %661 = vst.msk [vmem:[#allocation4 + $0x28] sm:$0xff] %vm655, %v570
        %662 = vst.msk [vmem:[#allocation4 + $0x30] sm:$0xff] %vm655, %v572
        %663 = vst.msk [vmem:[#allocation4 + $0x38] sm:$0xff] %vm655, %v574
        %664 = vst.msk [vmem:[#allocation4 + $0x40] sm:$0xff] %vm655, %v576
        %665 = vst.msk [vmem:[#allocation4 + $0x48] sm:$0xff] %vm655, %v578
        %666 = vst.msk [vmem:[#allocation4 + $0x50] sm:$0xff] %vm655, %v580
        %667 = vst.msk [vmem:[#allocation4 + $0x58] sm:$0xff] %vm655, %v582
        %668 = vst.msk [vmem:[#allocation4 + $0x60] sm:$0xff] %vm655, %v584
        %669 = vst.msk [vmem:[#allocation4 + $0x68] sm:$0xff] %vm655, %v586
        %670 = vst.msk [vmem:[#allocation4 + $0x70] sm:$0xff] %vm655, %v588
        %671 = vst.msk [vmem:[#allocation4 + $0x78] sm:$0xff] %vm655, %v590
        %672 = vst.msk [vmem:[#allocation4 + $0x80] sm:$0xff] %vm655, %v592
        %673 = vst.msk [vmem:[#allocation4 + $0x88] sm:$0xff] %vm655, %v594
        %674 = vst.msk [vmem:[#allocation4 + $0x90] sm:$0xff] %vm655, %v596
        %675 = vst.msk [vmem:[#allocation4 + $0x98] sm:$0xff] %vm655, %v598
        %676 = vst.msk [vmem:[#allocation4 + $0xa0] sm:$0xff] %vm655, %v600
        %677 = vst.msk [vmem:[#allocation4 + $0xa8] sm:$0xff] %vm655, %v602
        %678 = vst.msk [vmem:[#allocation4 + $0xb0] sm:$0xff] %vm655, %v604
        %679 = vst.msk [vmem:[#allocation4 + $0xb8] sm:$0xff] %vm655, %v606
        %680 = vst.msk [vmem:[#allocation4 + $0xc0] sm:$0xff] %vm655, %v608
        %681 = vst.msk [vmem:[#allocation4 + $0xc8] sm:$0xff] %vm655, %v610
        %682 = vst.msk [vmem:[#allocation4 + $0xd0] sm:$0xff] %vm655, %v612
        %683 = vst.msk [vmem:[#allocation4 + $0xd8] sm:$0xff] %vm655, %v614
        %684 = vst.msk [vmem:[#allocation4 + $0xe0] sm:$0xff] %vm655, %v616
        %685 = vst.msk [vmem:[#allocation4 + $0xe8] sm:$0xff] %vm655, %v618
        %686 = vst.msk [vmem:[#allocation4 + $0xf0] sm:$0xff] %vm655, %v620
        %687 = vst.msk [vmem:[#allocation4 + $0xf8] sm:$0xff] %vm655, %v622
        %vm688 = vcmask 1045504
        %v689 = vrot.slane %v344, 2
        %v690 = vrot.slane %v345, 2
        %v691 = vsel %vm688, %v689, %v690
        %v692 = vrot.slane %v346, 2
        %v693 = vsel %vm688, %v690, %v692
        %v694 = vrot.slane %v347, 2
        %v695 = vrot.slane %v348, 2
        %v696 = vsel %vm688, %v694, %v695
        %v697 = vrot.slane %v349, 2
        %v698 = vsel %vm688, %v695, %v697
        %v699 = vrot.slane %v350, 2
        %v700 = vrot.slane %v351, 2
        %v701 = vsel %vm688, %v699, %v700
        %v702 = vrot.slane %v352, 2
        %v703 = vsel %vm688, %v700, %v702
        %v704 = vrot.slane %v353, 2
        %v705 = vrot.slane %v354, 2
        %v706 = vsel %vm688, %v704, %v705
        %v707 = vrot.slane %v355, 2
        %v708 = vsel %vm688, %v705, %v707
        %v709 = vrot.slane %v356, 2
        %v710 = vrot.slane %v357, 2
        %v711 = vsel %vm688, %v709, %v710
        %v712 = vrot.slane %v358, 2
        %v713 = vsel %vm688, %v710, %v712
        %v714 = vrot.slane %v359, 2
        %v715 = vrot.slane %v360, 2
        %v716 = vsel %vm688, %v714, %v715
        %v717 = vrot.slane %v361, 2
        %v718 = vsel %vm688, %v715, %v717
        %v719 = vrot.slane %v362, 2
        %v720 = vrot.slane %v363, 2
        %v721 = vsel %vm688, %v719, %v720
        %v722 = vrot.slane %v364, 2
        %v723 = vsel %vm688, %v720, %v722
        %v724 = vrot.slane %v365, 2
        %v725 = vrot.slane %v366, 2
        %v726 = vsel %vm688, %v724, %v725
        %v727 = vrot.slane %v367, 2
        %v728 = vsel %vm688, %v725, %v727
        %v729 = vrot.slane %v368, 2
        %v730 = vrot.slane %v369, 2
        %v731 = vsel %vm688, %v729, %v730
        %v732 = vrot.slane %v370, 2
        %v733 = vsel %vm688, %v730, %v732
        %v734 = vrot.slane %v371, 2
        %v735 = vrot.slane %v372, 2
        %v736 = vsel %vm688, %v734, %v735
        %v737 = vrot.slane %v373, 2
        %v738 = vsel %vm688, %v735, %v737
        %v739 = vrot.slane %v374, 2
        %v740 = vrot.slane %v375, 2
        %v741 = vsel %vm688, %v739, %v740
        %v742 = vrot.slane %v376, 2
        %v743 = vsel %vm688, %v740, %v742
        %v744 = vrot.slane %v377, 2
        %v745 = vrot.slane %v378, 2
        %v746 = vsel %vm688, %v744, %v745
        %v747 = vrot.slane %v379, 2
        %v748 = vsel %vm688, %v745, %v747
        %v749 = vrot.slane %v380, 2
        %v750 = vrot.slane %v381, 2
        %v751 = vsel %vm688, %v749, %v750
        %v752 = vrot.slane %v382, 2
        %v753 = vsel %vm688, %v750, %v752
        %v754 = vrot.slane %v383, 2
        %v755 = vrot.slane %v384, 2
        %v756 = vsel %vm688, %v754, %v755
        %v757 = vrot.slane %v385, 2
        %v758 = vsel %vm688, %v755, %v757
        %v759 = vrot.slane %v386, 2
        %v760 = vrot.slane %v387, 2
        %v761 = vsel %vm688, %v759, %v760
        %v762 = vrot.slane %v388, 2
        %v763 = vsel %vm688, %v760, %v762
        %v764 = vrot.slane %v389, 2
        %v765 = vrot.slane %v390, 2
        %v766 = vsel %vm688, %v764, %v765
        %v767 = vrot.slane %v391, 2
        %v768 = vsel %vm688, %v765, %v767
        %769 = vrot.lane.b32.xlu0 %v691, 8
        %v770 = vpop.permute.xlu0 %769
        %771 = vrot.lane.b32.xlu0 %v693, 8
        %v772 = vpop.permute.xlu0 %771
        %773 = vrot.lane.b32.xlu0 %v696, 8
        %v774 = vpop.permute.xlu0 %773
        %775 = vrot.lane.b32.xlu0 %v698, 8
        %v776 = vpop.permute.xlu0 %775
        %777 = vrot.lane.b32.xlu0 %v701, 8
        %v778 = vpop.permute.xlu0 %777
        %779 = vrot.lane.b32.xlu0 %v703, 8
        %v780 = vpop.permute.xlu0 %779
        %781 = vrot.lane.b32.xlu0 %v706, 8
        %v782 = vpop.permute.xlu0 %781
        %783 = vrot.lane.b32.xlu0 %v708, 8
        %v784 = vpop.permute.xlu0 %783
        %785 = vrot.lane.b32.xlu0 %v711, 8
        %v786 = vpop.permute.xlu0 %785
        %787 = vrot.lane.b32.xlu0 %v713, 8
        %v788 = vpop.permute.xlu0 %787
        %789 = vrot.lane.b32.xlu0 %v716, 8
        %v790 = vpop.permute.xlu0 %789
        %791 = vrot.lane.b32.xlu0 %v718, 8
        %v792 = vpop.permute.xlu0 %791
        %793 = vrot.lane.b32.xlu0 %v721, 8
        %v794 = vpop.permute.xlu0 %793
        %795 = vrot.lane.b32.xlu0 %v723, 8
        %v796 = vpop.permute.xlu0 %795
        %797 = vrot.lane.b32.xlu0 %v726, 8
        %v798 = vpop.permute.xlu0 %797
        %799 = vrot.lane.b32.xlu0 %v728, 8
        %v800 = vpop.permute.xlu0 %799
        %801 = vrot.lane.b32.xlu0 %v731, 8
        %v802 = vpop.permute.xlu0 %801
        %803 = vrot.lane.b32.xlu0 %v733, 8
        %v804 = vpop.permute.xlu0 %803
        %805 = vrot.lane.b32.xlu0 %v736, 8
        %v806 = vpop.permute.xlu0 %805
        %807 = vrot.lane.b32.xlu0 %v738, 8
        %v808 = vpop.permute.xlu0 %807
        %809 = vrot.lane.b32.xlu0 %v741, 8
        %v810 = vpop.permute.xlu0 %809
        %811 = vrot.lane.b32.xlu0 %v743, 8
        %v812 = vpop.permute.xlu0 %811
        %813 = vrot.lane.b32.xlu0 %v746, 8
        %v814 = vpop.permute.xlu0 %813
        %815 = vrot.lane.b32.xlu0 %v748, 8
        %v816 = vpop.permute.xlu0 %815
        %817 = vrot.lane.b32.xlu0 %v751, 8
        %v818 = vpop.permute.xlu0 %817
        %819 = vrot.lane.b32.xlu0 %v753, 8
        %v820 = vpop.permute.xlu0 %819
        %821 = vrot.lane.b32.xlu0 %v756, 8
        %v822 = vpop.permute.xlu0 %821
        %823 = vrot.lane.b32.xlu0 %v758, 8
        %v824 = vpop.permute.xlu0 %823
        %825 = vrot.lane.b32.xlu0 %v761, 8
        %v826 = vpop.permute.xlu0 %825
        %827 = vrot.lane.b32.xlu0 %v763, 8
        %v828 = vpop.permute.xlu0 %827
        %829 = vrot.lane.b32.xlu0 %v766, 8
        %v830 = vpop.permute.xlu0 %829
        %831 = vrot.lane.b32.xlu0 %v768, 8
        %v832 = vpop.permute.xlu0 %831
        %vm865 = vcmask 97344
        %866 = vst.msk [vmem:[#allocation4] sm:$0xff] %vm865, %v770
        %867 = vst.msk [vmem:[#allocation4 + $0x8] sm:$0xff] %vm865, %v772
        %868 = vst.msk [vmem:[#allocation4 + $0x10] sm:$0xff] %vm865, %v774
        %869 = vst.msk [vmem:[#allocation4 + $0x18] sm:$0xff] %vm865, %v776
        %870 = vst.msk [vmem:[#allocation4 + $0x20] sm:$0xff] %vm865, %v778
        %871 = vst.msk [vmem:[#allocation4 + $0x28] sm:$0xff] %vm865, %v780
        %872 = vst.msk [vmem:[#allocation4 + $0x30] sm:$0xff] %vm865, %v782
        %873 = vst.msk [vmem:[#allocation4 + $0x38] sm:$0xff] %vm865, %v784
        %874 = vst.msk [vmem:[#allocation4 + $0x40] sm:$0xff] %vm865, %v786
        %875 = vst.msk [vmem:[#allocation4 + $0x48] sm:$0xff] %vm865, %v788
        %876 = vst.msk [vmem:[#allocation4 + $0x50] sm:$0xff] %vm865, %v790
        %877 = vst.msk [vmem:[#allocation4 + $0x58] sm:$0xff] %vm865, %v792
        %878 = vst.msk [vmem:[#allocation4 + $0x60] sm:$0xff] %vm865, %v794
        %879 = vst.msk [vmem:[#allocation4 + $0x68] sm:$0xff] %vm865, %v796
        %880 = vst.msk [vmem:[#allocation4 + $0x70] sm:$0xff] %vm865, %v798
        %881 = vst.msk [vmem:[#allocation4 + $0x78] sm:$0xff] %vm865, %v800
        %882 = vst.msk [vmem:[#allocation4 + $0x80] sm:$0xff] %vm865, %v802
        %883 = vst.msk [vmem:[#allocation4 + $0x88] sm:$0xff] %vm865, %v804
        %884 = vst.msk [vmem:[#allocation4 + $0x90] sm:$0xff] %vm865, %v806
        %885 = vst.msk [vmem:[#allocation4 + $0x98] sm:$0xff] %vm865, %v808
        %886 = vst.msk [vmem:[#allocation4 + $0xa0] sm:$0xff] %vm865, %v810
        %887 = vst.msk [vmem:[#allocation4 + $0xa8] sm:$0xff] %vm865, %v812
        %888 = vst.msk [vmem:[#allocation4 + $0xb0] sm:$0xff] %vm865, %v814
        %889 = vst.msk [vmem:[#allocation4 + $0xb8] sm:$0xff] %vm865, %v816
        %890 = vst.msk [vmem:[#allocation4 + $0xc0] sm:$0xff] %vm865, %v818
        %891 = vst.msk [vmem:[#allocation4 + $0xc8] sm:$0xff] %vm865, %v820
        %892 = vst.msk [vmem:[#allocation4 + $0xd0] sm:$0xff] %vm865, %v822
        %893 = vst.msk [vmem:[#allocation4 + $0xd8] sm:$0xff] %vm865, %v824
        %894 = vst.msk [vmem:[#allocation4 + $0xe0] sm:$0xff] %vm865, %v826
        %895 = vst.msk [vmem:[#allocation4 + $0xe8] sm:$0xff] %vm865, %v828
        %896 = vst.msk [vmem:[#allocation4 + $0xf0] sm:$0xff] %vm865, %v830
        %897 = vst.msk [vmem:[#allocation4 + $0xf8] sm:$0xff] %vm865, %v832
        %900 = vrot.lane.b32.xlu0 %v347, 12
        %v901 = vpop.permute.xlu0 %900
        %902 = vrot.lane.b32.xlu0 %v348, 12
        %v903 = vpop.permute.xlu0 %902
        %904 = vrot.lane.b32.xlu0 %v350, 12
        %v905 = vpop.permute.xlu0 %904
        %906 = vrot.lane.b32.xlu0 %v351, 12
        %v907 = vpop.permute.xlu0 %906
        %908 = vrot.lane.b32.xlu0 %v353, 12
        %v909 = vpop.permute.xlu0 %908
        %910 = vrot.lane.b32.xlu0 %v354, 12
        %v911 = vpop.permute.xlu0 %910
        %912 = vrot.lane.b32.xlu0 %v356, 12
        %v913 = vpop.permute.xlu0 %912
        %914 = vrot.lane.b32.xlu0 %v357, 12
        %v915 = vpop.permute.xlu0 %914
        %916 = vrot.lane.b32.xlu0 %v359, 12
        %v917 = vpop.permute.xlu0 %916
        %918 = vrot.lane.b32.xlu0 %v360, 12
        %v919 = vpop.permute.xlu0 %918
        %920 = vrot.lane.b32.xlu0 %v362, 12
        %v921 = vpop.permute.xlu0 %920
        %922 = vrot.lane.b32.xlu0 %v363, 12
        %v923 = vpop.permute.xlu0 %922
        %924 = vrot.lane.b32.xlu0 %v365, 12
        %v925 = vpop.permute.xlu0 %924
        %926 = vrot.lane.b32.xlu0 %v366, 12
        %v927 = vpop.permute.xlu0 %926
        %928 = vrot.lane.b32.xlu0 %v368, 12
        %v929 = vpop.permute.xlu0 %928
        %930 = vrot.lane.b32.xlu0 %v369, 12
        %v931 = vpop.permute.xlu0 %930
        %932 = vrot.lane.b32.xlu0 %v371, 12
        %v933 = vpop.permute.xlu0 %932
        %934 = vrot.lane.b32.xlu0 %v372, 12
        %v935 = vpop.permute.xlu0 %934
        %936 = vrot.lane.b32.xlu0 %v374, 12
        %v937 = vpop.permute.xlu0 %936
        %938 = vrot.lane.b32.xlu0 %v375, 12
        %v939 = vpop.permute.xlu0 %938
        %940 = vrot.lane.b32.xlu0 %v377, 12
        %v941 = vpop.permute.xlu0 %940
        %942 = vrot.lane.b32.xlu0 %v378, 12
        %v943 = vpop.permute.xlu0 %942
        %944 = vrot.lane.b32.xlu0 %v380, 12
        %v945 = vpop.permute.xlu0 %944
        %946 = vrot.lane.b32.xlu0 %v381, 12
        %v947 = vpop.permute.xlu0 %946
        %948 = vrot.lane.b32.xlu0 %v383, 12
        %v949 = vpop.permute.xlu0 %948
        %950 = vrot.lane.b32.xlu0 %v384, 12
        %v951 = vpop.permute.xlu0 %950
        %952 = vrot.lane.b32.xlu0 %v386, 12
        %v953 = vpop.permute.xlu0 %952
        %954 = vrot.lane.b32.xlu0 %v387, 12
        %v955 = vpop.permute.xlu0 %954
        %956 = vrot.lane.b32.xlu0 %v389, 12
        %v957 = vpop.permute.xlu0 %956
        %958 = vrot.lane.b32.xlu0 %v390, 12
        %v959 = vpop.permute.xlu0 %958
        %960 = vrot.lane.b32.xlu0 %v392, 12
        %v961 = vpop.permute.xlu0 %960
        %962 = vrot.lane.b32.xlu0 %v393, 12
        %v963 = vpop.permute.xlu0 %962
        %vm996 = vcmask 130144
        %997 = vst.msk [vmem:[#allocation4] sm:$0xff] %vm996, %v901
        %998 = vst.msk [vmem:[#allocation4 + $0x8] sm:$0xff] %vm996, %v903
        %999 = vst.msk [vmem:[#allocation4 + $0x10] sm:$0xff] %vm996, %v905
        %1000 = vst.msk [vmem:[#allocation4 + $0x18] sm:$0xff] %vm996, %v907
        %1001 = vst.msk [vmem:[#allocation4 + $0x20] sm:$0xff] %vm996, %v909
        %1002 = vst.msk [vmem:[#allocation4 + $0x28] sm:$0xff] %vm996, %v911
        %1003 = vst.msk [vmem:[#allocation4 + $0x30] sm:$0xff] %vm996, %v913
        %1004 = vst.msk [vmem:[#allocation4 + $0x38] sm:$0xff] %vm996, %v915
        %1005 = vst.msk [vmem:[#allocation4 + $0x40] sm:$0xff] %vm996, %v917
        %1006 = vst.msk [vmem:[#allocation4 + $0x48] sm:$0xff] %vm996, %v919
        %1007 = vst.msk [vmem:[#allocation4 + $0x50] sm:$0xff] %vm996, %v921
        %1008 = vst.msk [vmem:[#allocation4 + $0x58] sm:$0xff] %vm996, %v923
        %1009 = vst.msk [vmem:[#allocation4 + $0x60] sm:$0xff] %vm996, %v925
        %1010 = vst.msk [vmem:[#allocation4 + $0x68] sm:$0xff] %vm996, %v927
        %1011 = vst.msk [vmem:[#allocation4 + $0x70] sm:$0xff] %vm996, %v929
        %1012 = vst.msk [vmem:[#allocation4 + $0x78] sm:$0xff] %vm996, %v931
        %1013 = vst.msk [vmem:[#allocation4 + $0x80] sm:$0xff] %vm996, %v933
        %1014 = vst.msk [vmem:[#allocation4 + $0x88] sm:$0xff] %vm996, %v935
        %1015 = vst.msk [vmem:[#allocation4 + $0x90] sm:$0xff] %vm996, %v937
        %1016 = vst.msk [vmem:[#allocation4 + $0x98] sm:$0xff] %vm996, %v939
        %1017 = vst.msk [vmem:[#allocation4 + $0xa0] sm:$0xff] %vm996, %v941
        %1018 = vst.msk [vmem:[#allocation4 + $0xa8] sm:$0xff] %vm996, %v943
        %1019 = vst.msk [vmem:[#allocation4 + $0xb0] sm:$0xff] %vm996, %v945
        %1020 = vst.msk [vmem:[#allocation4 + $0xb8] sm:$0xff] %vm996, %v947
        %1021 = vst.msk [vmem:[#allocation4 + $0xc0] sm:$0xff] %vm996, %v949
        %1022 = vst.msk [vmem:[#allocation4 + $0xc8] sm:$0xff] %vm996, %v951
        %1023 = vst.msk [vmem:[#allocation4 + $0xd0] sm:$0xff] %vm996, %v953
        %1024 = vst.msk [vmem:[#allocation4 + $0xd8] sm:$0xff] %vm996, %v955
        %1025 = vst.msk [vmem:[#allocation4 + $0xe0] sm:$0xff] %vm996, %v957
        %1026 = vst.msk [vmem:[#allocation4 + $0xe8] sm:$0xff] %vm996, %v959
        %1027 = vst.msk [vmem:[#allocation4 + $0xf0] sm:$0xff] %vm996, %v961
        %1028 = vst.msk [vmem:[#allocation4 + $0xf8] sm:$0xff] %vm996, %v963
        %v1030 = vrot.slane %v392, 1
        %v1031 = vrot.slane %v393, 1
        %v1032 = vsel %vm478, %v1030, %v1031
        %v1033 = vrot.slane %v394, 1
        %v1034 = vsel %vm478, %v1031, %v1033
        %1035 = vrot.lane.b32.xlu0 %v486, 16
        %v1036 = vpop.permute.xlu0 %1035
        %1037 = vrot.lane.b32.xlu0 %v488, 16
        %v1038 = vpop.permute.xlu0 %1037
        %1039 = vrot.lane.b32.xlu0 %v491, 16
        %v1040 = vpop.permute.xlu0 %1039
        %1041 = vrot.lane.b32.xlu0 %v493, 16
        %v1042 = vpop.permute.xlu0 %1041
        %1043 = vrot.lane.b32.xlu0 %v496, 16
        %v1044 = vpop.permute.xlu0 %1043
        %1045 = vrot.lane.b32.xlu0 %v498, 16
        %v1046 = vpop.permute.xlu0 %1045
        %1047 = vrot.lane.b32.xlu0 %v501, 16
        %v1048 = vpop.permute.xlu0 %1047
        %1049 = vrot.lane.b32.xlu0 %v503, 16
        %v1050 = vpop.permute.xlu0 %1049
        %1051 = vrot.lane.b32.xlu0 %v506, 16
        %v1052 = vpop.permute.xlu0 %1051
        %1053 = vrot.lane.b32.xlu0 %v508, 16
        %v1054 = vpop.permute.xlu0 %1053
        %1055 = vrot.lane.b32.xlu0 %v511, 16
        %v1056 = vpop.permute.xlu0 %1055
        %1057 = vrot.lane.b32.xlu0 %v513, 16
        %v1058 = vpop.permute.xlu0 %1057
        %1059 = vrot.lane.b32.xlu0 %v516, 16
        %v1060 = vpop.permute.xlu0 %1059
        %1061 = vrot.lane.b32.xlu0 %v518, 16
        %v1062 = vpop.permute.xlu0 %1061
        %1063 = vrot.lane.b32.xlu0 %v521, 16
        %v1064 = vpop.permute.xlu0 %1063
        %1065 = vrot.lane.b32.xlu0 %v523, 16
        %v1066 = vpop.permute.xlu0 %1065
        %1067 = vrot.lane.b32.xlu0 %v526, 16
        %v1068 = vpop.permute.xlu0 %1067
        %1069 = vrot.lane.b32.xlu0 %v528, 16
        %v1070 = vpop.permute.xlu0 %1069
        %1071 = vrot.lane.b32.xlu0 %v531, 16
        %v1072 = vpop.permute.xlu0 %1071
        %1073 = vrot.lane.b32.xlu0 %v533, 16
        %v1074 = vpop.permute.xlu0 %1073
        %1075 = vrot.lane.b32.xlu0 %v536, 16
        %v1076 = vpop.permute.xlu0 %1075
        %1077 = vrot.lane.b32.xlu0 %v538, 16
        %v1078 = vpop.permute.xlu0 %1077
        %1079 = vrot.lane.b32.xlu0 %v541, 16
        %v1080 = vpop.permute.xlu0 %1079
        %1081 = vrot.lane.b32.xlu0 %v543, 16
        %v1082 = vpop.permute.xlu0 %1081
        %1083 = vrot.lane.b32.xlu0 %v546, 16
        %v1084 = vpop.permute.xlu0 %1083
        %1085 = vrot.lane.b32.xlu0 %v548, 16
        %v1086 = vpop.permute.xlu0 %1085
        %1087 = vrot.lane.b32.xlu0 %v551, 16
        %v1088 = vpop.permute.xlu0 %1087
        %1089 = vrot.lane.b32.xlu0 %v553, 16
        %v1090 = vpop.permute.xlu0 %1089
        %1091 = vrot.lane.b32.xlu0 %v556, 16
        %v1092 = vpop.permute.xlu0 %1091
        %1093 = vrot.lane.b32.xlu0 %v558, 16
        %v1094 = vpop.permute.xlu0 %1093
        %1095 = vrot.lane.b32.xlu0 %v1032, 16
        %v1096 = vpop.permute.xlu0 %1095
        %1097 = vrot.lane.b32.xlu0 %v1034, 16
        %v1098 = vpop.permute.xlu0 %1097
        %vm1131 = vcmask 162944
        %1132 = vst.msk [vmem:[#allocation4] sm:$0xff] %vm1131, %v1036
        %1133 = vst.msk [vmem:[#allocation4 + $0x8] sm:$0xff] %vm1131, %v1038
        %1134 = vst.msk [vmem:[#allocation4 + $0x10] sm:$0xff] %vm1131, %v1040
        %1135 = vst.msk [vmem:[#allocation4 + $0x18] sm:$0xff] %vm1131, %v1042
        %1136 = vst.msk [vmem:[#allocation4 + $0x20] sm:$0xff] %vm1131, %v1044
        %1137 = vst.msk [vmem:[#allocation4 + $0x28] sm:$0xff] %vm1131, %v1046
        %1138 = vst.msk [vmem:[#allocation4 + $0x30] sm:$0xff] %vm1131, %v1048
        %1139 = vst.msk [vmem:[#allocation4 + $0x38] sm:$0xff] %vm1131, %v1050
        %1140 = vst.msk [vmem:[#allocation4 + $0x40] sm:$0xff] %vm1131, %v1052
        %1141 = vst.msk [vmem:[#allocation4 + $0x48] sm:$0xff] %vm1131, %v1054
        %1142 = vst.msk [vmem:[#allocation4 + $0x50] sm:$0xff] %vm1131, %v1056
        %1143 = vst.msk [vmem:[#allocation4 + $0x58] sm:$0xff] %vm1131, %v1058
        %1144 = vst.msk [vmem:[#allocation4 + $0x60] sm:$0xff] %vm1131, %v1060
        %1145 = vst.msk [vmem:[#allocation4 + $0x68] sm:$0xff] %vm1131, %v1062
        %1146 = vst.msk [vmem:[#allocation4 + $0x70] sm:$0xff] %vm1131, %v1064
        %1147 = vst.msk [vmem:[#allocation4 + $0x78] sm:$0xff] %vm1131, %v1066
        %1148 = vst.msk [vmem:[#allocation4 + $0x80] sm:$0xff] %vm1131, %v1068
        %1149 = vst.msk [vmem:[#allocation4 + $0x88] sm:$0xff] %vm1131, %v1070
        %1150 = vst.msk [vmem:[#allocation4 + $0x90] sm:$0xff] %vm1131, %v1072
        %1151 = vst.msk [vmem:[#allocation4 + $0x98] sm:$0xff] %vm1131, %v1074
        %1152 = vst.msk [vmem:[#allocation4 + $0xa0] sm:$0xff] %vm1131, %v1076
        %1153 = vst.msk [vmem:[#allocation4 + $0xa8] sm:$0xff] %vm1131, %v1078
        %1154 = vst.msk [vmem:[#allocation4 + $0xb0] sm:$0xff] %vm1131, %v1080
        %1155 = vst.msk [vmem:[#allocation4 + $0xb8] sm:$0xff] %vm1131, %v1082
        %1156 = vst.msk [vmem:[#allocation4 + $0xc0] sm:$0xff] %vm1131, %v1084
        %1157 = vst.msk [vmem:[#allocation4 + $0xc8] sm:$0xff] %vm1131, %v1086
        %1158 = vst.msk [vmem:[#allocation4 + $0xd0] sm:$0xff] %vm1131, %v1088
        %1159 = vst.msk [vmem:[#allocation4 + $0xd8] sm:$0xff] %vm1131, %v1090
        %1160 = vst.msk [vmem:[#allocation4 + $0xe0] sm:$0xff] %vm1131, %v1092
        %1161 = vst.msk [vmem:[#allocation4 + $0xe8] sm:$0xff] %vm1131, %v1094
        %1162 = vst.msk [vmem:[#allocation4 + $0xf0] sm:$0xff] %vm1131, %v1096
        %1163 = vst.msk [vmem:[#allocation4 + $0xf8] sm:$0xff] %vm1131, %v1098
        %v1164 = vrot.slane %v392, 2
        %v1165 = vrot.slane %v393, 2
        %v1166 = vsel %vm688, %v1164, %v1165
        %v1167 = vrot.slane %v394, 2
        %v1168 = vsel %vm688, %v1165, %v1167
        %1169 = vrot.lane.b32.xlu0 %v696, 20
        %v1170 = vpop.permute.xlu0 %1169
        %1171 = vrot.lane.b32.xlu0 %v698, 20
        %v1172 = vpop.permute.xlu0 %1171
        %1173 = vrot.lane.b32.xlu0 %v701, 20
        %v1174 = vpop.permute.xlu0 %1173
        %1175 = vrot.lane.b32.xlu0 %v703, 20
        %v1176 = vpop.permute.xlu0 %1175
        %1177 = vrot.lane.b32.xlu0 %v706, 20
        %v1178 = vpop.permute.xlu0 %1177
        %1179 = vrot.lane.b32.xlu0 %v708, 20
        %v1180 = vpop.permute.xlu0 %1179
        %1181 = vrot.lane.b32.xlu0 %v711, 20
        %v1182 = vpop.permute.xlu0 %1181
        %1183 = vrot.lane.b32.xlu0 %v713, 20
        %v1184 = vpop.permute.xlu0 %1183
        %1185 = vrot.lane.b32.xlu0 %v716, 20
        %v1186 = vpop.permute.xlu0 %1185
        %1187 = vrot.lane.b32.xlu0 %v718, 20
        %v1188 = vpop.permute.xlu0 %1187
        %1189 = vrot.lane.b32.xlu0 %v721, 20
        %v1190 = vpop.permute.xlu0 %1189
        %1191 = vrot.lane.b32.xlu0 %v723, 20
        %v1192 = vpop.permute.xlu0 %1191
        %1193 = vrot.lane.b32.xlu0 %v726, 20
        %v1194 = vpop.permute.xlu0 %1193
        %1195 = vrot.lane.b32.xlu0 %v728, 20
        %v1196 = vpop.permute.xlu0 %1195
        %1197 = vrot.lane.b32.xlu0 %v731, 20
        %v1198 = vpop.permute.xlu0 %1197
        %1199 = vrot.lane.b32.xlu0 %v733, 20
        %v1200 = vpop.permute.xlu0 %1199
        %1201 = vrot.lane.b32.xlu0 %v736, 20
        %v1202 = vpop.permute.xlu0 %1201
        %1203 = vrot.lane.b32.xlu0 %v738, 20
        %v1204 = vpop.permute.xlu0 %1203
        %1205 = vrot.lane.b32.xlu0 %v741, 20
        %v1206 = vpop.permute.xlu0 %1205
        %1207 = vrot.lane.b32.xlu0 %v743, 20
        %v1208 = vpop.permute.xlu0 %1207
        %1209 = vrot.lane.b32.xlu0 %v746, 20
        %v1210 = vpop.permute.xlu0 %1209
        %1211 = vrot.lane.b32.xlu0 %v748, 20
        %v1212 = vpop.permute.xlu0 %1211
        %1213 = vrot.lane.b32.xlu0 %v751, 20
        %v1214 = vpop.permute.xlu0 %1213
        %1215 = vrot.lane.b32.xlu0 %v753, 20
        %v1216 = vpop.permute.xlu0 %1215
        %1217 = vrot.lane.b32.xlu0 %v756, 20
        %v1218 = vpop.permute.xlu0 %1217
        %1219 = vrot.lane.b32.xlu0 %v758, 20
        %v1220 = vpop.permute.xlu0 %1219
        %1221 = vrot.lane.b32.xlu0 %v761, 20
        %v1222 = vpop.permute.xlu0 %1221
        %1223 = vrot.lane.b32.xlu0 %v763, 20
        %v1224 = vpop.permute.xlu0 %1223
        %1225 = vrot.lane.b32.xlu0 %v766, 20
        %v1226 = vpop.permute.xlu0 %1225
        %1227 = vrot.lane.b32.xlu0 %v768, 20
        %v1228 = vpop.permute.xlu0 %1227
        %1229 = vrot.lane.b32.xlu0 %v1166, 20
        %v1230 = vpop.permute.xlu0 %1229
        %1231 = vrot.lane.b32.xlu0 %v1168, 20
        %v1232 = vpop.permute.xlu0 %1231
        %vm1265 = vcmask 195744
        %1266 = vst.msk [vmem:[#allocation4] sm:$0xff] %vm1265, %v1170
        %1267 = vst.msk [vmem:[#allocation4 + $0x8] sm:$0xff] %vm1265, %v1172
        %1268 = vst.msk [vmem:[#allocation4 + $0x10] sm:$0xff] %vm1265, %v1174
        %1269 = vst.msk [vmem:[#allocation4 + $0x18] sm:$0xff] %vm1265, %v1176
        %1270 = vst.msk [vmem:[#allocation4 + $0x20] sm:$0xff] %vm1265, %v1178
        %1271 = vst.msk [vmem:[#allocation4 + $0x28] sm:$0xff] %vm1265, %v1180
        %1272 = vst.msk [vmem:[#allocation4 + $0x30] sm:$0xff] %vm1265, %v1182
        %1273 = vst.msk [vmem:[#allocation4 + $0x38] sm:$0xff] %vm1265, %v1184
        %1274 = vst.msk [vmem:[#allocation4 + $0x40] sm:$0xff] %vm1265, %v1186
        %1275 = vst.msk [vmem:[#allocation4 + $0x48] sm:$0xff] %vm1265, %v1188
        %1276 = vst.msk [vmem:[#allocation4 + $0x50] sm:$0xff] %vm1265, %v1190
        %1277 = vst.msk [vmem:[#allocation4 + $0x58] sm:$0xff] %vm1265, %v1192
        %1278 = vst.msk [vmem:[#allocation4 + $0x60] sm:$0xff] %vm1265, %v1194
        %1279 = vst.msk [vmem:[#allocation4 + $0x68] sm:$0xff] %vm1265, %v1196
        %1280 = vst.msk [vmem:[#allocation4 + $0x70] sm:$0xff] %vm1265, %v1198
        %1281 = vst.msk [vmem:[#allocation4 + $0x78] sm:$0xff] %vm1265, %v1200
        %1282 = vst.msk [vmem:[#allocation4 + $0x80] sm:$0xff] %vm1265, %v1202
        %1283 = vst.msk [vmem:[#allocation4 + $0x88] sm:$0xff] %vm1265, %v1204
        %1284 = vst.msk [vmem:[#allocation4 + $0x90] sm:$0xff] %vm1265, %v1206
        %1285 = vst.msk [vmem:[#allocation4 + $0x98] sm:$0xff] %vm1265, %v1208
        %1286 = vst.msk [vmem:[#allocation4 + $0xa0] sm:$0xff] %vm1265, %v1210
        %1287 = vst.msk [vmem:[#allocation4 + $0xa8] sm:$0xff] %vm1265, %v1212
        %1288 = vst.msk [vmem:[#allocation4 + $0xb0] sm:$0xff] %vm1265, %v1214
        %1289 = vst.msk [vmem:[#allocation4 + $0xb8] sm:$0xff] %vm1265, %v1216
        %1290 = vst.msk [vmem:[#allocation4 + $0xc0] sm:$0xff] %vm1265, %v1218
        %1291 = vst.msk [vmem:[#allocation4 + $0xc8] sm:$0xff] %vm1265, %v1220
        %1292 = vst.msk [vmem:[#allocation4 + $0xd0] sm:$0xff] %vm1265, %v1222
        %1293 = vst.msk [vmem:[#allocation4 + $0xd8] sm:$0xff] %vm1265, %v1224
        %1294 = vst.msk [vmem:[#allocation4 + $0xe0] sm:$0xff] %vm1265, %v1226
        %1295 = vst.msk [vmem:[#allocation4 + $0xe8] sm:$0xff] %vm1265, %v1228
        %1296 = vst.msk [vmem:[#allocation4 + $0xf0] sm:$0xff] %vm1265, %v1230
        %1297 = vst.msk [vmem:[#allocation4 + $0xf8] sm:$0xff] %vm1265, %v1232
        %1300 = vrot.lane.b32.xlu0 %v350, 24
        %v1301 = vpop.permute.xlu0 %1300
        %1302 = vrot.lane.b32.xlu0 %v351, 24
        %v1303 = vpop.permute.xlu0 %1302
        %1304 = vrot.lane.b32.xlu0 %v353, 24
        %v1305 = vpop.permute.xlu0 %1304
        %1306 = vrot.lane.b32.xlu0 %v354, 24
        %v1307 = vpop.permute.xlu0 %1306
        %1308 = vrot.lane.b32.xlu0 %v356, 24
        %v1309 = vpop.permute.xlu0 %1308
        %1310 = vrot.lane.b32.xlu0 %v357, 24
        %v1311 = vpop.permute.xlu0 %1310
        %1312 = vrot.lane.b32.xlu0 %v359, 24
        %v1313 = vpop.permute.xlu0 %1312
        %1314 = vrot.lane.b32.xlu0 %v360, 24
        %v1315 = vpop.permute.xlu0 %1314
        %1316 = vrot.lane.b32.xlu0 %v362, 24
        %v1317 = vpop.permute.xlu0 %1316
        %1318 = vrot.lane.b32.xlu0 %v363, 24
        %v1319 = vpop.permute.xlu0 %1318
        %1320 = vrot.lane.b32.xlu0 %v365, 24
        %v1321 = vpop.permute.xlu0 %1320
        %1322 = vrot.lane.b32.xlu0 %v366, 24
        %v1323 = vpop.permute.xlu0 %1322
        %1324 = vrot.lane.b32.xlu0 %v368, 24
        %v1325 = vpop.permute.xlu0 %1324
        %1326 = vrot.lane.b32.xlu0 %v369, 24
        %v1327 = vpop.permute.xlu0 %1326
        %1328 = vrot.lane.b32.xlu0 %v371, 24
        %v1329 = vpop.permute.xlu0 %1328
        %1330 = vrot.lane.b32.xlu0 %v372, 24
        %v1331 = vpop.permute.xlu0 %1330
        %1332 = vrot.lane.b32.xlu0 %v374, 24
        %v1333 = vpop.permute.xlu0 %1332
        %1334 = vrot.lane.b32.xlu0 %v375, 24
        %v1335 = vpop.permute.xlu0 %1334
        %1336 = vrot.lane.b32.xlu0 %v377, 24
        %v1337 = vpop.permute.xlu0 %1336
        %1338 = vrot.lane.b32.xlu0 %v378, 24
        %v1339 = vpop.permute.xlu0 %1338
        %1340 = vrot.lane.b32.xlu0 %v380, 24
        %v1341 = vpop.permute.xlu0 %1340
        %1342 = vrot.lane.b32.xlu0 %v381, 24
        %v1343 = vpop.permute.xlu0 %1342
        %1344 = vrot.lane.b32.xlu0 %v383, 24
        %v1345 = vpop.permute.xlu0 %1344
        %1346 = vrot.lane.b32.xlu0 %v384, 24
        %v1347 = vpop.permute.xlu0 %1346
        %1348 = vrot.lane.b32.xlu0 %v386, 24
        %v1349 = vpop.permute.xlu0 %1348
        %1350 = vrot.lane.b32.xlu0 %v387, 24
        %v1351 = vpop.permute.xlu0 %1350
        %1352 = vrot.lane.b32.xlu0 %v389, 24
        %v1353 = vpop.permute.xlu0 %1352
        %1354 = vrot.lane.b32.xlu0 %v390, 24
        %v1355 = vpop.permute.xlu0 %1354
        %1356 = vrot.lane.b32.xlu0 %v392, 24
        %v1357 = vpop.permute.xlu0 %1356
        %1358 = vrot.lane.b32.xlu0 %v393, 24
        %v1359 = vpop.permute.xlu0 %1358
        %1360 = vrot.lane.b32.xlu0 %v395, 24
        %v1361 = vpop.permute.xlu0 %1360
        %1362 = vrot.lane.b32.xlu0 %v396, 24
        %v1363 = vpop.permute.xlu0 %1362
        %vm1396 = vcmask 228544
        %1397 = vst.msk [vmem:[#allocation4] sm:$0xff] %vm1396, %v1301
        %1398 = vst.msk [vmem:[#allocation4 + $0x8] sm:$0xff] %vm1396, %v1303
        %1399 = vst.msk [vmem:[#allocation4 + $0x10] sm:$0xff] %vm1396, %v1305
        %1400 = vst.msk [vmem:[#allocation4 + $0x18] sm:$0xff] %vm1396, %v1307
        %1401 = vst.msk [vmem:[#allocation4 + $0x20] sm:$0xff] %vm1396, %v1309
        %1402 = vst.msk [vmem:[#allocation4 + $0x28] sm:$0xff] %vm1396, %v1311
        %1403 = vst.msk [vmem:[#allocation4 + $0x30] sm:$0xff] %vm1396, %v1313
        %1404 = vst.msk [vmem:[#allocation4 + $0x38] sm:$0xff] %vm1396, %v1315
        %1405 = vst.msk [vmem:[#allocation4 + $0x40] sm:$0xff] %vm1396, %v1317
        %1406 = vst.msk [vmem:[#allocation4 + $0x48] sm:$0xff] %vm1396, %v1319
        %1407 = vst.msk [vmem:[#allocation4 + $0x50] sm:$0xff] %vm1396, %v1321
        %1408 = vst.msk [vmem:[#allocation4 + $0x58] sm:$0xff] %vm1396, %v1323
        %1409 = vst.msk [vmem:[#allocation4 + $0x60] sm:$0xff] %vm1396, %v1325
        %1410 = vst.msk [vmem:[#allocation4 + $0x68] sm:$0xff] %vm1396, %v1327
        %1411 = vst.msk [vmem:[#allocation4 + $0x70] sm:$0xff] %vm1396, %v1329
        %1412 = vst.msk [vmem:[#allocation4 + $0x78] sm:$0xff] %vm1396, %v1331
        %1413 = vst.msk [vmem:[#allocation4 + $0x80] sm:$0xff] %vm1396, %v1333
        %1414 = vst.msk [vmem:[#allocation4 + $0x88] sm:$0xff] %vm1396, %v1335
        %1415 = vst.msk [vmem:[#allocation4 + $0x90] sm:$0xff] %vm1396, %v1337
        %1416 = vst.msk [vmem:[#allocation4 + $0x98] sm:$0xff] %vm1396, %v1339
        %1417 = vst.msk [vmem:[#allocation4 + $0xa0] sm:$0xff] %vm1396, %v1341
        %1418 = vst.msk [vmem:[#allocation4 + $0xa8] sm:$0xff] %vm1396, %v1343
        %1419 = vst.msk [vmem:[#allocation4 + $0xb0] sm:$0xff] %vm1396, %v1345
        %1420 = vst.msk [vmem:[#allocation4 + $0xb8] sm:$0xff] %vm1396, %v1347
        %1421 = vst.msk [vmem:[#allocation4 + $0xc0] sm:$0xff] %vm1396, %v1349
        %1422 = vst.msk [vmem:[#allocation4 + $0xc8] sm:$0xff] %vm1396, %v1351
        %1423 = vst.msk [vmem:[#allocation4 + $0xd0] sm:$0xff] %vm1396, %v1353
        %1424 = vst.msk [vmem:[#allocation4 + $0xd8] sm:$0xff] %vm1396, %v1355
        %1425 = vst.msk [vmem:[#allocation4 + $0xe0] sm:$0xff] %vm1396, %v1357
        %1426 = vst.msk [vmem:[#allocation4 + $0xe8] sm:$0xff] %vm1396, %v1359
        %1427 = vst.msk [vmem:[#allocation4 + $0xf0] sm:$0xff] %vm1396, %v1361
        %1428 = vst.msk [vmem:[#allocation4 + $0xf8] sm:$0xff] %vm1396, %v1363
        %v1430 = vrot.slane %v395, 1
        %v1431 = vrot.slane %v396, 1
        %v1432 = vsel %vm478, %v1430, %v1431
        %v1433 = vrot.slane %v397, 1
        %v1434 = vsel %vm478, %v1431, %v1433
        %1435 = vrot.lane.b32.xlu0 %v491, 28
        %v1436 = vpop.permute.xlu0 %1435
        %1437 = vrot.lane.b32.xlu0 %v493, 28
        %v1438 = vpop.permute.xlu0 %1437
        %1439 = vrot.lane.b32.xlu0 %v496, 28
        %v1440 = vpop.permute.xlu0 %1439
        %1441 = vrot.lane.b32.xlu0 %v498, 28
        %v1442 = vpop.permute.xlu0 %1441
        %1443 = vrot.lane.b32.xlu0 %v501, 28
        %v1444 = vpop.permute.xlu0 %1443
        %1445 = vrot.lane.b32.xlu0 %v503, 28
        %v1446 = vpop.permute.xlu0 %1445
        %1447 = vrot.lane.b32.xlu0 %v506, 28
        %v1448 = vpop.permute.xlu0 %1447
        %1449 = vrot.lane.b32.xlu0 %v508, 28
        %v1450 = vpop.permute.xlu0 %1449
        %1451 = vrot.lane.b32.xlu0 %v511, 28
        %v1452 = vpop.permute.xlu0 %1451
        %1453 = vrot.lane.b32.xlu0 %v513, 28
        %v1454 = vpop.permute.xlu0 %1453
        %1455 = vrot.lane.b32.xlu0 %v516, 28
        %v1456 = vpop.permute.xlu0 %1455
        %1457 = vrot.lane.b32.xlu0 %v518, 28
        %v1458 = vpop.permute.xlu0 %1457
        %1459 = vrot.lane.b32.xlu0 %v521, 28
        %v1460 = vpop.permute.xlu0 %1459
        %1461 = vrot.lane.b32.xlu0 %v523, 28
        %v1462 = vpop.permute.xlu0 %1461
        %1463 = vrot.lane.b32.xlu0 %v526, 28
        %v1464 = vpop.permute.xlu0 %1463
        %1465 = vrot.lane.b32.xlu0 %v528, 28
        %v1466 = vpop.permute.xlu0 %1465
        %1467 = vrot.lane.b32.xlu0 %v531, 28
        %v1468 = vpop.permute.xlu0 %1467
        %1469 = vrot.lane.b32.xlu0 %v533, 28
        %v1470 = vpop.permute.xlu0 %1469
        %1471 = vrot.lane.b32.xlu0 %v536, 28
        %v1472 = vpop.permute.xlu0 %1471
        %1473 = vrot.lane.b32.xlu0 %v538, 28
        %v1474 = vpop.permute.xlu0 %1473
        %1475 = vrot.lane.b32.xlu0 %v541, 28
        %v1476 = vpop.permute.xlu0 %1475
        %1477 = vrot.lane.b32.xlu0 %v543, 28
        %v1478 = vpop.permute.xlu0 %1477
        %1479 = vrot.lane.b32.xlu0 %v546, 28
        %v1480 = vpop.permute.xlu0 %1479
        %1481 = vrot.lane.b32.xlu0 %v548, 28
        %v1482 = vpop.permute.xlu0 %1481
        %1483 = vrot.lane.b32.xlu0 %v551, 28
        %v1484 = vpop.permute.xlu0 %1483
        %1485 = vrot.lane.b32.xlu0 %v553, 28
        %v1486 = vpop.permute.xlu0 %1485
        %1487 = vrot.lane.b32.xlu0 %v556, 28
        %v1488 = vpop.permute.xlu0 %1487
        %1489 = vrot.lane.b32.xlu0 %v558, 28
        %v1490 = vpop.permute.xlu0 %1489
        %1491 = vrot.lane.b32.xlu0 %v1032, 28
        %v1492 = vpop.permute.xlu0 %1491
        %1493 = vrot.lane.b32.xlu0 %v1034, 28
        %v1494 = vpop.permute.xlu0 %1493
        %1495 = vrot.lane.b32.xlu0 %v1432, 28
        %v1496 = vpop.permute.xlu0 %1495
        %1497 = vrot.lane.b32.xlu0 %v1434, 28
        %v1498 = vpop.permute.xlu0 %1497
        %vm1531 = vcmask 261344
        %1532 = vst.msk [vmem:[#allocation4] sm:$0xff] %vm1531, %v1436
        %1533 = vst.msk [vmem:[#allocation4 + $0x8] sm:$0xff] %vm1531, %v1438
        %1534 = vst.msk [vmem:[#allocation4 + $0x10] sm:$0xff] %vm1531, %v1440
        %1535 = vst.msk [vmem:[#allocation4 + $0x18] sm:$0xff] %vm1531, %v1442
        %1536 = vst.msk [vmem:[#allocation4 + $0x20] sm:$0xff] %vm1531, %v1444
        %1537 = vst.msk [vmem:[#allocation4 + $0x28] sm:$0xff] %vm1531, %v1446
        %1538 = vst.msk [vmem:[#allocation4 + $0x30] sm:$0xff] %vm1531, %v1448
        %1539 = vst.msk [vmem:[#allocation4 + $0x38] sm:$0xff] %vm1531, %v1450
        %1540 = vst.msk [vmem:[#allocation4 + $0x40] sm:$0xff] %vm1531, %v1452
        %1541 = vst.msk [vmem:[#allocation4 + $0x48] sm:$0xff] %vm1531, %v1454
        %1542 = vst.msk [vmem:[#allocation4 + $0x50] sm:$0xff] %vm1531, %v1456
        %1543 = vst.msk [vmem:[#allocation4 + $0x58] sm:$0xff] %vm1531, %v1458
        %1544 = vst.msk [vmem:[#allocation4 + $0x60] sm:$0xff] %vm1531, %v1460
        %1545 = vst.msk [vmem:[#allocation4 + $0x68] sm:$0xff] %vm1531, %v1462
        %1546 = vst.msk [vmem:[#allocation4 + $0x70] sm:$0xff] %vm1531, %v1464
        %1547 = vst.msk [vmem:[#allocation4 + $0x78] sm:$0xff] %vm1531, %v1466
        %1548 = vst.msk [vmem:[#allocation4 + $0x80] sm:$0xff] %vm1531, %v1468
        %1549 = vst.msk [vmem:[#allocation4 + $0x88] sm:$0xff] %vm1531, %v1470
        %1550 = vst.msk [vmem:[#allocation4 + $0x90] sm:$0xff] %vm1531, %v1472
        %1551 = vst.msk [vmem:[#allocation4 + $0x98] sm:$0xff] %vm1531, %v1474
        %1552 = vst.msk [vmem:[#allocation4 + $0xa0] sm:$0xff] %vm1531, %v1476
        %1553 = vst.msk [vmem:[#allocation4 + $0xa8] sm:$0xff] %vm1531, %v1478
        %1554 = vst.msk [vmem:[#allocation4 + $0xb0] sm:$0xff] %vm1531, %v1480
        %1555 = vst.msk [vmem:[#allocation4 + $0xb8] sm:$0xff] %vm1531, %v1482
        %1556 = vst.msk [vmem:[#allocation4 + $0xc0] sm:$0xff] %vm1531, %v1484
        %1557 = vst.msk [vmem:[#allocation4 + $0xc8] sm:$0xff] %vm1531, %v1486
        %1558 = vst.msk [vmem:[#allocation4 + $0xd0] sm:$0xff] %vm1531, %v1488
        %1559 = vst.msk [vmem:[#allocation4 + $0xd8] sm:$0xff] %vm1531, %v1490
        %1560 = vst.msk [vmem:[#allocation4 + $0xe0] sm:$0xff] %vm1531, %v1492
        %1561 = vst.msk [vmem:[#allocation4 + $0xe8] sm:$0xff] %vm1531, %v1494
        %1562 = vst.msk [vmem:[#allocation4 + $0xf0] sm:$0xff] %vm1531, %v1496
        %1563 = vst.msk [vmem:[#allocation4 + $0xf8] sm:$0xff] %vm1531, %v1498
        %v1564 = vrot.slane %v395, 2
        %v1565 = vrot.slane %v396, 2
        %v1566 = vsel %vm688, %v1564, %v1565
        %v1567 = vrot.slane %v397, 2
        %v1568 = vsel %vm688, %v1565, %v1567
        %1569 = vrot.lane.b32.xlu0 %v701, 32
        %v1570 = vpop.permute.xlu0 %1569
        %1571 = vrot.lane.b32.xlu0 %v703, 32
        %v1572 = vpop.permute.xlu0 %1571
        %1573 = vrot.lane.b32.xlu0 %v706, 32
        %v1574 = vpop.permute.xlu0 %1573
        %1575 = vrot.lane.b32.xlu0 %v708, 32
        %v1576 = vpop.permute.xlu0 %1575
        %1577 = vrot.lane.b32.xlu0 %v711, 32
        %v1578 = vpop.permute.xlu0 %1577
        %1579 = vrot.lane.b32.xlu0 %v713, 32
        %v1580 = vpop.permute.xlu0 %1579
        %1581 = vrot.lane.b32.xlu0 %v716, 32
        %v1582 = vpop.permute.xlu0 %1581
        %1583 = vrot.lane.b32.xlu0 %v718, 32
        %v1584 = vpop.permute.xlu0 %1583
        %1585 = vrot.lane.b32.xlu0 %v721, 32
        %v1586 = vpop.permute.xlu0 %1585
        %1587 = vrot.lane.b32.xlu0 %v723, 32
        %v1588 = vpop.permute.xlu0 %1587
        %1589 = vrot.lane.b32.xlu0 %v726, 32
        %v1590 = vpop.permute.xlu0 %1589
        %1591 = vrot.lane.b32.xlu0 %v728, 32
        %v1592 = vpop.permute.xlu0 %1591
        %1593 = vrot.lane.b32.xlu0 %v731, 32
        %v1594 = vpop.permute.xlu0 %1593
        %1595 = vrot.lane.b32.xlu0 %v733, 32
        %v1596 = vpop.permute.xlu0 %1595
        %1597 = vrot.lane.b32.xlu0 %v736, 32
        %v1598 = vpop.permute.xlu0 %1597
        %1599 = vrot.lane.b32.xlu0 %v738, 32
        %v1600 = vpop.permute.xlu0 %1599
        %1601 = vrot.lane.b32.xlu0 %v741, 32
        %v1602 = vpop.permute.xlu0 %1601
        %1603 = vrot.lane.b32.xlu0 %v743, 32
        %v1604 = vpop.permute.xlu0 %1603
        %1605 = vrot.lane.b32.xlu0 %v746, 32
        %v1606 = vpop.permute.xlu0 %1605
        %1607 = vrot.lane.b32.xlu0 %v748, 32
        %v1608 = vpop.permute.xlu0 %1607
        %1609 = vrot.lane.b32.xlu0 %v751, 32
        %v1610 = vpop.permute.xlu0 %1609
        %1611 = vrot.lane.b32.xlu0 %v753, 32
        %v1612 = vpop.permute.xlu0 %1611
        %1613 = vrot.lane.b32.xlu0 %v756, 32
        %v1614 = vpop.permute.xlu0 %1613
        %1615 = vrot.lane.b32.xlu0 %v758, 32
        %v1616 = vpop.permute.xlu0 %1615
        %1617 = vrot.lane.b32.xlu0 %v761, 32
        %v1618 = vpop.permute.xlu0 %1617
        %1619 = vrot.lane.b32.xlu0 %v763, 32
        %v1620 = vpop.permute.xlu0 %1619
        %1621 = vrot.lane.b32.xlu0 %v766, 32
        %v1622 = vpop.permute.xlu0 %1621
        %1623 = vrot.lane.b32.xlu0 %v768, 32
        %v1624 = vpop.permute.xlu0 %1623
        %1625 = vrot.lane.b32.xlu0 %v1166, 32
        %v1626 = vpop.permute.xlu0 %1625
        %1627 = vrot.lane.b32.xlu0 %v1168, 32
        %v1628 = vpop.permute.xlu0 %1627
        %1629 = vrot.lane.b32.xlu0 %v1566, 32
        %v1630 = vpop.permute.xlu0 %1629
        %1631 = vrot.lane.b32.xlu0 %v1568, 32
        %v1632 = vpop.permute.xlu0 %1631
        %vm1665 = vcmask 294144
        %1666 = vst.msk [vmem:[#allocation4] sm:$0xff] %vm1665, %v1570
        %1667 = vst.msk [vmem:[#allocation4 + $0x8] sm:$0xff] %vm1665, %v1572
        %1668 = vst.msk [vmem:[#allocation4 + $0x10] sm:$0xff] %vm1665, %v1574
        %1669 = vst.msk [vmem:[#allocation4 + $0x18] sm:$0xff] %vm1665, %v1576
        %1670 = vst.msk [vmem:[#allocation4 + $0x20] sm:$0xff] %vm1665, %v1578
        %1671 = vst.msk [vmem:[#allocation4 + $0x28] sm:$0xff] %vm1665, %v1580
        %1672 = vst.msk [vmem:[#allocation4 + $0x30] sm:$0xff] %vm1665, %v1582
        %1673 = vst.msk [vmem:[#allocation4 + $0x38] sm:$0xff] %vm1665, %v1584
        %1674 = vst.msk [vmem:[#allocation4 + $0x40] sm:$0xff] %vm1665, %v1586
        %1675 = vst.msk [vmem:[#allocation4 + $0x48] sm:$0xff] %vm1665, %v1588
        %1676 = vst.msk [vmem:[#allocation4 + $0x50] sm:$0xff] %vm1665, %v1590
        %1677 = vst.msk [vmem:[#allocation4 + $0x58] sm:$0xff] %vm1665, %v1592
        %1678 = vst.msk [vmem:[#allocation4 + $0x60] sm:$0xff] %vm1665, %v1594
        %1679 = vst.msk [vmem:[#allocation4 + $0x68] sm:$0xff] %vm1665, %v1596
        %1680 = vst.msk [vmem:[#allocation4 + $0x70] sm:$0xff] %vm1665, %v1598
        %1681 = vst.msk [vmem:[#allocation4 + $0x78] sm:$0xff] %vm1665, %v1600
        %1682 = vst.msk [vmem:[#allocation4 + $0x80] sm:$0xff] %vm1665, %v1602
        %1683 = vst.msk [vmem:[#allocation4 + $0x88] sm:$0xff] %vm1665, %v1604
        %1684 = vst.msk [vmem:[#allocation4 + $0x90] sm:$0xff] %vm1665, %v1606
        %1685 = vst.msk [vmem:[#allocation4 + $0x98] sm:$0xff] %vm1665, %v1608
        %1686 = vst.msk [vmem:[#allocation4 + $0xa0] sm:$0xff] %vm1665, %v1610
        %1687 = vst.msk [vmem:[#allocation4 + $0xa8] sm:$0xff] %vm1665, %v1612
        %1688 = vst.msk [vmem:[#allocation4 + $0xb0] sm:$0xff] %vm1665, %v1614
        %1689 = vst.msk [vmem:[#allocation4 + $0xb8] sm:$0xff] %vm1665, %v1616
        %1690 = vst.msk [vmem:[#allocation4 + $0xc0] sm:$0xff] %vm1665, %v1618
        %1691 = vst.msk [vmem:[#allocation4 + $0xc8] sm:$0xff] %vm1665, %v1620
        %1692 = vst.msk [vmem:[#allocation4 + $0xd0] sm:$0xff] %vm1665, %v1622
        %1693 = vst.msk [vmem:[#allocation4 + $0xd8] sm:$0xff] %vm1665, %v1624
        %1694 = vst.msk [vmem:[#allocation4 + $0xe0] sm:$0xff] %vm1665, %v1626
        %1695 = vst.msk [vmem:[#allocation4 + $0xe8] sm:$0xff] %vm1665, %v1628
        %1696 = vst.msk [vmem:[#allocation4 + $0xf0] sm:$0xff] %vm1665, %v1630
        %1697 = vst.msk [vmem:[#allocation4 + $0xf8] sm:$0xff] %vm1665, %v1632
        %v1698 = vld [vmem:[#allocation4] sm:$0xff]
        %v1699 = vld [vmem:[#allocation4 + $0x8] sm:$0xff]
        %v1700 = vld [vmem:[#allocation4 + $0x10] sm:$0xff]
        %v1701 = vld [vmem:[#allocation4 + $0x18] sm:$0xff]
        %v1702 = vld [vmem:[#allocation4 + $0x20] sm:$0xff]
        %v1703 = vld [vmem:[#allocation4 + $0x28] sm:$0xff]
        %v1704 = vld [vmem:[#allocation4 + $0x30] sm:$0xff]
        %v1705 = vld [vmem:[#allocation4 + $0x38] sm:$0xff]
        %v1706 = vld [vmem:[#allocation4 + $0x40] sm:$0xff]
        %v1707 = vld [vmem:[#allocation4 + $0x48] sm:$0xff]
        %v1708 = vld [vmem:[#allocation4 + $0x50] sm:$0xff]
        %v1709 = vld [vmem:[#allocation4 + $0x58] sm:$0xff]
        %v1710 = vld [vmem:[#allocation4 + $0x60] sm:$0xff]
        %v1711 = vld [vmem:[#allocation4 + $0x68] sm:$0xff]
        %v1712 = vld [vmem:[#allocation4 + $0x70] sm:$0xff]
        %v1713 = vld [vmem:[#allocation4 + $0x78] sm:$0xff]
        %v1714 = vld [vmem:[#allocation4 + $0x80] sm:$0xff]
        %v1715 = vld [vmem:[#allocation4 + $0x88] sm:$0xff]
        %v1716 = vld [vmem:[#allocation4 + $0x90] sm:$0xff]
        %v1717 = vld [vmem:[#allocation4 + $0x98] sm:$0xff]
        %v1718 = vld [vmem:[#allocation4 + $0xa0] sm:$0xff]
        %v1719 = vld [vmem:[#allocation4 + $0xa8] sm:$0xff]
        %v1720 = vld [vmem:[#allocation4 + $0xb0] sm:$0xff]
        %v1721 = vld [vmem:[#allocation4 + $0xb8] sm:$0xff]
        %v1722 = vld [vmem:[#allocation4 + $0xc0] sm:$0xff]
        %v1723 = vld [vmem:[#allocation4 + $0xc8] sm:$0xff]
        %v1724 = vld [vmem:[#allocation4 + $0xd0] sm:$0xff]
        %v1725 = vld [vmem:[#allocation4 + $0xd8] sm:$0xff]
        %v1726 = vld [vmem:[#allocation4 + $0xe0] sm:$0xff]
        %v1727 = vld [vmem:[#allocation4 + $0xe8] sm:$0xff]
        %v1728 = vld [vmem:[#allocation4 + $0xf0] sm:$0xff]
        %v1729 = vld [vmem:[#allocation4 + $0xf8] sm:$0xff]
        %v1730 = vld [vmem:[%s1] sm:$0xff]
        %v1731 = vld [vmem:[%s1 + $0x8] sm:$0xff]
        %v1732 = vld [vmem:[%s1 + $0x10] sm:$0xff]
        %v1733 = vld [vmem:[%s1 + $0x18] sm:$0xff]
        %v1734 = vld [vmem:[%s1 + $0x20] sm:$0xf]
        %v1735 = vld [vmem:[%s2] sm:$0x1]
        %v1737 = vperm.slane %v1735, 0
        %vm1739 = vcmask 293888
        %v1741 = vsel %vm1739, %v1698, 0
        %v1744 = vsel %vm1739, %v1699, 0
        %v1747 = vsel %vm1739, %v1700, 0
        %v1750 = vsel %vm1739, %v1701, 0
        %v1753 = vsel %vm1739, %v1702, 0
        %v1756 = vsel %vm1739, %v1703, 0
        %v1759 = vsel %vm1739, %v1704, 0
        %v1762 = vsel %vm1739, %v1705, 0
        %v1765 = vsel %vm1739, %v1706, 0
        %v1768 = vsel %vm1739, %v1707, 0
        %v1771 = vsel %vm1739, %v1708, 0
        %v1774 = vsel %vm1739, %v1709, 0
        %v1777 = vsel %vm1739, %v1710, 0
        %v1780 = vsel %vm1739, %v1711, 0
        %v1783 = vsel %vm1739, %v1712, 0
        %v1786 = vsel %vm1739, %v1713, 0
        %v1789 = vsel %vm1739, %v1714, 0
        %v1792 = vsel %vm1739, %v1715, 0
        %v1795 = vsel %vm1739, %v1716, 0
        %v1798 = vsel %vm1739, %v1717, 0
        %v1801 = vsel %vm1739, %v1718, 0
        %v1804 = vsel %vm1739, %v1719, 0
        %v1807 = vsel %vm1739, %v1720, 0
        %v1810 = vsel %vm1739, %v1721, 0
        %v1813 = vsel %vm1739, %v1722, 0
        %v1816 = vsel %vm1739, %v1723, 0
        %v1819 = vsel %vm1739, %v1724, 0
        %v1822 = vsel %vm1739, %v1725, 0
        %v1825 = vsel %vm1739, %v1726, 0
        %v1828 = vsel %vm1739, %v1727, 0
        %v1831 = vsel %vm1739, %v1728, 0
        %v1834 = vsel %vm1739, %v1729, 0
        %vm1836 = vcmask 1043456
        %v1838 = vsel %vm1836, %v1734, 0
        %1840 = vmatpush.msra.mxu0 0.0
        %1841 = vmatpush.msra.mxu0 0.0
        %1842 = vmatpush.msra.mxu0 0.0
        %1843 = vmatpush.msra.mxu0 0.0
        %1844 = vmatpush.msra.mxu0 0.0
        %1845 = vmatpush.msra.mxu0 0.0
        %1846 = vmatpush.msra.mxu0 0.0
        %1847 = vmatpush.msra.mxu0 0.0
        %1848 = vmatpush.msra.mxu0 0.0
        %1849 = vmatpush.msra.mxu0 0.0
        %1850 = vmatpush.msra.mxu0 0.0
        %1851 = vmatpush.msra.mxu0 %v1838
        %1852 = vmatpush.msra.mxu0 %v1733
        %1853 = vmatpush.msra.mxu0 %v1732
        %1854 = vmatpush.msra.mxu0 %v1731
        %1855 = vmatpush.msra.mxu0 %v1730
        %1856 = vmatmul.f32.gmra.mxu0 %v1741
        %v1857 = vpop.f32.mrf.mxu0
        %v1858 = vadd.f32 %v1737, %v1857
        %1859 = vmatmul.f32.gmra.mxu0 %v1744
        %v1860 = vpop.f32.mrf.mxu0
        %v1861 = vadd.f32 %v1737, %v1860
        %1862 = vmatmul.f32.gmra.mxu0 %v1747
        %v1863 = vpop.f32.mrf.mxu0
        %v1864 = vadd.f32 %v1737, %v1863
        %1865 = vmatmul.f32.gmra.mxu0 %v1750
        %v1866 = vpop.f32.mrf.mxu0
        %v1867 = vadd.f32 %v1737, %v1866
        %1868 = vmatmul.f32.gmra.mxu0 %v1753
        %v1869 = vpop.f32.mrf.mxu0
        %v1870 = vadd.f32 %v1737, %v1869
        %1871 = vmatmul.f32.gmra.mxu0 %v1756
        %v1872 = vpop.f32.mrf.mxu0
        %v1873 = vadd.f32 %v1737, %v1872
        %1874 = vmatmul.f32.gmra.mxu0 %v1759
        %v1875 = vpop.f32.mrf.mxu0
        %v1876 = vadd.f32 %v1737, %v1875
        %1877 = vmatmul.f32.gmra.mxu0 %v1762
        %v1878 = vpop.f32.mrf.mxu0
        %v1879 = vadd.f32 %v1737, %v1878
        %1880 = vmatmul.f32.gmra.mxu0 %v1765
        %v1881 = vpop.f32.mrf.mxu0
        %v1882 = vadd.f32 %v1737, %v1881
        %1883 = vmatmul.f32.gmra.mxu0 %v1768
        %v1884 = vpop.f32.mrf.mxu0
        %v1885 = vadd.f32 %v1737, %v1884
        %1886 = vmatmul.f32.gmra.mxu0 %v1771
        %v1887 = vpop.f32.mrf.mxu0
        %v1888 = vadd.f32 %v1737, %v1887
        %1889 = vmatmul.f32.gmra.mxu0 %v1774
        %v1890 = vpop.f32.mrf.mxu0
        %v1891 = vadd.f32 %v1737, %v1890
        %1892 = vmatmul.f32.gmra.mxu0 %v1777
        %v1893 = vpop.f32.mrf.mxu0
        %v1894 = vadd.f32 %v1737, %v1893
        %1895 = vmatmul.f32.gmra.mxu0 %v1780
        %v1896 = vpop.f32.mrf.mxu0
        %v1897 = vadd.f32 %v1737, %v1896
        %1898 = vmatmul.f32.gmra.mxu0 %v1783
        %v1899 = vpop.f32.mrf.mxu0
        %v1900 = vadd.f32 %v1737, %v1899
        %1901 = vmatmul.f32.gmra.mxu0 %v1786
        %v1902 = vpop.f32.mrf.mxu0
        %v1903 = vadd.f32 %v1737, %v1902
        %1904 = vmatmul.f32.gmra.mxu0 %v1789
        %v1905 = vpop.f32.mrf.mxu0
        %v1906 = vadd.f32 %v1737, %v1905
        %1907 = vmatmul.f32.gmra.mxu0 %v1792
        %v1908 = vpop.f32.mrf.mxu0
        %v1909 = vadd.f32 %v1737, %v1908
        %1910 = vmatmul.f32.gmra.mxu0 %v1795
        %v1911 = vpop.f32.mrf.mxu0
        %v1912 = vadd.f32 %v1737, %v1911
        %1913 = vmatmul.f32.gmra.mxu0 %v1798
        %v1914 = vpop.f32.mrf.mxu0
        %v1915 = vadd.f32 %v1737, %v1914
        %1916 = vmatmul.f32.gmra.mxu0 %v1801
        %v1917 = vpop.f32.mrf.mxu0
        %v1918 = vadd.f32 %v1737, %v1917
        %1919 = vmatmul.f32.gmra.mxu0 %v1804
        %v1920 = vpop.f32.mrf.mxu0
        %v1921 = vadd.f32 %v1737, %v1920
        %1922 = vmatmul.f32.gmra.mxu0 %v1807
        %v1923 = vpop.f32.mrf.mxu0
        %v1924 = vadd.f32 %v1737, %v1923
        %1925 = vmatmul.f32.gmra.mxu0 %v1810
        %v1926 = vpop.f32.mrf.mxu0
        %v1927 = vadd.f32 %v1737, %v1926
        %1928 = vmatmul.f32.gmra.mxu0 %v1813
        %v1929 = vpop.f32.mrf.mxu0
        %v1930 = vadd.f32 %v1737, %v1929
        %1931 = vmatmul.f32.gmra.mxu0 %v1816
        %v1932 = vpop.f32.mrf.mxu0
        %v1933 = vadd.f32 %v1737, %v1932
        %1934 = vmatmul.f32.gmra.mxu0 %v1819
        %v1935 = vpop.f32.mrf.mxu0
        %v1936 = vadd.f32 %v1737, %v1935
        %1937 = vmatmul.f32.gmra.mxu0 %v1822
        %v1938 = vpop.f32.mrf.mxu0
        %v1939 = vadd.f32 %v1737, %v1938
        %1940 = vmatmul.f32.gmra.mxu0 %v1825
        %v1941 = vpop.f32.mrf.mxu0
        %v1942 = vadd.f32 %v1737, %v1941
        %1943 = vmatmul.f32.gmra.mxu0 %v1828
        %v1944 = vpop.f32.mrf.mxu0
        %v1945 = vadd.f32 %v1737, %v1944
        %1946 = vmatmul.f32.gmra.mxu0 %v1831
        %v1947 = vpop.f32.mrf.mxu0
        %v1948 = vadd.f32 %v1737, %v1947
        %1949 = vmatmul.f32.gmra.mxu0 %v1834
        %v1950 = vpop.f32.mrf.mxu0
        %v1951 = vadd.f32 %v1737, %v1950
        %1952 = vdwg.mxu0
        %v1953 = vmax.f32 %v1858, 0.0
        %v1954 = vmax.f32 %v1861, 0.0
        %v1955 = vmax.f32 %v1864, 0.0
        %v1956 = vmax.f32 %v1867, 0.0
        %v1957 = vmax.f32 %v1870, 0.0
        %v1958 = vmax.f32 %v1873, 0.0
        %v1959 = vmax.f32 %v1876, 0.0
        %v1960 = vmax.f32 %v1879, 0.0
        %v1961 = vmax.f32 %v1882, 0.0
        %v1962 = vmax.f32 %v1885, 0.0
        %v1963 = vmax.f32 %v1888, 0.0
        %v1964 = vmax.f32 %v1891, 0.0
        %v1965 = vmax.f32 %v1894, 0.0
        %v1966 = vmax.f32 %v1897, 0.0
        %v1967 = vmax.f32 %v1900, 0.0
        %v1968 = vmax.f32 %v1903, 0.0
        %v1969 = vmax.f32 %v1906, 0.0
        %v1970 = vmax.f32 %v1909, 0.0
        %v1971 = vmax.f32 %v1912, 0.0
        %v1972 = vmax.f32 %v1915, 0.0
        %v1973 = vmax.f32 %v1918, 0.0
        %v1974 = vmax.f32 %v1921, 0.0
        %v1975 = vmax.f32 %v1924, 0.0
        %v1976 = vmax.f32 %v1927, 0.0
        %v1977 = vmax.f32 %v1930, 0.0
        %v1978 = vmax.f32 %v1933, 0.0
        %v1979 = vmax.f32 %v1936, 0.0
        %v1980 = vmax.f32 %v1939, 0.0
        %v1981 = vmax.f32 %v1942, 0.0
        %v1982 = vmax.f32 %v1945, 0.0
        %v1983 = vmax.f32 %v1948, 0.0
        %v1984 = vmax.f32 %v1951, 0.0
        %vm1985 = vcmask 64512
        %1986 = vst.msk [vmem:[#allocation3] sm:$0xff] %vm1985, 0.0
        %1987 = vst.msk [vmem:[#allocation3 + $0x8] sm:$0xff] %vm1985, 0.0
        %vm1988 = vcmask 58368
        %1989 = vst.msk [vmem:[#allocation3 + $0x10] sm:$0x3] %vm1988, 0.0
        %1990 = vst.msk [vmem:[#allocation3 + $0x18] sm:$0xff] %vm1985, 0.0
        %1991 = vst.msk [vmem:[#allocation3 + $0x20] sm:$0xff] %vm1985, 0.0
        %1992 = vst.msk [vmem:[#allocation3 + $0x28] sm:$0x3] %vm1988, 0.0
        %1993 = vst.msk [vmem:[#allocation3 + $0x30] sm:$0xff] %vm1985, 0.0
        %1994 = vst.msk [vmem:[#allocation3 + $0x38] sm:$0xff] %vm1985, 0.0
        %1995 = vst.msk [vmem:[#allocation3 + $0x40] sm:$0x3] %vm1988, 0.0
        %1996 = vst.msk [vmem:[#allocation3 + $0x48] sm:$0xff] %vm1985, 0.0
        %1997 = vst.msk [vmem:[#allocation3 + $0x50] sm:$0xff] %vm1985, 0.0
        %1998 = vst.msk [vmem:[#allocation3 + $0x58] sm:$0x3] %vm1988, 0.0
        %1999 = vst.msk [vmem:[#allocation3 + $0x60] sm:$0xff] %vm1985, 0.0
        %2000 = vst.msk [vmem:[#allocation3 + $0x68] sm:$0xff] %vm1985, 0.0
        %2001 = vst.msk [vmem:[#allocation3 + $0x70] sm:$0x3] %vm1988, 0.0
        %2002 = vst.msk [vmem:[#allocation3 + $0x78] sm:$0xff] %vm1985, 0.0
        %2003 = vst.msk [vmem:[#allocation3 + $0x80] sm:$0xff] %vm1985, 0.0
        %2004 = vst.msk [vmem:[#allocation3 + $0x88] sm:$0x3] %vm1988, 0.0
        %2005 = vst.msk [vmem:[#allocation3 + $0x90] sm:$0xff] %vm1985, 0.0
        %2006 = vst.msk [vmem:[#allocation3 + $0x98] sm:$0xff] %vm1985, 0.0
        %2007 = vst.msk [vmem:[#allocation3 + $0xa0] sm:$0x3] %vm1988, 0.0
        %2008 = vst.msk [vmem:[#allocation3 + $0xa8] sm:$0xff] %vm1985, 0.0
        %2009 = vst.msk [vmem:[#allocation3 + $0xb0] sm:$0xff] %vm1985, 0.0
        %2010 = vst.msk [vmem:[#allocation3 + $0xb8] sm:$0x3] %vm1988, 0.0
        %2011 = vst.msk [vmem:[#allocation3 + $0xc0] sm:$0xff] %vm1985, 0.0
        %2012 = vst.msk [vmem:[#allocation3 + $0xc8] sm:$0xff] %vm1985, 0.0
        %2013 = vst.msk [vmem:[#allocation3 + $0xd0] sm:$0x3] %vm1988, 0.0
        %2014 = vst.msk [vmem:[#allocation3 + $0xd8] sm:$0xff] %vm1985, 0.0
        %2015 = vst.msk [vmem:[#allocation3 + $0xe0] sm:$0xff] %vm1985, 0.0
        %2016 = vst.msk [vmem:[#allocation3 + $0xe8] sm:$0x3] %vm1988, 0.0
        %2017 = vst.msk [vmem:[#allocation3 + $0xf0] sm:$0xff] %vm1985, 0.0
        %2018 = vst.msk [vmem:[#allocation3 + $0xf8] sm:$0xff] %vm1985, 0.0
        %2019 = vst.msk [vmem:[#allocation3 + $0x100] sm:$0x3] %vm1988, 0.0
        %2020 = vst.msk [vmem:[#allocation3 + $0x108] sm:$0xff] %vm1985, 0.0
        %2021 = vst.msk [vmem:[#allocation3 + $0x110] sm:$0xff] %vm1985, 0.0
        %2022 = vst.msk [vmem:[#allocation3 + $0x118] sm:$0x3] %vm1988, 0.0
        %2023 = vst.msk [vmem:[#allocation3 + $0x120] sm:$0xff] %vm1985, 0.0
        %2024 = vst.msk [vmem:[#allocation3 + $0x128] sm:$0xff] %vm1985, 0.0
        %2025 = vst.msk [vmem:[#allocation3 + $0x130] sm:$0x3] %vm1988, 0.0
        %2026 = vst.msk [vmem:[#allocation3 + $0x138] sm:$0xff] %vm1985, 0.0
        %2027 = vst.msk [vmem:[#allocation3 + $0x140] sm:$0xff] %vm1985, 0.0
        %2028 = vst.msk [vmem:[#allocation3 + $0x148] sm:$0x3] %vm1988, 0.0
        %2029 = vst.msk [vmem:[#allocation3 + $0x150] sm:$0xff] %vm1985, 0.0
        %2030 = vst.msk [vmem:[#allocation3 + $0x158] sm:$0xff] %vm1985, 0.0
        %2031 = vst.msk [vmem:[#allocation3 + $0x160] sm:$0x3] %vm1988, 0.0
        %2032 = vst.msk [vmem:[#allocation3 + $0x168] sm:$0xff] %vm1985, 0.0
        %2033 = vst.msk [vmem:[#allocation3 + $0x170] sm:$0xff] %vm1985, 0.0
        %2034 = vst.msk [vmem:[#allocation3 + $0x178] sm:$0x3] %vm1988, 0.0
        %2035 = vst.msk [vmem:[#allocation3 + $0x180] sm:$0xff] %vm1985, 0.0
        %2036 = vst.msk [vmem:[#allocation3 + $0x188] sm:$0xff] %vm1985, 0.0
        %2037 = vst.msk [vmem:[#allocation3 + $0x190] sm:$0x3] %vm1988, 0.0
        %2038 = vst.msk [vmem:[#allocation3 + $0x198] sm:$0xff] %vm1985, 0.0
        %2039 = vst.msk [vmem:[#allocation3 + $0x1a0] sm:$0xff] %vm1985, 0.0
        %2040 = vst.msk [vmem:[#allocation3 + $0x1a8] sm:$0x3] %vm1988, 0.0
        %s2041 = scalar_lea.vmem [#allocation3], 24
        %2042 = vst.msk [vmem:[%s2041 + $0x1] sm:$0xff] %vm1985, %v1953
        %2043 = vst.msk [vmem:[%s2041 + $0x9] sm:$0xff] %vm1985, %v1954
        %2044 = vst.msk [vmem:[%s2041 + $0x19] sm:$0xff] %vm1985, %v1955
        %2045 = vst.msk [vmem:[%s2041 + $0x21] sm:$0xff] %vm1985, %v1956
        %2046 = vst.msk [vmem:[%s2041 + $0x31] sm:$0xff] %vm1985, %v1957
        %2047 = vst.msk [vmem:[%s2041 + $0x39] sm:$0xff] %vm1985, %v1958
        %2048 = vst.msk [vmem:[%s2041 + $0x49] sm:$0xff] %vm1985, %v1959
        %2049 = vst.msk [vmem:[%s2041 + $0x51] sm:$0xff] %vm1985, %v1960
        %2050 = vst.msk [vmem:[%s2041 + $0x61] sm:$0xff] %vm1985, %v1961
        %2051 = vst.msk [vmem:[%s2041 + $0x69] sm:$0xff] %vm1985, %v1962
        %2052 = vst.msk [vmem:[%s2041 + $0x79] sm:$0xff] %vm1985, %v1963
        %2053 = vst.msk [vmem:[%s2041 + $0x81] sm:$0xff] %vm1985, %v1964
        %2054 = vst.msk [vmem:[%s2041 + $0x91] sm:$0xff] %vm1985, %v1965
        %2055 = vst.msk [vmem:[%s2041 + $0x99] sm:$0xff] %vm1985, %v1966
        %2056 = vst.msk [vmem:[%s2041 + $0xa9] sm:$0xff] %vm1985, %v1967
        %2057 = vst.msk [vmem:[%s2041 + $0xb1] sm:$0xff] %vm1985, %v1968
        %2058 = vst.msk [vmem:[%s2041 + $0xc1] sm:$0xff] %vm1985, %v1969
        %2059 = vst.msk [vmem:[%s2041 + $0xc9] sm:$0xff] %vm1985, %v1970
        %2060 = vst.msk [vmem:[%s2041 + $0xd9] sm:$0xff] %vm1985, %v1971
        %2061 = vst.msk [vmem:[%s2041 + $0xe1] sm:$0xff] %vm1985, %v1972
        %2062 = vst.msk [vmem:[%s2041 + $0xf1] sm:$0xff] %vm1985, %v1973
        %2063 = vst.msk [vmem:[%s2041 + $0xf9] sm:$0xff] %vm1985, %v1974
        %2064 = vst.msk [vmem:[%s2041 + $0x109] sm:$0xff] %vm1985, %v1975
        %2065 = vst.msk [vmem:[%s2041 + $0x111] sm:$0xff] %vm1985, %v1976
        %2066 = vst.msk [vmem:[%s2041 + $0x121] sm:$0xff] %vm1985, %v1977
        %2067 = vst.msk [vmem:[%s2041 + $0x129] sm:$0xff] %vm1985, %v1978
        %2068 = vst.msk [vmem:[%s2041 + $0x139] sm:$0xff] %vm1985, %v1979
        %2069 = vst.msk [vmem:[%s2041 + $0x141] sm:$0xff] %vm1985, %v1980
        %2070 = vst.msk [vmem:[%s2041 + $0x151] sm:$0xff] %vm1985, %v1981
        %2071 = vst.msk [vmem:[%s2041 + $0x159] sm:$0xff] %vm1985, %v1982
        %2072 = vst.msk [vmem:[%s2041 + $0x169] sm:$0xff] %vm1985, %v1983
        %2073 = vst.msk [vmem:[%s2041 + $0x171] sm:$0xff] %vm1985, %v1984
        %v2074 = vld [vmem:[#allocation3] sm:$0xff]
        %v2075 = vld [vmem:[#allocation3 + $0x8] sm:$0xff]
        %v2076 = vld [vmem:[#allocation3 + $0x10] sm:$0x3]
        %v2077 = vld [vmem:[#allocation3 + $0x18] sm:$0xff]
        %v2078 = vld [vmem:[#allocation3 + $0x20] sm:$0xff]
        %v2079 = vld [vmem:[#allocation3 + $0x28] sm:$0x3]
        %v2080 = vld [vmem:[#allocation3 + $0x30] sm:$0xff]
        %v2081 = vld [vmem:[#allocation3 + $0x38] sm:$0xff]
        %v2082 = vld [vmem:[#allocation3 + $0x40] sm:$0x3]
        %v2083 = vld [vmem:[#allocation3 + $0x48] sm:$0xff]
        %v2084 = vld [vmem:[#allocation3 + $0x50] sm:$0xff]
        %v2085 = vld [vmem:[#allocation3 + $0x58] sm:$0x3]
        %v2086 = vld [vmem:[#allocation3 + $0x60] sm:$0xff]
        %v2087 = vld [vmem:[#allocation3 + $0x68] sm:$0xff]
        %v2088 = vld [vmem:[#allocation3 + $0x70] sm:$0x3]
        %v2089 = vld [vmem:[#allocation3 + $0x78] sm:$0xff]
        %v2090 = vld [vmem:[#allocation3 + $0x80] sm:$0xff]
        %v2091 = vld [vmem:[#allocation3 + $0x88] sm:$0x3]
        %v2092 = vld [vmem:[#allocation3 + $0x90] sm:$0xff]
        %v2093 = vld [vmem:[#allocation3 + $0x98] sm:$0xff]
        %v2094 = vld [vmem:[#allocation3 + $0xa0] sm:$0x3]
        %v2095 = vld [vmem:[#allocation3 + $0xa8] sm:$0xff]
        %v2096 = vld [vmem:[#allocation3 + $0xb0] sm:$0xff]
        %v2097 = vld [vmem:[#allocation3 + $0xb8] sm:$0x3]
        %v2098 = vld [vmem:[#allocation3 + $0xc0] sm:$0xff]
        %v2099 = vld [vmem:[#allocation3 + $0xc8] sm:$0xff]
        %v2100 = vld [vmem:[#allocation3 + $0xd0] sm:$0x3]
        %v2101 = vld [vmem:[#allocation3 + $0xd8] sm:$0xff]
        %v2102 = vld [vmem:[#allocation3 + $0xe0] sm:$0xff]
        %v2103 = vld [vmem:[#allocation3 + $0xe8] sm:$0x3]
        %v2104 = vld [vmem:[#allocation3 + $0xf0] sm:$0xff]
        %v2105 = vld [vmem:[#allocation3 + $0xf8] sm:$0xff]
        %v2106 = vld [vmem:[#allocation3 + $0x100] sm:$0x3]
        %v2107 = vld [vmem:[#allocation3 + $0x108] sm:$0xff]
        %v2108 = vld [vmem:[#allocation3 + $0x110] sm:$0xff]
        %v2109 = vld [vmem:[#allocation3 + $0x118] sm:$0x3]
        %v2110 = vld [vmem:[#allocation3 + $0x120] sm:$0xff]
        %v2111 = vld [vmem:[#allocation3 + $0x128] sm:$0xff]
        %v2112 = vld [vmem:[#allocation3 + $0x130] sm:$0x3]
        %v2113 = vld [vmem:[#allocation3 + $0x138] sm:$0xff]
        %v2114 = vld [vmem:[#allocation3 + $0x140] sm:$0xff]
        %v2115 = vld [vmem:[#allocation3 + $0x148] sm:$0x3]
        %v2116 = vld [vmem:[#allocation3 + $0x150] sm:$0xff]
        %v2117 = vld [vmem:[#allocation3 + $0x158] sm:$0xff]
        %v2118 = vld [vmem:[#allocation3 + $0x160] sm:$0x3]
        %v2119 = vld [vmem:[#allocation3 + $0x168] sm:$0xff]
        %v2120 = vld [vmem:[#allocation3 + $0x170] sm:$0xff]
        %v2121 = vld [vmem:[#allocation3 + $0x178] sm:$0x3]
        %v2122 = vld [vmem:[#allocation3 + $0x180] sm:$0xff]
        %v2123 = vld [vmem:[#allocation3 + $0x188] sm:$0xff]
        %v2124 = vld [vmem:[#allocation3 + $0x190] sm:$0x3]
        %v2125 = vld [vmem:[#allocation3 + $0x198] sm:$0xff]
        %v2126 = vld [vmem:[#allocation3 + $0x1a0] sm:$0xff]
        %v2127 = vld [vmem:[#allocation3 + $0x1a8] sm:$0x3]
        %2128 = vst.msk [vmem:[#allocation5] sm:$0xff] %vm1985, %v2074
        %2129 = vst.msk [vmem:[#allocation5 + $0x8] sm:$0xff] %vm1985, %v2075
        %2130 = vst.msk [vmem:[#allocation5 + $0x10] sm:$0xff] %vm1985, %v2077
        %2131 = vst.msk [vmem:[#allocation5 + $0x18] sm:$0xff] %vm1985, %v2078
        %2132 = vst.msk [vmem:[#allocation5 + $0x20] sm:$0xff] %vm1985, %v2080
        %2133 = vst.msk [vmem:[#allocation5 + $0x28] sm:$0xff] %vm1985, %v2081
        %2134 = vst.msk [vmem:[#allocation5 + $0x30] sm:$0xff] %vm1985, %v2083
        %2135 = vst.msk [vmem:[#allocation5 + $0x38] sm:$0xff] %vm1985, %v2084
        %2136 = vst.msk [vmem:[#allocation5 + $0x40] sm:$0xff] %vm1985, %v2086
        %2137 = vst.msk [vmem:[#allocation5 + $0x48] sm:$0xff] %vm1985, %v2087
        %2138 = vst.msk [vmem:[#allocation5 + $0x50] sm:$0xff] %vm1985, %v2089
        %2139 = vst.msk [vmem:[#allocation5 + $0x58] sm:$0xff] %vm1985, %v2090
        %2140 = vst.msk [vmem:[#allocation5 + $0x60] sm:$0xff] %vm1985, %v2092
        %2141 = vst.msk [vmem:[#allocation5 + $0x68] sm:$0xff] %vm1985, %v2093
        %2142 = vst.msk [vmem:[#allocation5 + $0x70] sm:$0xff] %vm1985, %v2095
        %2143 = vst.msk [vmem:[#allocation5 + $0x78] sm:$0xff] %vm1985, %v2096
        %2144 = vst.msk [vmem:[#allocation5 + $0x80] sm:$0xff] %vm1985, %v2098
        %2145 = vst.msk [vmem:[#allocation5 + $0x88] sm:$0xff] %vm1985, %v2099
        %2146 = vst.msk [vmem:[#allocation5 + $0x90] sm:$0xff] %vm1985, %v2101
        %2147 = vst.msk [vmem:[#allocation5 + $0x98] sm:$0xff] %vm1985, %v2102
        %2148 = vst.msk [vmem:[#allocation5 + $0xa0] sm:$0xff] %vm1985, %v2104
        %2149 = vst.msk [vmem:[#allocation5 + $0xa8] sm:$0xff] %vm1985, %v2105
        %2150 = vst.msk [vmem:[#allocation5 + $0xb0] sm:$0xff] %vm1985, %v2107
        %2151 = vst.msk [vmem:[#allocation5 + $0xb8] sm:$0xff] %vm1985, %v2108
        %2152 = vst.msk [vmem:[#allocation5 + $0xc0] sm:$0xff] %vm1985, %v2110
        %2153 = vst.msk [vmem:[#allocation5 + $0xc8] sm:$0xff] %vm1985, %v2111
        %2154 = vst.msk [vmem:[#allocation5 + $0xd0] sm:$0xff] %vm1985, %v2113
        %2155 = vst.msk [vmem:[#allocation5 + $0xd8] sm:$0xff] %vm1985, %v2114
        %2156 = vst.msk [vmem:[#allocation5 + $0xe0] sm:$0xff] %vm1985, %v2116
        %2157 = vst.msk [vmem:[#allocation5 + $0xe8] sm:$0xff] %vm1985, %v2117
        %2158 = vst.msk [vmem:[#allocation5 + $0xf0] sm:$0xff] %vm1985, %v2119
        %2159 = vst.msk [vmem:[#allocation5 + $0xf8] sm:$0xff] %vm1985, %v2120
        %v2208 = vrot.slane %v2074, 1
        %v2209 = vrot.slane %v2075, 1
        %v2210 = vsel %vm478, %v2208, %v2209
        %v2211 = vrot.slane %v2076, 1
        %v2212 = vsel %vm478, %v2209, %v2211
        %v2213 = vrot.slane %v2077, 1
        %v2214 = vrot.slane %v2078, 1
        %v2215 = vsel %vm478, %v2213, %v2214
        %v2216 = vrot.slane %v2079, 1
        %v2217 = vsel %vm478, %v2214, %v2216
        %v2218 = vrot.slane %v2080, 1
        %v2219 = vrot.slane %v2081, 1
        %v2220 = vsel %vm478, %v2218, %v2219
        %v2221 = vrot.slane %v2082, 1
        %v2222 = vsel %vm478, %v2219, %v2221
        %v2223 = vrot.slane %v2083, 1
        %v2224 = vrot.slane %v2084, 1
        %v2225 = vsel %vm478, %v2223, %v2224
        %v2226 = vrot.slane %v2085, 1
        %v2227 = vsel %vm478, %v2224, %v2226
        %v2228 = vrot.slane %v2086, 1
        %v2229 = vrot.slane %v2087, 1
        %v2230 = vsel %vm478, %v2228, %v2229
        %v2231 = vrot.slane %v2088, 1
        %v2232 = vsel %vm478, %v2229, %v2231
        %v2233 = vrot.slane %v2089, 1
        %v2234 = vrot.slane %v2090, 1
        %v2235 = vsel %vm478, %v2233, %v2234
        %v2236 = vrot.slane %v2091, 1
        %v2237 = vsel %vm478, %v2234, %v2236
        %v2238 = vrot.slane %v2092, 1
        %v2239 = vrot.slane %v2093, 1
        %v2240 = vsel %vm478, %v2238, %v2239
        %v2241 = vrot.slane %v2094, 1
        %v2242 = vsel %vm478, %v2239, %v2241
        %v2243 = vrot.slane %v2095, 1
        %v2244 = vrot.slane %v2096, 1
        %v2245 = vsel %vm478, %v2243, %v2244
        %v2246 = vrot.slane %v2097, 1
        %v2247 = vsel %vm478, %v2244, %v2246
        %v2248 = vrot.slane %v2098, 1
        %v2249 = vrot.slane %v2099, 1
        %v2250 = vsel %vm478, %v2248, %v2249
        %v2251 = vrot.slane %v2100, 1
        %v2252 = vsel %vm478, %v2249, %v2251
        %v2253 = vrot.slane %v2101, 1
        %v2254 = vrot.slane %v2102, 1
        %v2255 = vsel %vm478, %v2253, %v2254
        %v2256 = vrot.slane %v2103, 1
        %v2257 = vsel %vm478, %v2254, %v2256
        %v2258 = vrot.slane %v2104, 1
        %v2259 = vrot.slane %v2105, 1
        %v2260 = vsel %vm478, %v2258, %v2259
        %v2261 = vrot.slane %v2106, 1
        %v2262 = vsel %vm478, %v2259, %v2261
        %v2263 = vrot.slane %v2107, 1
        %v2264 = vrot.slane %v2108, 1
        %v2265 = vsel %vm478, %v2263, %v2264
        %v2266 = vrot.slane %v2109, 1
        %v2267 = vsel %vm478, %v2264, %v2266
        %v2268 = vrot.slane %v2110, 1
        %v2269 = vrot.slane %v2111, 1
        %v2270 = vsel %vm478, %v2268, %v2269
        %v2271 = vrot.slane %v2112, 1
        %v2272 = vsel %vm478, %v2269, %v2271
        %v2273 = vrot.slane %v2113, 1
        %v2274 = vrot.slane %v2114, 1
        %v2275 = vsel %vm478, %v2273, %v2274
        %v2276 = vrot.slane %v2115, 1
        %v2277 = vsel %vm478, %v2274, %v2276
        %v2278 = vrot.slane %v2116, 1
        %v2279 = vrot.slane %v2117, 1
        %v2280 = vsel %vm478, %v2278, %v2279
        %v2281 = vrot.slane %v2118, 1
        %v2282 = vsel %vm478, %v2279, %v2281
        %v2283 = vrot.slane %v2119, 1
        %v2284 = vrot.slane %v2120, 1
        %v2285 = vsel %vm478, %v2283, %v2284
        %v2286 = vrot.slane %v2121, 1
        %v2287 = vsel %vm478, %v2284, %v2286
        %2288 = vrot.lane.b32.xlu0 %v2210, 8
        %v2289 = vpop.permute.xlu0 %2288
        %2290 = vrot.lane.b32.xlu0 %v2212, 8
        %v2291 = vpop.permute.xlu0 %2290
        %2292 = vrot.lane.b32.xlu0 %v2215, 8
        %v2293 = vpop.permute.xlu0 %2292
        %2294 = vrot.lane.b32.xlu0 %v2217, 8
        %v2295 = vpop.permute.xlu0 %2294
        %2296 = vrot.lane.b32.xlu0 %v2220, 8
        %v2297 = vpop.permute.xlu0 %2296
        %2298 = vrot.lane.b32.xlu0 %v2222, 8
        %v2299 = vpop.permute.xlu0 %2298
        %2300 = vrot.lane.b32.xlu0 %v2225, 8
        %v2301 = vpop.permute.xlu0 %2300
        %2302 = vrot.lane.b32.xlu0 %v2227, 8
        %v2303 = vpop.permute.xlu0 %2302
        %2304 = vrot.lane.b32.xlu0 %v2230, 8
        %v2305 = vpop.permute.xlu0 %2304
        %2306 = vrot.lane.b32.xlu0 %v2232, 8
        %v2307 = vpop.permute.xlu0 %2306
        %2308 = vrot.lane.b32.xlu0 %v2235, 8
        %v2309 = vpop.permute.xlu0 %2308
        %2310 = vrot.lane.b32.xlu0 %v2237, 8
        %v2311 = vpop.permute.xlu0 %2310
        %2312 = vrot.lane.b32.xlu0 %v2240, 8
        %v2313 = vpop.permute.xlu0 %2312
        %2314 = vrot.lane.b32.xlu0 %v2242, 8
        %v2315 = vpop.permute.xlu0 %2314
        %2316 = vrot.lane.b32.xlu0 %v2245, 8
        %v2317 = vpop.permute.xlu0 %2316
        %2318 = vrot.lane.b32.xlu0 %v2247, 8
        %v2319 = vpop.permute.xlu0 %2318
        %2320 = vrot.lane.b32.xlu0 %v2250, 8
        %v2321 = vpop.permute.xlu0 %2320
        %2322 = vrot.lane.b32.xlu0 %v2252, 8
        %v2323 = vpop.permute.xlu0 %2322
        %2324 = vrot.lane.b32.xlu0 %v2255, 8
        %v2325 = vpop.permute.xlu0 %2324
        %2326 = vrot.lane.b32.xlu0 %v2257, 8
        %v2327 = vpop.permute.xlu0 %2326
        %2328 = vrot.lane.b32.xlu0 %v2260, 8
        %v2329 = vpop.permute.xlu0 %2328
        %2330 = vrot.lane.b32.xlu0 %v2262, 8
        %v2331 = vpop.permute.xlu0 %2330
        %2332 = vrot.lane.b32.xlu0 %v2265, 8
        %v2333 = vpop.permute.xlu0 %2332
        %2334 = vrot.lane.b32.xlu0 %v2267, 8
        %v2335 = vpop.permute.xlu0 %2334
        %2336 = vrot.lane.b32.xlu0 %v2270, 8
        %v2337 = vpop.permute.xlu0 %2336
        %2338 = vrot.lane.b32.xlu0 %v2272, 8
        %v2339 = vpop.permute.xlu0 %2338
        %2340 = vrot.lane.b32.xlu0 %v2275, 8
        %v2341 = vpop.permute.xlu0 %2340
        %2342 = vrot.lane.b32.xlu0 %v2277, 8
        %v2343 = vpop.permute.xlu0 %2342
        %2344 = vrot.lane.b32.xlu0 %v2280, 8
        %v2345 = vpop.permute.xlu0 %2344
        %2346 = vrot.lane.b32.xlu0 %v2282, 8
        %v2347 = vpop.permute.xlu0 %2346
        %2348 = vrot.lane.b32.xlu0 %v2285, 8
        %v2349 = vpop.permute.xlu0 %2348
        %2350 = vrot.lane.b32.xlu0 %v2287, 8
        %v2351 = vpop.permute.xlu0 %2350
        %vm2384 = vcmask 130112
        %2385 = vst.msk [vmem:[#allocation5] sm:$0xff] %vm2384, %v2289
        %2386 = vst.msk [vmem:[#allocation5 + $0x8] sm:$0xff] %vm2384, %v2291
        %2387 = vst.msk [vmem:[#allocation5 + $0x10] sm:$0xff] %vm2384, %v2293
        %2388 = vst.msk [vmem:[#allocation5 + $0x18] sm:$0xff] %vm2384, %v2295
        %2389 = vst.msk [vmem:[#allocation5 + $0x20] sm:$0xff] %vm2384, %v2297
        %2390 = vst.msk [vmem:[#allocation5 + $0x28] sm:$0xff] %vm2384, %v2299
        %2391 = vst.msk [vmem:[#allocation5 + $0x30] sm:$0xff] %vm2384, %v2301
        %2392 = vst.msk [vmem:[#allocation5 + $0x38] sm:$0xff] %vm2384, %v2303
        %2393 = vst.msk [vmem:[#allocation5 + $0x40] sm:$0xff] %vm2384, %v2305
        %2394 = vst.msk [vmem:[#allocation5 + $0x48] sm:$0xff] %vm2384, %v2307
        %2395 = vst.msk [vmem:[#allocation5 + $0x50] sm:$0xff] %vm2384, %v2309
        %2396 = vst.msk [vmem:[#allocation5 + $0x58] sm:$0xff] %vm2384, %v2311
        %2397 = vst.msk [vmem:[#allocation5 + $0x60] sm:$0xff] %vm2384, %v2313
        %2398 = vst.msk [vmem:[#allocation5 + $0x68] sm:$0xff] %vm2384, %v2315
        %2399 = vst.msk [vmem:[#allocation5 + $0x70] sm:$0xff] %vm2384, %v2317
        %2400 = vst.msk [vmem:[#allocation5 + $0x78] sm:$0xff] %vm2384, %v2319
        %2401 = vst.msk [vmem:[#allocation5 + $0x80] sm:$0xff] %vm2384, %v2321
        %2402 = vst.msk [vmem:[#allocation5 + $0x88] sm:$0xff] %vm2384, %v2323
        %2403 = vst.msk [vmem:[#allocation5 + $0x90] sm:$0xff] %vm2384, %v2325
        %2404 = vst.msk [vmem:[#allocation5 + $0x98] sm:$0xff] %vm2384, %v2327
        %2405 = vst.msk [vmem:[#allocation5 + $0xa0] sm:$0xff] %vm2384, %v2329
        %2406 = vst.msk [vmem:[#allocation5 + $0xa8] sm:$0xff] %vm2384, %v2331
        %2407 = vst.msk [vmem:[#allocation5 + $0xb0] sm:$0xff] %vm2384, %v2333
        %2408 = vst.msk [vmem:[#allocation5 + $0xb8] sm:$0xff] %vm2384, %v2335
        %2409 = vst.msk [vmem:[#allocation5 + $0xc0] sm:$0xff] %vm2384, %v2337
        %2410 = vst.msk [vmem:[#allocation5 + $0xc8] sm:$0xff] %vm2384, %v2339
        %2411 = vst.msk [vmem:[#allocation5 + $0xd0] sm:$0xff] %vm2384, %v2341
        %2412 = vst.msk [vmem:[#allocation5 + $0xd8] sm:$0xff] %vm2384, %v2343
        %2413 = vst.msk [vmem:[#allocation5 + $0xe0] sm:$0xff] %vm2384, %v2345
        %2414 = vst.msk [vmem:[#allocation5 + $0xe8] sm:$0xff] %vm2384, %v2347
        %2415 = vst.msk [vmem:[#allocation5 + $0xf0] sm:$0xff] %vm2384, %v2349
        %2416 = vst.msk [vmem:[#allocation5 + $0xf8] sm:$0xff] %vm2384, %v2351
        %v2417 = vrot.slane %v2074, 2
        %v2418 = vrot.slane %v2075, 2
        %v2419 = vsel %vm688, %v2417, %v2418
        %v2420 = vrot.slane %v2076, 2
        %v2421 = vsel %vm688, %v2418, %v2420
        %v2422 = vrot.slane %v2077, 2
        %v2423 = vrot.slane %v2078, 2
        %v2424 = vsel %vm688, %v2422, %v2423
        %v2425 = vrot.slane %v2079, 2
        %v2426 = vsel %vm688, %v2423, %v2425
        %v2427 = vrot.slane %v2080, 2
        %v2428 = vrot.slane %v2081, 2
        %v2429 = vsel %vm688, %v2427, %v2428
        %v2430 = vrot.slane %v2082, 2
        %v2431 = vsel %vm688, %v2428, %v2430
        %v2432 = vrot.slane %v2083, 2
        %v2433 = vrot.slane %v2084, 2
        %v2434 = vsel %vm688, %v2432, %v2433
        %v2435 = vrot.slane %v2085, 2
        %v2436 = vsel %vm688, %v2433, %v2435
        %v2437 = vrot.slane %v2086, 2
        %v2438 = vrot.slane %v2087, 2
        %v2439 = vsel %vm688, %v2437, %v2438
        %v2440 = vrot.slane %v2088, 2
        %v2441 = vsel %vm688, %v2438, %v2440
        %v2442 = vrot.slane %v2089, 2
        %v2443 = vrot.slane %v2090, 2
        %v2444 = vsel %vm688, %v2442, %v2443
        %v2445 = vrot.slane %v2091, 2
        %v2446 = vsel %vm688, %v2443, %v2445
        %v2447 = vrot.slane %v2092, 2
        %v2448 = vrot.slane %v2093, 2
        %v2449 = vsel %vm688, %v2447, %v2448
        %v2450 = vrot.slane %v2094, 2
        %v2451 = vsel %vm688, %v2448, %v2450
        %v2452 = vrot.slane %v2095, 2
        %v2453 = vrot.slane %v2096, 2
        %v2454 = vsel %vm688, %v2452, %v2453
        %v2455 = vrot.slane %v2097, 2
        %v2456 = vsel %vm688, %v2453, %v2455
        %v2457 = vrot.slane %v2098, 2
        %v2458 = vrot.slane %v2099, 2
        %v2459 = vsel %vm688, %v2457, %v2458
        %v2460 = vrot.slane %v2100, 2
        %v2461 = vsel %vm688, %v2458, %v2460
        %v2462 = vrot.slane %v2101, 2
        %v2463 = vrot.slane %v2102, 2
        %v2464 = vsel %vm688, %v2462, %v2463
        %v2465 = vrot.slane %v2103, 2
        %v2466 = vsel %vm688, %v2463, %v2465
        %v2467 = vrot.slane %v2104, 2
        %v2468 = vrot.slane %v2105, 2
        %v2469 = vsel %vm688, %v2467, %v2468
        %v2470 = vrot.slane %v2106, 2
        %v2471 = vsel %vm688, %v2468, %v2470
        %v2472 = vrot.slane %v2107, 2
        %v2473 = vrot.slane %v2108, 2
        %v2474 = vsel %vm688, %v2472, %v2473
        %v2475 = vrot.slane %v2109, 2
        %v2476 = vsel %vm688, %v2473, %v2475
        %v2477 = vrot.slane %v2110, 2
        %v2478 = vrot.slane %v2111, 2
        %v2479 = vsel %vm688, %v2477, %v2478
        %v2480 = vrot.slane %v2112, 2
        %v2481 = vsel %vm688, %v2478, %v2480
        %v2482 = vrot.slane %v2113, 2
        %v2483 = vrot.slane %v2114, 2
        %v2484 = vsel %vm688, %v2482, %v2483
        %v2485 = vrot.slane %v2115, 2
        %v2486 = vsel %vm688, %v2483, %v2485
        %v2487 = vrot.slane %v2116, 2
        %v2488 = vrot.slane %v2117, 2
        %v2489 = vsel %vm688, %v2487, %v2488
        %v2490 = vrot.slane %v2118, 2
        %v2491 = vsel %vm688, %v2488, %v2490
        %v2492 = vrot.slane %v2119, 2
        %v2493 = vrot.slane %v2120, 2
        %v2494 = vsel %vm688, %v2492, %v2493
        %v2495 = vrot.slane %v2121, 2
        %v2496 = vsel %vm688, %v2493, %v2495
        %2497 = vrot.lane.b32.xlu0 %v2419, 16
        %v2498 = vpop.permute.xlu0 %2497
        %2499 = vrot.lane.b32.xlu0 %v2421, 16
        %v2500 = vpop.permute.xlu0 %2499
        %2501 = vrot.lane.b32.xlu0 %v2424, 16
        %v2502 = vpop.permute.xlu0 %2501
        %2503 = vrot.lane.b32.xlu0 %v2426, 16
        %v2504 = vpop.permute.xlu0 %2503
        %2505 = vrot.lane.b32.xlu0 %v2429, 16
        %v2506 = vpop.permute.xlu0 %2505
        %2507 = vrot.lane.b32.xlu0 %v2431, 16
        %v2508 = vpop.permute.xlu0 %2507
        %2509 = vrot.lane.b32.xlu0 %v2434, 16
        %v2510 = vpop.permute.xlu0 %2509
        %2511 = vrot.lane.b32.xlu0 %v2436, 16
        %v2512 = vpop.permute.xlu0 %2511
        %2513 = vrot.lane.b32.xlu0 %v2439, 16
        %v2514 = vpop.permute.xlu0 %2513
        %2515 = vrot.lane.b32.xlu0 %v2441, 16
        %v2516 = vpop.permute.xlu0 %2515
        %2517 = vrot.lane.b32.xlu0 %v2444, 16
        %v2518 = vpop.permute.xlu0 %2517
        %2519 = vrot.lane.b32.xlu0 %v2446, 16
        %v2520 = vpop.permute.xlu0 %2519
        %2521 = vrot.lane.b32.xlu0 %v2449, 16
        %v2522 = vpop.permute.xlu0 %2521
        %2523 = vrot.lane.b32.xlu0 %v2451, 16
        %v2524 = vpop.permute.xlu0 %2523
        %2525 = vrot.lane.b32.xlu0 %v2454, 16
        %v2526 = vpop.permute.xlu0 %2525
        %2527 = vrot.lane.b32.xlu0 %v2456, 16
        %v2528 = vpop.permute.xlu0 %2527
        %2529 = vrot.lane.b32.xlu0 %v2459, 16
        %v2530 = vpop.permute.xlu0 %2529
        %2531 = vrot.lane.b32.xlu0 %v2461, 16
        %v2532 = vpop.permute.xlu0 %2531
        %2533 = vrot.lane.b32.xlu0 %v2464, 16
        %v2534 = vpop.permute.xlu0 %2533
        %2535 = vrot.lane.b32.xlu0 %v2466, 16
        %v2536 = vpop.permute.xlu0 %2535
        %2537 = vrot.lane.b32.xlu0 %v2469, 16
        %v2538 = vpop.permute.xlu0 %2537
        %2539 = vrot.lane.b32.xlu0 %v2471, 16
        %v2540 = vpop.permute.xlu0 %2539
        %2541 = vrot.lane.b32.xlu0 %v2474, 16
        %v2542 = vpop.permute.xlu0 %2541
        %2543 = vrot.lane.b32.xlu0 %v2476, 16
        %v2544 = vpop.permute.xlu0 %2543
        %2545 = vrot.lane.b32.xlu0 %v2479, 16
        %v2546 = vpop.permute.xlu0 %2545
        %2547 = vrot.lane.b32.xlu0 %v2481, 16
        %v2548 = vpop.permute.xlu0 %2547
        %2549 = vrot.lane.b32.xlu0 %v2484, 16
        %v2550 = vpop.permute.xlu0 %2549
        %2551 = vrot.lane.b32.xlu0 %v2486, 16
        %v2552 = vpop.permute.xlu0 %2551
        %2553 = vrot.lane.b32.xlu0 %v2489, 16
        %v2554 = vpop.permute.xlu0 %2553
        %2555 = vrot.lane.b32.xlu0 %v2491, 16
        %v2556 = vpop.permute.xlu0 %2555
        %2557 = vrot.lane.b32.xlu0 %v2494, 16
        %v2558 = vpop.permute.xlu0 %2557
        %2559 = vrot.lane.b32.xlu0 %v2496, 16
        %v2560 = vpop.permute.xlu0 %2559
        %vm2593 = vcmask 195712
        %2594 = vst.msk [vmem:[#allocation5] sm:$0xff] %vm2593, %v2498
        %2595 = vst.msk [vmem:[#allocation5 + $0x8] sm:$0xff] %vm2593, %v2500
        %2596 = vst.msk [vmem:[#allocation5 + $0x10] sm:$0xff] %vm2593, %v2502
        %2597 = vst.msk [vmem:[#allocation5 + $0x18] sm:$0xff] %vm2593, %v2504
        %2598 = vst.msk [vmem:[#allocation5 + $0x20] sm:$0xff] %vm2593, %v2506
        %2599 = vst.msk [vmem:[#allocation5 + $0x28] sm:$0xff] %vm2593, %v2508
        %2600 = vst.msk [vmem:[#allocation5 + $0x30] sm:$0xff] %vm2593, %v2510
        %2601 = vst.msk [vmem:[#allocation5 + $0x38] sm:$0xff] %vm2593, %v2512
        %2602 = vst.msk [vmem:[#allocation5 + $0x40] sm:$0xff] %vm2593, %v2514
        %2603 = vst.msk [vmem:[#allocation5 + $0x48] sm:$0xff] %vm2593, %v2516
        %2604 = vst.msk [vmem:[#allocation5 + $0x50] sm:$0xff] %vm2593, %v2518
        %2605 = vst.msk [vmem:[#allocation5 + $0x58] sm:$0xff] %vm2593, %v2520
        %2606 = vst.msk [vmem:[#allocation5 + $0x60] sm:$0xff] %vm2593, %v2522
        %2607 = vst.msk [vmem:[#allocation5 + $0x68] sm:$0xff] %vm2593, %v2524
        %2608 = vst.msk [vmem:[#allocation5 + $0x70] sm:$0xff] %vm2593, %v2526
        %2609 = vst.msk [vmem:[#allocation5 + $0x78] sm:$0xff] %vm2593, %v2528
        %2610 = vst.msk [vmem:[#allocation5 + $0x80] sm:$0xff] %vm2593, %v2530
        %2611 = vst.msk [vmem:[#allocation5 + $0x88] sm:$0xff] %vm2593, %v2532
        %2612 = vst.msk [vmem:[#allocation5 + $0x90] sm:$0xff] %vm2593, %v2534
        %2613 = vst.msk [vmem:[#allocation5 + $0x98] sm:$0xff] %vm2593, %v2536
        %2614 = vst.msk [vmem:[#allocation5 + $0xa0] sm:$0xff] %vm2593, %v2538
        %2615 = vst.msk [vmem:[#allocation5 + $0xa8] sm:$0xff] %vm2593, %v2540
        %2616 = vst.msk [vmem:[#allocation5 + $0xb0] sm:$0xff] %vm2593, %v2542
        %2617 = vst.msk [vmem:[#allocation5 + $0xb8] sm:$0xff] %vm2593, %v2544
        %2618 = vst.msk [vmem:[#allocation5 + $0xc0] sm:$0xff] %vm2593, %v2546
        %2619 = vst.msk [vmem:[#allocation5 + $0xc8] sm:$0xff] %vm2593, %v2548
        %2620 = vst.msk [vmem:[#allocation5 + $0xd0] sm:$0xff] %vm2593, %v2550
        %2621 = vst.msk [vmem:[#allocation5 + $0xd8] sm:$0xff] %vm2593, %v2552
        %2622 = vst.msk [vmem:[#allocation5 + $0xe0] sm:$0xff] %vm2593, %v2554
        %2623 = vst.msk [vmem:[#allocation5 + $0xe8] sm:$0xff] %vm2593, %v2556
        %2624 = vst.msk [vmem:[#allocation5 + $0xf0] sm:$0xff] %vm2593, %v2558
        %2625 = vst.msk [vmem:[#allocation5 + $0xf8] sm:$0xff] %vm2593, %v2560
        %2628 = vrot.lane.b32.xlu0 %v2077, 24
        %v2629 = vpop.permute.xlu0 %2628
        %2630 = vrot.lane.b32.xlu0 %v2078, 24
        %v2631 = vpop.permute.xlu0 %2630
        %2632 = vrot.lane.b32.xlu0 %v2080, 24
        %v2633 = vpop.permute.xlu0 %2632
        %2634 = vrot.lane.b32.xlu0 %v2081, 24
        %v2635 = vpop.permute.xlu0 %2634
        %2636 = vrot.lane.b32.xlu0 %v2083, 24
        %v2637 = vpop.permute.xlu0 %2636
        %2638 = vrot.lane.b32.xlu0 %v2084, 24
        %v2639 = vpop.permute.xlu0 %2638
        %2640 = vrot.lane.b32.xlu0 %v2086, 24
        %v2641 = vpop.permute.xlu0 %2640
        %2642 = vrot.lane.b32.xlu0 %v2087, 24
        %v2643 = vpop.permute.xlu0 %2642
        %2644 = vrot.lane.b32.xlu0 %v2089, 24
        %v2645 = vpop.permute.xlu0 %2644
        %2646 = vrot.lane.b32.xlu0 %v2090, 24
        %v2647 = vpop.permute.xlu0 %2646
        %2648 = vrot.lane.b32.xlu0 %v2092, 24
        %v2649 = vpop.permute.xlu0 %2648
        %2650 = vrot.lane.b32.xlu0 %v2093, 24
        %v2651 = vpop.permute.xlu0 %2650
        %2652 = vrot.lane.b32.xlu0 %v2095, 24
        %v2653 = vpop.permute.xlu0 %2652
        %2654 = vrot.lane.b32.xlu0 %v2096, 24
        %v2655 = vpop.permute.xlu0 %2654
        %2656 = vrot.lane.b32.xlu0 %v2098, 24
        %v2657 = vpop.permute.xlu0 %2656
        %2658 = vrot.lane.b32.xlu0 %v2099, 24
        %v2659 = vpop.permute.xlu0 %2658
        %2660 = vrot.lane.b32.xlu0 %v2101, 24
        %v2661 = vpop.permute.xlu0 %2660
        %2662 = vrot.lane.b32.xlu0 %v2102, 24
        %v2663 = vpop.permute.xlu0 %2662
        %2664 = vrot.lane.b32.xlu0 %v2104, 24
        %v2665 = vpop.permute.xlu0 %2664
        %2666 = vrot.lane.b32.xlu0 %v2105, 24
        %v2667 = vpop.permute.xlu0 %2666
        %2668 = vrot.lane.b32.xlu0 %v2107, 24
        %v2669 = vpop.permute.xlu0 %2668
        %2670 = vrot.lane.b32.xlu0 %v2108, 24
        %v2671 = vpop.permute.xlu0 %2670
        %2672 = vrot.lane.b32.xlu0 %v2110, 24
        %v2673 = vpop.permute.xlu0 %2672
        %2674 = vrot.lane.b32.xlu0 %v2111, 24
        %v2675 = vpop.permute.xlu0 %2674
        %2676 = vrot.lane.b32.xlu0 %v2113, 24
        %v2677 = vpop.permute.xlu0 %2676
        %2678 = vrot.lane.b32.xlu0 %v2114, 24
        %v2679 = vpop.permute.xlu0 %2678
        %2680 = vrot.lane.b32.xlu0 %v2116, 24
        %v2681 = vpop.permute.xlu0 %2680
        %2682 = vrot.lane.b32.xlu0 %v2117, 24
        %v2683 = vpop.permute.xlu0 %2682
        %2684 = vrot.lane.b32.xlu0 %v2119, 24
        %v2685 = vpop.permute.xlu0 %2684
        %2686 = vrot.lane.b32.xlu0 %v2120, 24
        %v2687 = vpop.permute.xlu0 %2686
        %2688 = vrot.lane.b32.xlu0 %v2122, 24
        %v2689 = vpop.permute.xlu0 %2688
        %2690 = vrot.lane.b32.xlu0 %v2123, 24
        %v2691 = vpop.permute.xlu0 %2690
        %vm2724 = vcmask 261312
        %2725 = vst.msk [vmem:[#allocation5] sm:$0xff] %vm2724, %v2629
        %2726 = vst.msk [vmem:[#allocation5 + $0x8] sm:$0xff] %vm2724, %v2631
        %2727 = vst.msk [vmem:[#allocation5 + $0x10] sm:$0xff] %vm2724, %v2633
        %2728 = vst.msk [vmem:[#allocation5 + $0x18] sm:$0xff] %vm2724, %v2635
        %2729 = vst.msk [vmem:[#allocation5 + $0x20] sm:$0xff] %vm2724, %v2637
        %2730 = vst.msk [vmem:[#allocation5 + $0x28] sm:$0xff] %vm2724, %v2639
        %2731 = vst.msk [vmem:[#allocation5 + $0x30] sm:$0xff] %vm2724, %v2641
        %2732 = vst.msk [vmem:[#allocation5 + $0x38] sm:$0xff] %vm2724, %v2643
        %2733 = vst.msk [vmem:[#allocation5 + $0x40] sm:$0xff] %vm2724, %v2645
        %2734 = vst.msk [vmem:[#allocation5 + $0x48] sm:$0xff] %vm2724, %v2647
        %2735 = vst.msk [vmem:[#allocation5 + $0x50] sm:$0xff] %vm2724, %v2649
        %2736 = vst.msk [vmem:[#allocation5 + $0x58] sm:$0xff] %vm2724, %v2651
        %2737 = vst.msk [vmem:[#allocation5 + $0x60] sm:$0xff] %vm2724, %v2653
        %2738 = vst.msk [vmem:[#allocation5 + $0x68] sm:$0xff] %vm2724, %v2655
        %2739 = vst.msk [vmem:[#allocation5 + $0x70] sm:$0xff] %vm2724, %v2657
        %2740 = vst.msk [vmem:[#allocation5 + $0x78] sm:$0xff] %vm2724, %v2659
        %2741 = vst.msk [vmem:[#allocation5 + $0x80] sm:$0xff] %vm2724, %v2661
        %2742 = vst.msk [vmem:[#allocation5 + $0x88] sm:$0xff] %vm2724, %v2663
        %2743 = vst.msk [vmem:[#allocation5 + $0x90] sm:$0xff] %vm2724, %v2665
        %2744 = vst.msk [vmem:[#allocation5 + $0x98] sm:$0xff] %vm2724, %v2667
        %2745 = vst.msk [vmem:[#allocation5 + $0xa0] sm:$0xff] %vm2724, %v2669
        %2746 = vst.msk [vmem:[#allocation5 + $0xa8] sm:$0xff] %vm2724, %v2671
        %2747 = vst.msk [vmem:[#allocation5 + $0xb0] sm:$0xff] %vm2724, %v2673
        %2748 = vst.msk [vmem:[#allocation5 + $0xb8] sm:$0xff] %vm2724, %v2675
        %2749 = vst.msk [vmem:[#allocation5 + $0xc0] sm:$0xff] %vm2724, %v2677
        %2750 = vst.msk [vmem:[#allocation5 + $0xc8] sm:$0xff] %vm2724, %v2679
        %2751 = vst.msk [vmem:[#allocation5 + $0xd0] sm:$0xff] %vm2724, %v2681
        %2752 = vst.msk [vmem:[#allocation5 + $0xd8] sm:$0xff] %vm2724, %v2683
        %2753 = vst.msk [vmem:[#allocation5 + $0xe0] sm:$0xff] %vm2724, %v2685
        %2754 = vst.msk [vmem:[#allocation5 + $0xe8] sm:$0xff] %vm2724, %v2687
        %2755 = vst.msk [vmem:[#allocation5 + $0xf0] sm:$0xff] %vm2724, %v2689
        %2756 = vst.msk [vmem:[#allocation5 + $0xf8] sm:$0xff] %vm2724, %v2691
        %v2758 = vrot.slane %v2122, 1
        %v2759 = vrot.slane %v2123, 1
        %v2760 = vsel %vm478, %v2758, %v2759
        %v2761 = vrot.slane %v2124, 1
        %v2762 = vsel %vm478, %v2759, %v2761
        %2763 = vrot.lane.b32.xlu0 %v2215, 32
        %v2764 = vpop.permute.xlu0 %2763
        %2765 = vrot.lane.b32.xlu0 %v2217, 32
        %v2766 = vpop.permute.xlu0 %2765
        %2767 = vrot.lane.b32.xlu0 %v2220, 32
        %v2768 = vpop.permute.xlu0 %2767
        %2769 = vrot.lane.b32.xlu0 %v2222, 32
        %v2770 = vpop.permute.xlu0 %2769
        %2771 = vrot.lane.b32.xlu0 %v2225, 32
        %v2772 = vpop.permute.xlu0 %2771
        %2773 = vrot.lane.b32.xlu0 %v2227, 32
        %v2774 = vpop.permute.xlu0 %2773
        %2775 = vrot.lane.b32.xlu0 %v2230, 32
        %v2776 = vpop.permute.xlu0 %2775
        %2777 = vrot.lane.b32.xlu0 %v2232, 32
        %v2778 = vpop.permute.xlu0 %2777
        %2779 = vrot.lane.b32.xlu0 %v2235, 32
        %v2780 = vpop.permute.xlu0 %2779
        %2781 = vrot.lane.b32.xlu0 %v2237, 32
        %v2782 = vpop.permute.xlu0 %2781
        %2783 = vrot.lane.b32.xlu0 %v2240, 32
        %v2784 = vpop.permute.xlu0 %2783
        %2785 = vrot.lane.b32.xlu0 %v2242, 32
        %v2786 = vpop.permute.xlu0 %2785
        %2787 = vrot.lane.b32.xlu0 %v2245, 32
        %v2788 = vpop.permute.xlu0 %2787
        %2789 = vrot.lane.b32.xlu0 %v2247, 32
        %v2790 = vpop.permute.xlu0 %2789
        %2791 = vrot.lane.b32.xlu0 %v2250, 32
        %v2792 = vpop.permute.xlu0 %2791
        %2793 = vrot.lane.b32.xlu0 %v2252, 32
        %v2794 = vpop.permute.xlu0 %2793
        %2795 = vrot.lane.b32.xlu0 %v2255, 32
        %v2796 = vpop.permute.xlu0 %2795
        %2797 = vrot.lane.b32.xlu0 %v2257, 32
        %v2798 = vpop.permute.xlu0 %2797
        %2799 = vrot.lane.b32.xlu0 %v2260, 32
        %v2800 = vpop.permute.xlu0 %2799
        %2801 = vrot.lane.b32.xlu0 %v2262, 32
        %v2802 = vpop.permute.xlu0 %2801
        %2803 = vrot.lane.b32.xlu0 %v2265, 32
        %v2804 = vpop.permute.xlu0 %2803
        %2805 = vrot.lane.b32.xlu0 %v2267, 32
        %v2806 = vpop.permute.xlu0 %2805
        %2807 = vrot.lane.b32.xlu0 %v2270, 32
        %v2808 = vpop.permute.xlu0 %2807
        %2809 = vrot.lane.b32.xlu0 %v2272, 32
        %v2810 = vpop.permute.xlu0 %2809
        %2811 = vrot.lane.b32.xlu0 %v2275, 32
        %v2812 = vpop.permute.xlu0 %2811
        %2813 = vrot.lane.b32.xlu0 %v2277, 32
        %v2814 = vpop.permute.xlu0 %2813
        %2815 = vrot.lane.b32.xlu0 %v2280, 32
        %v2816 = vpop.permute.xlu0 %2815
        %2817 = vrot.lane.b32.xlu0 %v2282, 32
        %v2818 = vpop.permute.xlu0 %2817
        %2819 = vrot.lane.b32.xlu0 %v2285, 32
        %v2820 = vpop.permute.xlu0 %2819
        %2821 = vrot.lane.b32.xlu0 %v2287, 32
        %v2822 = vpop.permute.xlu0 %2821
        %2823 = vrot.lane.b32.xlu0 %v2760, 32
        %v2824 = vpop.permute.xlu0 %2823
        %2825 = vrot.lane.b32.xlu0 %v2762, 32
        %v2826 = vpop.permute.xlu0 %2825
        %vm2859 = vcmask 326912
        %2860 = vst.msk [vmem:[#allocation5] sm:$0xff] %vm2859, %v2764
        %2861 = vst.msk [vmem:[#allocation5 + $0x8] sm:$0xff] %vm2859, %v2766
        %2862 = vst.msk [vmem:[#allocation5 + $0x10] sm:$0xff] %vm2859, %v2768
        %2863 = vst.msk [vmem:[#allocation5 + $0x18] sm:$0xff] %vm2859, %v2770
        %2864 = vst.msk [vmem:[#allocation5 + $0x20] sm:$0xff] %vm2859, %v2772
        %2865 = vst.msk [vmem:[#allocation5 + $0x28] sm:$0xff] %vm2859, %v2774
        %2866 = vst.msk [vmem:[#allocation5 + $0x30] sm:$0xff] %vm2859, %v2776
        %2867 = vst.msk [vmem:[#allocation5 + $0x38] sm:$0xff] %vm2859, %v2778
        %2868 = vst.msk [vmem:[#allocation5 + $0x40] sm:$0xff] %vm2859, %v2780
        %2869 = vst.msk [vmem:[#allocation5 + $0x48] sm:$0xff] %vm2859, %v2782
        %2870 = vst.msk [vmem:[#allocation5 + $0x50] sm:$0xff] %vm2859, %v2784
        %2871 = vst.msk [vmem:[#allocation5 + $0x58] sm:$0xff] %vm2859, %v2786
        %2872 = vst.msk [vmem:[#allocation5 + $0x60] sm:$0xff] %vm2859, %v2788
        %2873 = vst.msk [vmem:[#allocation5 + $0x68] sm:$0xff] %vm2859, %v2790
        %2874 = vst.msk [vmem:[#allocation5 + $0x70] sm:$0xff] %vm2859, %v2792
        %2875 = vst.msk [vmem:[#allocation5 + $0x78] sm:$0xff] %vm2859, %v2794
        %2876 = vst.msk [vmem:[#allocation5 + $0x80] sm:$0xff] %vm2859, %v2796
        %2877 = vst.msk [vmem:[#allocation5 + $0x88] sm:$0xff] %vm2859, %v2798
        %2878 = vst.msk [vmem:[#allocation5 + $0x90] sm:$0xff] %vm2859, %v2800
        %2879 = vst.msk [vmem:[#allocation5 + $0x98] sm:$0xff] %vm2859, %v2802
        %2880 = vst.msk [vmem:[#allocation5 + $0xa0] sm:$0xff] %vm2859, %v2804
        %2881 = vst.msk [vmem:[#allocation5 + $0xa8] sm:$0xff] %vm2859, %v2806
        %2882 = vst.msk [vmem:[#allocation5 + $0xb0] sm:$0xff] %vm2859, %v2808
        %2883 = vst.msk [vmem:[#allocation5 + $0xb8] sm:$0xff] %vm2859, %v2810
        %2884 = vst.msk [vmem:[#allocation5 + $0xc0] sm:$0xff] %vm2859, %v2812
        %2885 = vst.msk [vmem:[#allocation5 + $0xc8] sm:$0xff] %vm2859, %v2814
        %2886 = vst.msk [vmem:[#allocation5 + $0xd0] sm:$0xff] %vm2859, %v2816
        %2887 = vst.msk [vmem:[#allocation5 + $0xd8] sm:$0xff] %vm2859, %v2818
        %2888 = vst.msk [vmem:[#allocation5 + $0xe0] sm:$0xff] %vm2859, %v2820
        %2889 = vst.msk [vmem:[#allocation5 + $0xe8] sm:$0xff] %vm2859, %v2822
        %2890 = vst.msk [vmem:[#allocation5 + $0xf0] sm:$0xff] %vm2859, %v2824
        %2891 = vst.msk [vmem:[#allocation5 + $0xf8] sm:$0xff] %vm2859, %v2826
        %v2892 = vrot.slane %v2122, 2
        %v2893 = vrot.slane %v2123, 2
        %v2894 = vsel %vm688, %v2892, %v2893
        %v2895 = vrot.slane %v2124, 2
        %v2896 = vsel %vm688, %v2893, %v2895
        %2897 = vrot.lane.b32.xlu0 %v2424, 40
        %v2898 = vpop.permute.xlu0 %2897
        %2899 = vrot.lane.b32.xlu0 %v2426, 40
        %v2900 = vpop.permute.xlu0 %2899
        %2901 = vrot.lane.b32.xlu0 %v2429, 40
        %v2902 = vpop.permute.xlu0 %2901
        %2903 = vrot.lane.b32.xlu0 %v2431, 40
        %v2904 = vpop.permute.xlu0 %2903
        %2905 = vrot.lane.b32.xlu0 %v2434, 40
        %v2906 = vpop.permute.xlu0 %2905
        %2907 = vrot.lane.b32.xlu0 %v2436, 40
        %v2908 = vpop.permute.xlu0 %2907
        %2909 = vrot.lane.b32.xlu0 %v2439, 40
        %v2910 = vpop.permute.xlu0 %2909
        %2911 = vrot.lane.b32.xlu0 %v2441, 40
        %v2912 = vpop.permute.xlu0 %2911
        %2913 = vrot.lane.b32.xlu0 %v2444, 40
        %v2914 = vpop.permute.xlu0 %2913
        %2915 = vrot.lane.b32.xlu0 %v2446, 40
        %v2916 = vpop.permute.xlu0 %2915
        %2917 = vrot.lane.b32.xlu0 %v2449, 40
        %v2918 = vpop.permute.xlu0 %2917
        %2919 = vrot.lane.b32.xlu0 %v2451, 40
        %v2920 = vpop.permute.xlu0 %2919
        %2921 = vrot.lane.b32.xlu0 %v2454, 40
        %v2922 = vpop.permute.xlu0 %2921
        %2923 = vrot.lane.b32.xlu0 %v2456, 40
        %v2924 = vpop.permute.xlu0 %2923
        %2925 = vrot.lane.b32.xlu0 %v2459, 40
        %v2926 = vpop.permute.xlu0 %2925
        %2927 = vrot.lane.b32.xlu0 %v2461, 40
        %v2928 = vpop.permute.xlu0 %2927
        %2929 = vrot.lane.b32.xlu0 %v2464, 40
        %v2930 = vpop.permute.xlu0 %2929
        %2931 = vrot.lane.b32.xlu0 %v2466, 40
        %v2932 = vpop.permute.xlu0 %2931
        %2933 = vrot.lane.b32.xlu0 %v2469, 40
        %v2934 = vpop.permute.xlu0 %2933
        %2935 = vrot.lane.b32.xlu0 %v2471, 40
        %v2936 = vpop.permute.xlu0 %2935
        %2937 = vrot.lane.b32.xlu0 %v2474, 40
        %v2938 = vpop.permute.xlu0 %2937
        %2939 = vrot.lane.b32.xlu0 %v2476, 40
        %v2940 = vpop.permute.xlu0 %2939
        %2941 = vrot.lane.b32.xlu0 %v2479, 40
        %v2942 = vpop.permute.xlu0 %2941
        %2943 = vrot.lane.b32.xlu0 %v2481, 40
        %v2944 = vpop.permute.xlu0 %2943
        %2945 = vrot.lane.b32.xlu0 %v2484, 40
        %v2946 = vpop.permute.xlu0 %2945
        %2947 = vrot.lane.b32.xlu0 %v2486, 40
        %v2948 = vpop.permute.xlu0 %2947
        %2949 = vrot.lane.b32.xlu0 %v2489, 40
        %v2950 = vpop.permute.xlu0 %2949
        %2951 = vrot.lane.b32.xlu0 %v2491, 40
        %v2952 = vpop.permute.xlu0 %2951
        %2953 = vrot.lane.b32.xlu0 %v2494, 40
        %v2954 = vpop.permute.xlu0 %2953
        %2955 = vrot.lane.b32.xlu0 %v2496, 40
        %v2956 = vpop.permute.xlu0 %2955
        %2957 = vrot.lane.b32.xlu0 %v2894, 40
        %v2958 = vpop.permute.xlu0 %2957
        %2959 = vrot.lane.b32.xlu0 %v2896, 40
        %v2960 = vpop.permute.xlu0 %2959
        %vm2993 = vcmask 392512
        %2994 = vst.msk [vmem:[#allocation5] sm:$0xff] %vm2993, %v2898
        %2995 = vst.msk [vmem:[#allocation5 + $0x8] sm:$0xff] %vm2993, %v2900
        %2996 = vst.msk [vmem:[#allocation5 + $0x10] sm:$0xff] %vm2993, %v2902
        %2997 = vst.msk [vmem:[#allocation5 + $0x18] sm:$0xff] %vm2993, %v2904
        %2998 = vst.msk [vmem:[#allocation5 + $0x20] sm:$0xff] %vm2993, %v2906
        %2999 = vst.msk [vmem:[#allocation5 + $0x28] sm:$0xff] %vm2993, %v2908
        %3000 = vst.msk [vmem:[#allocation5 + $0x30] sm:$0xff] %vm2993, %v2910
        %3001 = vst.msk [vmem:[#allocation5 + $0x38] sm:$0xff] %vm2993, %v2912
        %3002 = vst.msk [vmem:[#allocation5 + $0x40] sm:$0xff] %vm2993, %v2914
        %3003 = vst.msk [vmem:[#allocation5 + $0x48] sm:$0xff] %vm2993, %v2916
        %3004 = vst.msk [vmem:[#allocation5 + $0x50] sm:$0xff] %vm2993, %v2918
        %3005 = vst.msk [vmem:[#allocation5 + $0x58] sm:$0xff] %vm2993, %v2920
        %3006 = vst.msk [vmem:[#allocation5 + $0x60] sm:$0xff] %vm2993, %v2922
        %3007 = vst.msk [vmem:[#allocation5 + $0x68] sm:$0xff] %vm2993, %v2924
        %3008 = vst.msk [vmem:[#allocation5 + $0x70] sm:$0xff] %vm2993, %v2926
        %3009 = vst.msk [vmem:[#allocation5 + $0x78] sm:$0xff] %vm2993, %v2928
        %3010 = vst.msk [vmem:[#allocation5 + $0x80] sm:$0xff] %vm2993, %v2930
        %3011 = vst.msk [vmem:[#allocation5 + $0x88] sm:$0xff] %vm2993, %v2932
        %3012 = vst.msk [vmem:[#allocation5 + $0x90] sm:$0xff] %vm2993, %v2934
        %3013 = vst.msk [vmem:[#allocation5 + $0x98] sm:$0xff] %vm2993, %v2936
        %3014 = vst.msk [vmem:[#allocation5 + $0xa0] sm:$0xff] %vm2993, %v2938
        %3015 = vst.msk [vmem:[#allocation5 + $0xa8] sm:$0xff] %vm2993, %v2940
        %3016 = vst.msk [vmem:[#allocation5 + $0xb0] sm:$0xff] %vm2993, %v2942
        %3017 = vst.msk [vmem:[#allocation5 + $0xb8] sm:$0xff] %vm2993, %v2944
        %3018 = vst.msk [vmem:[#allocation5 + $0xc0] sm:$0xff] %vm2993, %v2946
        %3019 = vst.msk [vmem:[#allocation5 + $0xc8] sm:$0xff] %vm2993, %v2948
        %3020 = vst.msk [vmem:[#allocation5 + $0xd0] sm:$0xff] %vm2993, %v2950
        %3021 = vst.msk [vmem:[#allocation5 + $0xd8] sm:$0xff] %vm2993, %v2952
        %3022 = vst.msk [vmem:[#allocation5 + $0xe0] sm:$0xff] %vm2993, %v2954
        %3023 = vst.msk [vmem:[#allocation5 + $0xe8] sm:$0xff] %vm2993, %v2956
        %3024 = vst.msk [vmem:[#allocation5 + $0xf0] sm:$0xff] %vm2993, %v2958
        %3025 = vst.msk [vmem:[#allocation5 + $0xf8] sm:$0xff] %vm2993, %v2960
        %3028 = vrot.lane.b32.xlu0 %v2080, 48
        %v3029 = vpop.permute.xlu0 %3028
        %3030 = vrot.lane.b32.xlu0 %v2081, 48
        %v3031 = vpop.permute.xlu0 %3030
        %3032 = vrot.lane.b32.xlu0 %v2083, 48
        %v3033 = vpop.permute.xlu0 %3032
        %3034 = vrot.lane.b32.xlu0 %v2084, 48
        %v3035 = vpop.permute.xlu0 %3034
        %3036 = vrot.lane.b32.xlu0 %v2086, 48
        %v3037 = vpop.permute.xlu0 %3036
        %3038 = vrot.lane.b32.xlu0 %v2087, 48
        %v3039 = vpop.permute.xlu0 %3038
        %3040 = vrot.lane.b32.xlu0 %v2089, 48
        %v3041 = vpop.permute.xlu0 %3040
        %3042 = vrot.lane.b32.xlu0 %v2090, 48
        %v3043 = vpop.permute.xlu0 %3042
        %3044 = vrot.lane.b32.xlu0 %v2092, 48
        %v3045 = vpop.permute.xlu0 %3044
        %3046 = vrot.lane.b32.xlu0 %v2093, 48
        %v3047 = vpop.permute.xlu0 %3046
        %3048 = vrot.lane.b32.xlu0 %v2095, 48
        %v3049 = vpop.permute.xlu0 %3048
        %3050 = vrot.lane.b32.xlu0 %v2096, 48
        %v3051 = vpop.permute.xlu0 %3050
        %3052 = vrot.lane.b32.xlu0 %v2098, 48
        %v3053 = vpop.permute.xlu0 %3052
        %3054 = vrot.lane.b32.xlu0 %v2099, 48
        %v3055 = vpop.permute.xlu0 %3054
        %3056 = vrot.lane.b32.xlu0 %v2101, 48
        %v3057 = vpop.permute.xlu0 %3056
        %3058 = vrot.lane.b32.xlu0 %v2102, 48
        %v3059 = vpop.permute.xlu0 %3058
        %3060 = vrot.lane.b32.xlu0 %v2104, 48
        %v3061 = vpop.permute.xlu0 %3060
        %3062 = vrot.lane.b32.xlu0 %v2105, 48
        %v3063 = vpop.permute.xlu0 %3062
        %3064 = vrot.lane.b32.xlu0 %v2107, 48
        %v3065 = vpop.permute.xlu0 %3064
        %3066 = vrot.lane.b32.xlu0 %v2108, 48
        %v3067 = vpop.permute.xlu0 %3066
        %3068 = vrot.lane.b32.xlu0 %v2110, 48
        %v3069 = vpop.permute.xlu0 %3068
        %3070 = vrot.lane.b32.xlu0 %v2111, 48
        %v3071 = vpop.permute.xlu0 %3070
        %3072 = vrot.lane.b32.xlu0 %v2113, 48
        %v3073 = vpop.permute.xlu0 %3072
        %3074 = vrot.lane.b32.xlu0 %v2114, 48
        %v3075 = vpop.permute.xlu0 %3074
        %3076 = vrot.lane.b32.xlu0 %v2116, 48
        %v3077 = vpop.permute.xlu0 %3076
        %3078 = vrot.lane.b32.xlu0 %v2117, 48
        %v3079 = vpop.permute.xlu0 %3078
        %3080 = vrot.lane.b32.xlu0 %v2119, 48
        %v3081 = vpop.permute.xlu0 %3080
        %3082 = vrot.lane.b32.xlu0 %v2120, 48
        %v3083 = vpop.permute.xlu0 %3082
        %3084 = vrot.lane.b32.xlu0 %v2122, 48
        %v3085 = vpop.permute.xlu0 %3084
        %3086 = vrot.lane.b32.xlu0 %v2123, 48
        %v3087 = vpop.permute.xlu0 %3086
        %3088 = vrot.lane.b32.xlu0 %v2125, 48
        %v3089 = vpop.permute.xlu0 %3088
        %3090 = vrot.lane.b32.xlu0 %v2126, 48
        %v3091 = vpop.permute.xlu0 %3090
        %vm3124 = vcmask 458112
        %3125 = vst.msk [vmem:[#allocation5] sm:$0xff] %vm3124, %v3029
        %3126 = vst.msk [vmem:[#allocation5 + $0x8] sm:$0xff] %vm3124, %v3031
        %3127 = vst.msk [vmem:[#allocation5 + $0x10] sm:$0xff] %vm3124, %v3033
        %3128 = vst.msk [vmem:[#allocation5 + $0x18] sm:$0xff] %vm3124, %v3035
        %3129 = vst.msk [vmem:[#allocation5 + $0x20] sm:$0xff] %vm3124, %v3037
        %3130 = vst.msk [vmem:[#allocation5 + $0x28] sm:$0xff] %vm3124, %v3039
        %3131 = vst.msk [vmem:[#allocation5 + $0x30] sm:$0xff] %vm3124, %v3041
        %3132 = vst.msk [vmem:[#allocation5 + $0x38] sm:$0xff] %vm3124, %v3043
        %3133 = vst.msk [vmem:[#allocation5 + $0x40] sm:$0xff] %vm3124, %v3045
        %3134 = vst.msk [vmem:[#allocation5 + $0x48] sm:$0xff] %vm3124, %v3047
        %3135 = vst.msk [vmem:[#allocation5 + $0x50] sm:$0xff] %vm3124, %v3049
        %3136 = vst.msk [vmem:[#allocation5 + $0x58] sm:$0xff] %vm3124, %v3051
        %3137 = vst.msk [vmem:[#allocation5 + $0x60] sm:$0xff] %vm3124, %v3053
        %3138 = vst.msk [vmem:[#allocation5 + $0x68] sm:$0xff] %vm3124, %v3055
        %3139 = vst.msk [vmem:[#allocation5 + $0x70] sm:$0xff] %vm3124, %v3057
        %3140 = vst.msk [vmem:[#allocation5 + $0x78] sm:$0xff] %vm3124, %v3059
        %3141 = vst.msk [vmem:[#allocation5 + $0x80] sm:$0xff] %vm3124, %v3061
        %3142 = vst.msk [vmem:[#allocation5 + $0x88] sm:$0xff] %vm3124, %v3063
        %3143 = vst.msk [vmem:[#allocation5 + $0x90] sm:$0xff] %vm3124, %v3065
        %3144 = vst.msk [vmem:[#allocation5 + $0x98] sm:$0xff] %vm3124, %v3067
        %3145 = vst.msk [vmem:[#allocation5 + $0xa0] sm:$0xff] %vm3124, %v3069
        %3146 = vst.msk [vmem:[#allocation5 + $0xa8] sm:$0xff] %vm3124, %v3071
        %3147 = vst.msk [vmem:[#allocation5 + $0xb0] sm:$0xff] %vm3124, %v3073
        %3148 = vst.msk [vmem:[#allocation5 + $0xb8] sm:$0xff] %vm3124, %v3075
        %3149 = vst.msk [vmem:[#allocation5 + $0xc0] sm:$0xff] %vm3124, %v3077
        %3150 = vst.msk [vmem:[#allocation5 + $0xc8] sm:$0xff] %vm3124, %v3079
        %3151 = vst.msk [vmem:[#allocation5 + $0xd0] sm:$0xff] %vm3124, %v3081
        %3152 = vst.msk [vmem:[#allocation5 + $0xd8] sm:$0xff] %vm3124, %v3083
        %3153 = vst.msk [vmem:[#allocation5 + $0xe0] sm:$0xff] %vm3124, %v3085
        %3154 = vst.msk [vmem:[#allocation5 + $0xe8] sm:$0xff] %vm3124, %v3087
        %3155 = vst.msk [vmem:[#allocation5 + $0xf0] sm:$0xff] %vm3124, %v3089
        %3156 = vst.msk [vmem:[#allocation5 + $0xf8] sm:$0xff] %vm3124, %v3091
        %v3158 = vrot.slane %v2125, 1
        %v3159 = vrot.slane %v2126, 1
        %v3160 = vsel %vm478, %v3158, %v3159
        %v3161 = vrot.slane %v2127, 1
        %v3162 = vsel %vm478, %v3159, %v3161
        %3163 = vrot.lane.b32.xlu0 %v2220, 56
        %v3164 = vpop.permute.xlu0 %3163
        %3165 = vrot.lane.b32.xlu0 %v2222, 56
        %v3166 = vpop.permute.xlu0 %3165
        %3167 = vrot.lane.b32.xlu0 %v2225, 56
        %v3168 = vpop.permute.xlu0 %3167
        %3169 = vrot.lane.b32.xlu0 %v2227, 56
        %v3170 = vpop.permute.xlu0 %3169
        %3171 = vrot.lane.b32.xlu0 %v2230, 56
        %v3172 = vpop.permute.xlu0 %3171
        %3173 = vrot.lane.b32.xlu0 %v2232, 56
        %v3174 = vpop.permute.xlu0 %3173
        %3175 = vrot.lane.b32.xlu0 %v2235, 56
        %v3176 = vpop.permute.xlu0 %3175
        %3177 = vrot.lane.b32.xlu0 %v2237, 56
        %v3178 = vpop.permute.xlu0 %3177
        %3179 = vrot.lane.b32.xlu0 %v2240, 56
        %v3180 = vpop.permute.xlu0 %3179
        %3181 = vrot.lane.b32.xlu0 %v2242, 56
        %v3182 = vpop.permute.xlu0 %3181
        %3183 = vrot.lane.b32.xlu0 %v2245, 56
        %v3184 = vpop.permute.xlu0 %3183
        %3185 = vrot.lane.b32.xlu0 %v2247, 56
        %v3186 = vpop.permute.xlu0 %3185
        %3187 = vrot.lane.b32.xlu0 %v2250, 56
        %v3188 = vpop.permute.xlu0 %3187
        %3189 = vrot.lane.b32.xlu0 %v2252, 56
        %v3190 = vpop.permute.xlu0 %3189
        %3191 = vrot.lane.b32.xlu0 %v2255, 56
        %v3192 = vpop.permute.xlu0 %3191
        %3193 = vrot.lane.b32.xlu0 %v2257, 56
        %v3194 = vpop.permute.xlu0 %3193
        %3195 = vrot.lane.b32.xlu0 %v2260, 56
        %v3196 = vpop.permute.xlu0 %3195
        %3197 = vrot.lane.b32.xlu0 %v2262, 56
        %v3198 = vpop.permute.xlu0 %3197
        %3199 = vrot.lane.b32.xlu0 %v2265, 56
        %v3200 = vpop.permute.xlu0 %3199
        %3201 = vrot.lane.b32.xlu0 %v2267, 56
        %v3202 = vpop.permute.xlu0 %3201
        %3203 = vrot.lane.b32.xlu0 %v2270, 56
        %v3204 = vpop.permute.xlu0 %3203
        %3205 = vrot.lane.b32.xlu0 %v2272, 56
        %v3206 = vpop.permute.xlu0 %3205
        %3207 = vrot.lane.b32.xlu0 %v2275, 56
        %v3208 = vpop.permute.xlu0 %3207
        %3209 = vrot.lane.b32.xlu0 %v2277, 56
        %v3210 = vpop.permute.xlu0 %3209
        %3211 = vrot.lane.b32.xlu0 %v2280, 56
        %v3212 = vpop.permute.xlu0 %3211
        %3213 = vrot.lane.b32.xlu0 %v2282, 56
        %v3214 = vpop.permute.xlu0 %3213
        %3215 = vrot.lane.b32.xlu0 %v2285, 56
        %v3216 = vpop.permute.xlu0 %3215
        %3217 = vrot.lane.b32.xlu0 %v2287, 56
        %v3218 = vpop.permute.xlu0 %3217
        %3219 = vrot.lane.b32.xlu0 %v2760, 56
        %v3220 = vpop.permute.xlu0 %3219
        %3221 = vrot.lane.b32.xlu0 %v2762, 56
        %v3222 = vpop.permute.xlu0 %3221
        %3223 = vrot.lane.b32.xlu0 %v3160, 56
        %v3224 = vpop.permute.xlu0 %3223
        %3225 = vrot.lane.b32.xlu0 %v3162, 56
        %v3226 = vpop.permute.xlu0 %3225
        %vm3259 = vcmask 523712
        %3260 = vst.msk [vmem:[#allocation5] sm:$0xff] %vm3259, %v3164
        %3261 = vst.msk [vmem:[#allocation5 + $0x8] sm:$0xff] %vm3259, %v3166
        %3262 = vst.msk [vmem:[#allocation5 + $0x10] sm:$0xff] %vm3259, %v3168
        %3263 = vst.msk [vmem:[#allocation5 + $0x18] sm:$0xff] %vm3259, %v3170
        %3264 = vst.msk [vmem:[#allocation5 + $0x20] sm:$0xff] %vm3259, %v3172
        %3265 = vst.msk [vmem:[#allocation5 + $0x28] sm:$0xff] %vm3259, %v3174
        %3266 = vst.msk [vmem:[#allocation5 + $0x30] sm:$0xff] %vm3259, %v3176
        %3267 = vst.msk [vmem:[#allocation5 + $0x38] sm:$0xff] %vm3259, %v3178
        %3268 = vst.msk [vmem:[#allocation5 + $0x40] sm:$0xff] %vm3259, %v3180
        %3269 = vst.msk [vmem:[#allocation5 + $0x48] sm:$0xff] %vm3259, %v3182
        %3270 = vst.msk [vmem:[#allocation5 + $0x50] sm:$0xff] %vm3259, %v3184
        %3271 = vst.msk [vmem:[#allocation5 + $0x58] sm:$0xff] %vm3259, %v3186
        %3272 = vst.msk [vmem:[#allocation5 + $0x60] sm:$0xff] %vm3259, %v3188
        %3273 = vst.msk [vmem:[#allocation5 + $0x68] sm:$0xff] %vm3259, %v3190
        %3274 = vst.msk [vmem:[#allocation5 + $0x70] sm:$0xff] %vm3259, %v3192
        %3275 = vst.msk [vmem:[#allocation5 + $0x78] sm:$0xff] %vm3259, %v3194
        %3276 = vst.msk [vmem:[#allocation5 + $0x80] sm:$0xff] %vm3259, %v3196
        %3277 = vst.msk [vmem:[#allocation5 + $0x88] sm:$0xff] %vm3259, %v3198
        %3278 = vst.msk [vmem:[#allocation5 + $0x90] sm:$0xff] %vm3259, %v3200
        %3279 = vst.msk [vmem:[#allocation5 + $0x98] sm:$0xff] %vm3259, %v3202
        %3280 = vst.msk [vmem:[#allocation5 + $0xa0] sm:$0xff] %vm3259, %v3204
        %3281 = vst.msk [vmem:[#allocation5 + $0xa8] sm:$0xff] %vm3259, %v3206
        %3282 = vst.msk [vmem:[#allocation5 + $0xb0] sm:$0xff] %vm3259, %v3208
        %3283 = vst.msk [vmem:[#allocation5 + $0xb8] sm:$0xff] %vm3259, %v3210
        %3284 = vst.msk [vmem:[#allocation5 + $0xc0] sm:$0xff] %vm3259, %v3212
        %3285 = vst.msk [vmem:[#allocation5 + $0xc8] sm:$0xff] %vm3259, %v3214
        %3286 = vst.msk [vmem:[#allocation5 + $0xd0] sm:$0xff] %vm3259, %v3216
        %3287 = vst.msk [vmem:[#allocation5 + $0xd8] sm:$0xff] %vm3259, %v3218
        %3288 = vst.msk [vmem:[#allocation5 + $0xe0] sm:$0xff] %vm3259, %v3220
        %3289 = vst.msk [vmem:[#allocation5 + $0xe8] sm:$0xff] %vm3259, %v3222
        %3290 = vst.msk [vmem:[#allocation5 + $0xf0] sm:$0xff] %vm3259, %v3224
        %3291 = vst.msk [vmem:[#allocation5 + $0xf8] sm:$0xff] %vm3259, %v3226
        %v3292 = vrot.slane %v2125, 2
        %v3293 = vrot.slane %v2126, 2
        %v3294 = vsel %vm688, %v3292, %v3293
        %v3295 = vrot.slane %v2127, 2
        %v3296 = vsel %vm688, %v3293, %v3295
        %3297 = vrot.lane.b32.xlu0 %v2429, 64
        %v3298 = vpop.permute.xlu0 %3297
        %3299 = vrot.lane.b32.xlu0 %v2431, 64
        %v3300 = vpop.permute.xlu0 %3299
        %3301 = vrot.lane.b32.xlu0 %v2434, 64
        %v3302 = vpop.permute.xlu0 %3301
        %3303 = vrot.lane.b32.xlu0 %v2436, 64
        %v3304 = vpop.permute.xlu0 %3303
        %3305 = vrot.lane.b32.xlu0 %v2439, 64
        %v3306 = vpop.permute.xlu0 %3305
        %3307 = vrot.lane.b32.xlu0 %v2441, 64
        %v3308 = vpop.permute.xlu0 %3307
        %3309 = vrot.lane.b32.xlu0 %v2444, 64
        %v3310 = vpop.permute.xlu0 %3309
        %3311 = vrot.lane.b32.xlu0 %v2446, 64
        %v3312 = vpop.permute.xlu0 %3311
        %3313 = vrot.lane.b32.xlu0 %v2449, 64
        %v3314 = vpop.permute.xlu0 %3313
        %3315 = vrot.lane.b32.xlu0 %v2451, 64
        %v3316 = vpop.permute.xlu0 %3315
        %3317 = vrot.lane.b32.xlu0 %v2454, 64
        %v3318 = vpop.permute.xlu0 %3317
        %3319 = vrot.lane.b32.xlu0 %v2456, 64
        %v3320 = vpop.permute.xlu0 %3319
        %3321 = vrot.lane.b32.xlu0 %v2459, 64
        %v3322 = vpop.permute.xlu0 %3321
        %3323 = vrot.lane.b32.xlu0 %v2461, 64
        %v3324 = vpop.permute.xlu0 %3323
        %3325 = vrot.lane.b32.xlu0 %v2464, 64
        %v3326 = vpop.permute.xlu0 %3325
        %3327 = vrot.lane.b32.xlu0 %v2466, 64
        %v3328 = vpop.permute.xlu0 %3327
        %3329 = vrot.lane.b32.xlu0 %v2469, 64
        %v3330 = vpop.permute.xlu0 %3329
        %3331 = vrot.lane.b32.xlu0 %v2471, 64
        %v3332 = vpop.permute.xlu0 %3331
        %3333 = vrot.lane.b32.xlu0 %v2474, 64
        %v3334 = vpop.permute.xlu0 %3333
        %3335 = vrot.lane.b32.xlu0 %v2476, 64
        %v3336 = vpop.permute.xlu0 %3335
        %3337 = vrot.lane.b32.xlu0 %v2479, 64
        %v3338 = vpop.permute.xlu0 %3337
        %3339 = vrot.lane.b32.xlu0 %v2481, 64
        %v3340 = vpop.permute.xlu0 %3339
        %3341 = vrot.lane.b32.xlu0 %v2484, 64
        %v3342 = vpop.permute.xlu0 %3341
        %3343 = vrot.lane.b32.xlu0 %v2486, 64
        %v3344 = vpop.permute.xlu0 %3343
        %3345 = vrot.lane.b32.xlu0 %v2489, 64
        %v3346 = vpop.permute.xlu0 %3345
        %3347 = vrot.lane.b32.xlu0 %v2491, 64
        %v3348 = vpop.permute.xlu0 %3347
        %3349 = vrot.lane.b32.xlu0 %v2494, 64
        %v3350 = vpop.permute.xlu0 %3349
        %3351 = vrot.lane.b32.xlu0 %v2496, 64
        %v3352 = vpop.permute.xlu0 %3351
        %3353 = vrot.lane.b32.xlu0 %v2894, 64
        %v3354 = vpop.permute.xlu0 %3353
        %3355 = vrot.lane.b32.xlu0 %v2896, 64
        %v3356 = vpop.permute.xlu0 %3355
        %3357 = vrot.lane.b32.xlu0 %v3294, 64
        %v3358 = vpop.permute.xlu0 %3357
        %3359 = vrot.lane.b32.xlu0 %v3296, 64
        %v3360 = vpop.permute.xlu0 %3359
        %vm3393 = vcmask 589312
        %3394 = vst.msk [vmem:[#allocation5] sm:$0xff] %vm3393, %v3298
        %3395 = vst.msk [vmem:[#allocation5 + $0x8] sm:$0xff] %vm3393, %v3300
        %3396 = vst.msk [vmem:[#allocation5 + $0x10] sm:$0xff] %vm3393, %v3302
        %3397 = vst.msk [vmem:[#allocation5 + $0x18] sm:$0xff] %vm3393, %v3304
        %3398 = vst.msk [vmem:[#allocation5 + $0x20] sm:$0xff] %vm3393, %v3306
        %3399 = vst.msk [vmem:[#allocation5 + $0x28] sm:$0xff] %vm3393, %v3308
        %3400 = vst.msk [vmem:[#allocation5 + $0x30] sm:$0xff] %vm3393, %v3310
        %3401 = vst.msk [vmem:[#allocation5 + $0x38] sm:$0xff] %vm3393, %v3312
        %3402 = vst.msk [vmem:[#allocation5 + $0x40] sm:$0xff] %vm3393, %v3314
        %3403 = vst.msk [vmem:[#allocation5 + $0x48] sm:$0xff] %vm3393, %v3316
        %3404 = vst.msk [vmem:[#allocation5 + $0x50] sm:$0xff] %vm3393, %v3318
        %3405 = vst.msk [vmem:[#allocation5 + $0x58] sm:$0xff] %vm3393, %v3320
        %3406 = vst.msk [vmem:[#allocation5 + $0x60] sm:$0xff] %vm3393, %v3322
        %3407 = vst.msk [vmem:[#allocation5 + $0x68] sm:$0xff] %vm3393, %v3324
        %3408 = vst.msk [vmem:[#allocation5 + $0x70] sm:$0xff] %vm3393, %v3326
        %3409 = vst.msk [vmem:[#allocation5 + $0x78] sm:$0xff] %vm3393, %v3328
        %3410 = vst.msk [vmem:[#allocation5 + $0x80] sm:$0xff] %vm3393, %v3330
        %3411 = vst.msk [vmem:[#allocation5 + $0x88] sm:$0xff] %vm3393, %v3332
        %3412 = vst.msk [vmem:[#allocation5 + $0x90] sm:$0xff] %vm3393, %v3334
        %3413 = vst.msk [vmem:[#allocation5 + $0x98] sm:$0xff] %vm3393, %v3336
        %3414 = vst.msk [vmem:[#allocation5 + $0xa0] sm:$0xff] %vm3393, %v3338
        %3415 = vst.msk [vmem:[#allocation5 + $0xa8] sm:$0xff] %vm3393, %v3340
        %3416 = vst.msk [vmem:[#allocation5 + $0xb0] sm:$0xff] %vm3393, %v3342
        %3417 = vst.msk [vmem:[#allocation5 + $0xb8] sm:$0xff] %vm3393, %v3344
        %3418 = vst.msk [vmem:[#allocation5 + $0xc0] sm:$0xff] %vm3393, %v3346
        %3419 = vst.msk [vmem:[#allocation5 + $0xc8] sm:$0xff] %vm3393, %v3348
        %3420 = vst.msk [vmem:[#allocation5 + $0xd0] sm:$0xff] %vm3393, %v3350
        %3421 = vst.msk [vmem:[#allocation5 + $0xd8] sm:$0xff] %vm3393, %v3352
        %3422 = vst.msk [vmem:[#allocation5 + $0xe0] sm:$0xff] %vm3393, %v3354
        %3423 = vst.msk [vmem:[#allocation5 + $0xe8] sm:$0xff] %vm3393, %v3356
        %3424 = vst.msk [vmem:[#allocation5 + $0xf0] sm:$0xff] %vm3393, %v3358
        %3425 = vst.msk [vmem:[#allocation5 + $0xf8] sm:$0xff] %vm3393, %v3360
        %v3426 = vld [vmem:[#allocation5] sm:$0xff]
        %v3427 = vld [vmem:[#allocation5 + $0x8] sm:$0xff]
        %v3428 = vld [vmem:[#allocation5 + $0x10] sm:$0xff]
        %v3429 = vld [vmem:[#allocation5 + $0x18] sm:$0xff]
        %v3430 = vld [vmem:[#allocation5 + $0x20] sm:$0xff]
        %v3431 = vld [vmem:[#allocation5 + $0x28] sm:$0xff]
        %v3432 = vld [vmem:[#allocation5 + $0x30] sm:$0xff]
        %v3433 = vld [vmem:[#allocation5 + $0x38] sm:$0xff]
        %v3434 = vld [vmem:[#allocation5 + $0x40] sm:$0xff]
        %v3435 = vld [vmem:[#allocation5 + $0x48] sm:$0xff]
        %v3436 = vld [vmem:[#allocation5 + $0x50] sm:$0xff]
        %v3437 = vld [vmem:[#allocation5 + $0x58] sm:$0xff]
        %v3438 = vld [vmem:[#allocation5 + $0x60] sm:$0xff]
        %v3439 = vld [vmem:[#allocation5 + $0x68] sm:$0xff]
        %v3440 = vld [vmem:[#allocation5 + $0x70] sm:$0xff]
        %v3441 = vld [vmem:[#allocation5 + $0x78] sm:$0xff]
        %v3442 = vld [vmem:[#allocation5 + $0x80] sm:$0xff]
        %v3443 = vld [vmem:[#allocation5 + $0x88] sm:$0xff]
        %v3444 = vld [vmem:[#allocation5 + $0x90] sm:$0xff]
        %v3445 = vld [vmem:[#allocation5 + $0x98] sm:$0xff]
        %v3446 = vld [vmem:[#allocation5 + $0xa0] sm:$0xff]
        %v3447 = vld [vmem:[#allocation5 + $0xa8] sm:$0xff]
        %v3448 = vld [vmem:[#allocation5 + $0xb0] sm:$0xff]
        %v3449 = vld [vmem:[#allocation5 + $0xb8] sm:$0xff]
        %v3450 = vld [vmem:[#allocation5 + $0xc0] sm:$0xff]
        %v3451 = vld [vmem:[#allocation5 + $0xc8] sm:$0xff]
        %v3452 = vld [vmem:[#allocation5 + $0xd0] sm:$0xff]
        %v3453 = vld [vmem:[#allocation5 + $0xd8] sm:$0xff]
        %v3454 = vld [vmem:[#allocation5 + $0xe0] sm:$0xff]
        %v3455 = vld [vmem:[#allocation5 + $0xe8] sm:$0xff]
        %v3456 = vld [vmem:[#allocation5 + $0xf0] sm:$0xff]
        %v3457 = vld [vmem:[#allocation5 + $0xf8] sm:$0xff]
        %v3458 = vld [vmem:[%s3] sm:$0xff]
        %v3459 = vld [vmem:[%s3 + $0x8] sm:$0xff]
        %v3460 = vld [vmem:[%s3 + $0x10] sm:$0xff]
        %v3461 = vld [vmem:[%s3 + $0x18] sm:$0xff]
        %v3462 = vld [vmem:[%s3 + $0x20] sm:$0xff]
        %v3463 = vld [vmem:[%s3 + $0x28] sm:$0xff]
        %v3464 = vld [vmem:[%s3 + $0x30] sm:$0xff]
        %v3465 = vld [vmem:[%s3 + $0x38] sm:$0xff]
        %v3466 = vld [vmem:[%s3 + $0x40] sm:$0xff]
        %v3467 = vld [vmem:[%s4] sm:$0x1]
        %v3469 = vperm.slane %v3467, 0
        %vm3471 = vcmask 588800
        %v3473 = vsel %vm3471, %v3426, 0
        %v3476 = vsel %vm3471, %v3427, 0
        %v3479 = vsel %vm3471, %v3428, 0
        %v3482 = vsel %vm3471, %v3429, 0
        %v3485 = vsel %vm3471, %v3430, 0
        %v3488 = vsel %vm3471, %v3431, 0
        %v3491 = vsel %vm3471, %v3432, 0
        %v3494 = vsel %vm3471, %v3433, 0
        %v3497 = vsel %vm3471, %v3434, 0
        %v3500 = vsel %vm3471, %v3435, 0
        %v3503 = vsel %vm3471, %v3436, 0
        %v3506 = vsel %vm3471, %v3437, 0
        %v3509 = vsel %vm3471, %v3438, 0
        %v3512 = vsel %vm3471, %v3439, 0
        %v3515 = vsel %vm3471, %v3440, 0
        %v3518 = vsel %vm3471, %v3441, 0
        %v3521 = vsel %vm3471, %v3442, 0
        %v3524 = vsel %vm3471, %v3443, 0
        %v3527 = vsel %vm3471, %v3444, 0
        %v3530 = vsel %vm3471, %v3445, 0
        %v3533 = vsel %vm3471, %v3446, 0
        %v3536 = vsel %vm3471, %v3447, 0
        %v3539 = vsel %vm3471, %v3448, 0
        %v3542 = vsel %vm3471, %v3449, 0
        %v3545 = vsel %vm3471, %v3450, 0
        %v3548 = vsel %vm3471, %v3451, 0
        %v3551 = vsel %vm3471, %v3452, 0
        %v3554 = vsel %vm3471, %v3453, 0
        %v3557 = vsel %vm3471, %v3454, 0
        %v3560 = vsel %vm3471, %v3455, 0
        %v3563 = vsel %vm3471, %v3456, 0
        %v3566 = vsel %vm3471, %v3457, 0
        %3568 = vmatpush.msra.mxu0 0.0
        %3569 = vmatpush.msra.mxu0 0.0
        %3570 = vmatpush.msra.mxu0 0.0
        %3571 = vmatpush.msra.mxu0 0.0
        %3572 = vmatpush.msra.mxu0 0.0
        %3573 = vmatpush.msra.mxu0 0.0
        %3574 = vmatpush.msra.mxu0 0.0
        %3575 = vmatpush.msra.mxu0 %v3466
        %3576 = vmatpush.msra.mxu0 %v3465
        %3577 = vmatpush.msra.mxu0 %v3464
        %3578 = vmatpush.msra.mxu0 %v3463
        %3579 = vmatpush.msra.mxu0 %v3462
        %3580 = vmatpush.msra.mxu0 %v3461
        %3581 = vmatpush.msra.mxu0 %v3460
        %3582 = vmatpush.msra.mxu0 %v3459
        %3583 = vmatpush.msra.mxu0 %v3458
        %3584 = vmatmul.f32.gmra.mxu0 %v3473
        %v3585 = vpop.f32.mrf.mxu0
        %v3586 = vadd.f32 %v3469, %v3585
        %3587 = vmatmul.f32.gmra.mxu0 %v3476
        %v3588 = vpop.f32.mrf.mxu0
        %v3589 = vadd.f32 %v3469, %v3588
        %3590 = vmatmul.f32.gmra.mxu0 %v3479
        %v3591 = vpop.f32.mrf.mxu0
        %v3592 = vadd.f32 %v3469, %v3591
        %3593 = vmatmul.f32.gmra.mxu0 %v3482
        %v3594 = vpop.f32.mrf.mxu0
        %v3595 = vadd.f32 %v3469, %v3594
        %3596 = vmatmul.f32.gmra.mxu0 %v3485
        %v3597 = vpop.f32.mrf.mxu0
        %v3598 = vadd.f32 %v3469, %v3597
        %3599 = vmatmul.f32.gmra.mxu0 %v3488
        %v3600 = vpop.f32.mrf.mxu0
        %v3601 = vadd.f32 %v3469, %v3600
        %3602 = vmatmul.f32.gmra.mxu0 %v3491
        %v3603 = vpop.f32.mrf.mxu0
        %v3604 = vadd.f32 %v3469, %v3603
        %3605 = vmatmul.f32.gmra.mxu0 %v3494
        %v3606 = vpop.f32.mrf.mxu0
        %v3607 = vadd.f32 %v3469, %v3606
        %3608 = vmatmul.f32.gmra.mxu0 %v3497
        %v3609 = vpop.f32.mrf.mxu0
        %v3610 = vadd.f32 %v3469, %v3609
        %3611 = vmatmul.f32.gmra.mxu0 %v3500
        %v3612 = vpop.f32.mrf.mxu0
        %v3613 = vadd.f32 %v3469, %v3612
        %3614 = vmatmul.f32.gmra.mxu0 %v3503
        %v3615 = vpop.f32.mrf.mxu0
        %v3616 = vadd.f32 %v3469, %v3615
        %3617 = vmatmul.f32.gmra.mxu0 %v3506
        %v3618 = vpop.f32.mrf.mxu0
        %v3619 = vadd.f32 %v3469, %v3618
        %3620 = vmatmul.f32.gmra.mxu0 %v3509
        %v3621 = vpop.f32.mrf.mxu0
        %v3622 = vadd.f32 %v3469, %v3621
        %3623 = vmatmul.f32.gmra.mxu0 %v3512
        %v3624 = vpop.f32.mrf.mxu0
        %v3625 = vadd.f32 %v3469, %v3624
        %3626 = vmatmul.f32.gmra.mxu0 %v3515
        %v3627 = vpop.f32.mrf.mxu0
        %v3628 = vadd.f32 %v3469, %v3627
        %3629 = vmatmul.f32.gmra.mxu0 %v3518
        %v3630 = vpop.f32.mrf.mxu0
        %v3631 = vadd.f32 %v3469, %v3630
        %3632 = vmatmul.f32.gmra.mxu0 %v3521
        %v3633 = vpop.f32.mrf.mxu0
        %v3634 = vadd.f32 %v3469, %v3633
        %3635 = vmatmul.f32.gmra.mxu0 %v3524
        %v3636 = vpop.f32.mrf.mxu0
        %v3637 = vadd.f32 %v3469, %v3636
        %3638 = vmatmul.f32.gmra.mxu0 %v3527
        %v3639 = vpop.f32.mrf.mxu0
        %v3640 = vadd.f32 %v3469, %v3639
        %3641 = vmatmul.f32.gmra.mxu0 %v3530
        %v3642 = vpop.f32.mrf.mxu0
        %v3643 = vadd.f32 %v3469, %v3642
        %3644 = vmatmul.f32.gmra.mxu0 %v3533
        %v3645 = vpop.f32.mrf.mxu0
        %v3646 = vadd.f32 %v3469, %v3645
        %3647 = vmatmul.f32.gmra.mxu0 %v3536
        %v3648 = vpop.f32.mrf.mxu0
        %v3649 = vadd.f32 %v3469, %v3648
        %3650 = vmatmul.f32.gmra.mxu0 %v3539
        %v3651 = vpop.f32.mrf.mxu0
        %v3652 = vadd.f32 %v3469, %v3651
        %3653 = vmatmul.f32.gmra.mxu0 %v3542
        %v3654 = vpop.f32.mrf.mxu0
        %v3655 = vadd.f32 %v3469, %v3654
        %3656 = vmatmul.f32.gmra.mxu0 %v3545
        %v3657 = vpop.f32.mrf.mxu0
        %v3658 = vadd.f32 %v3469, %v3657
        %3659 = vmatmul.f32.gmra.mxu0 %v3548
        %v3660 = vpop.f32.mrf.mxu0
        %v3661 = vadd.f32 %v3469, %v3660
        %3662 = vmatmul.f32.gmra.mxu0 %v3551
        %v3663 = vpop.f32.mrf.mxu0
        %v3664 = vadd.f32 %v3469, %v3663
        %3665 = vmatmul.f32.gmra.mxu0 %v3554
        %v3666 = vpop.f32.mrf.mxu0
        %v3667 = vadd.f32 %v3469, %v3666
        %3668 = vmatmul.f32.gmra.mxu0 %v3557
        %v3669 = vpop.f32.mrf.mxu0
        %v3670 = vadd.f32 %v3469, %v3669
        %3671 = vmatmul.f32.gmra.mxu0 %v3560
        %v3672 = vpop.f32.mrf.mxu0
        %v3673 = vadd.f32 %v3469, %v3672
        %3674 = vmatmul.f32.gmra.mxu0 %v3563
        %v3675 = vpop.f32.mrf.mxu0
        %v3676 = vadd.f32 %v3469, %v3675
        %3677 = vmatmul.f32.gmra.mxu0 %v3566
        %v3678 = vpop.f32.mrf.mxu0
        %v3679 = vadd.f32 %v3469, %v3678
        %3680 = vdwg.mxu0
        %v3681 = vmax.f32 %v3586, 0.0
        %v3682 = vmax.f32 %v3589, 0.0
        %v3683 = vmax.f32 %v3592, 0.0
        %v3684 = vmax.f32 %v3595, 0.0
        %v3685 = vmax.f32 %v3598, 0.0
        %v3686 = vmax.f32 %v3601, 0.0
        %v3687 = vmax.f32 %v3604, 0.0
        %v3688 = vmax.f32 %v3607, 0.0
        %v3689 = vmax.f32 %v3610, 0.0
        %v3690 = vmax.f32 %v3613, 0.0
        %v3691 = vmax.f32 %v3616, 0.0
        %v3692 = vmax.f32 %v3619, 0.0
        %v3693 = vmax.f32 %v3622, 0.0
        %v3694 = vmax.f32 %v3625, 0.0
        %v3695 = vmax.f32 %v3628, 0.0
        %v3696 = vmax.f32 %v3631, 0.0
        %v3697 = vmax.f32 %v3634, 0.0
        %v3698 = vmax.f32 %v3637, 0.0
        %v3699 = vmax.f32 %v3640, 0.0
        %v3700 = vmax.f32 %v3643, 0.0
        %v3701 = vmax.f32 %v3646, 0.0
        %v3702 = vmax.f32 %v3649, 0.0
        %v3703 = vmax.f32 %v3652, 0.0
        %v3704 = vmax.f32 %v3655, 0.0
        %v3705 = vmax.f32 %v3658, 0.0
        %v3706 = vmax.f32 %v3661, 0.0
        %v3707 = vmax.f32 %v3664, 0.0
        %v3708 = vmax.f32 %v3667, 0.0
        %v3709 = vmax.f32 %v3670, 0.0
        %v3710 = vmax.f32 %v3673, 0.0
        %v3711 = vmax.f32 %v3676, 0.0
        %v3712 = vmax.f32 %v3679, 0.0
        %v3729 = vrot.slane %v3683, 7
        %vm3730 = vcmask 1041409
        %v3731 = vsel %vm3730, %v3729, %v3681
        %v3732 = vrot.slane %v3685, 6
        %vm3733 = vcmask 1042434
        %v3734 = vsel %vm3733, %v3732, %v3731
        %v3735 = vrot.slane %v3687, 5
        %vm3736 = vcmask 1043459
        %v3737 = vsel %vm3736, %v3735, %v3734
        %v3738 = vrot.slane %v3689, 4
        %vm3739 = vcmask 1044484
        %v3740 = vsel %vm3739, %v3738, %v3737
        %v3741 = vrot.slane %v3691, 3
        %vm3742 = vcmask 1045509
        %v3743 = vsel %vm3742, %v3741, %v3740
        %v3744 = vrot.slane %v3693, 2
        %vm3745 = vcmask 1046534
        %v3746 = vsel %vm3745, %v3744, %v3743
        %v3747 = vrot.slane %v3695, 1
        %vm3748 = vcmask 1047559
        %v3749 = vsel %vm3748, %v3747, %v3746
        %v3750 = vrot.slane %v3699, 7
        %v3751 = vsel %vm3730, %v3750, %v3697
        %v3752 = vrot.slane %v3701, 6
        %v3753 = vsel %vm3733, %v3752, %v3751
        %v3754 = vrot.slane %v3703, 5
        %v3755 = vsel %vm3736, %v3754, %v3753
        %v3756 = vrot.slane %v3705, 4
        %v3757 = vsel %vm3739, %v3756, %v3755
        %v3758 = vrot.slane %v3707, 3
        %v3759 = vsel %vm3742, %v3758, %v3757
        %v3760 = vrot.slane %v3709, 2
        %v3761 = vsel %vm3745, %v3760, %v3759
        %v3762 = vrot.slane %v3711, 1
        %v3763 = vsel %vm3748, %v3762, %v3761
        %3766 = vst.msk [vmem:[%s217] sm:$0xff] %vm1985, %v3749
        %3767 = vst.msk [vmem:[%s217 + $0x8] sm:$0xff] %vm1985, %v3763
        %v3768 = vsel %vm3733, %v3729, %v3681
        %v3769 = vsel %vm3736, %v3732, %v3768
        %v3770 = vsel %vm3739, %v3735, %v3769
        %v3771 = vsel %vm3742, %v3738, %v3770
        %v3772 = vsel %vm3745, %v3741, %v3771
        %v3773 = vsel %vm3748, %v3744, %v3772
        %v3774 = vsel %vm3730, %v3697, %v3747
        %v3775 = vsel %vm3733, %v3750, %v3774
        %v3776 = vsel %vm3736, %v3752, %v3775
        %v3777 = vsel %vm3739, %v3754, %v3776
        %v3778 = vsel %vm3742, %v3756, %v3777
        %v3779 = vsel %vm3745, %v3758, %v3778
        %v3780 = vsel %vm3748, %v3760, %v3779
        %3781 = vrot.lane.b32.xlu0 %v3773, 8
        %v3782 = vpop.permute.xlu0 %3781
        %3783 = vrot.lane.b32.xlu0 %v3780, 8
        %v3784 = vpop.permute.xlu0 %3783
        %3785 = vrot.lane.b32.xlu0 %v3762, 8
        %v3786 = vpop.permute.xlu0 %3785
        %vm3790 = vcmask 130113
        %3791 = vst.msk [vmem:[%s217 - $0x1] sm:$0xfe] %vm3790, %v3782
        %3792 = vst.msk [vmem:[%s217 + $0x7] sm:$0xff] %vm2384, %v3784
        %vm3793 = vcmask 122944
        %3794 = vst.msk [vmem:[%s217 + $0xf] sm:$0x1] %vm3793, %v3786
        %v3795 = vsel %vm3736, %v3729, %v3681
        %v3796 = vsel %vm3739, %v3732, %v3795
        %v3797 = vsel %vm3742, %v3735, %v3796
        %v3798 = vsel %vm3745, %v3738, %v3797
        %v3799 = vsel %vm3748, %v3741, %v3798
        %v3800 = vsel %vm3730, %v3747, %v3744
        %v3801 = vsel %vm3733, %v3697, %v3800
        %v3802 = vsel %vm3736, %v3750, %v3801
        %v3803 = vsel %vm3739, %v3752, %v3802
        %v3804 = vsel %vm3742, %v3754, %v3803
        %v3805 = vsel %vm3745, %v3756, %v3804
        %v3806 = vsel %vm3748, %v3758, %v3805
        %v3807 = vsel %vm3730, %v3762, %v3760
        %3808 = vrot.lane.b32.xlu0 %v3799, 16
        %v3809 = vpop.permute.xlu0 %3808
        %3810 = vrot.lane.b32.xlu0 %v3806, 16
        %v3811 = vpop.permute.xlu0 %3810
        %3812 = vrot.lane.b32.xlu0 %v3807, 16
        %v3813 = vpop.permute.xlu0 %3812
        %vm3817 = vcmask 195714
        %3818 = vst.msk [vmem:[%s217 - $0x2] sm:$0xfc] %vm3817, %v3809
        %3819 = vst.msk [vmem:[%s217 + $0x6] sm:$0xff] %vm2593, %v3811
        %vm3820 = vcmask 189568
        %3821 = vst.msk [vmem:[%s217 + $0xe] sm:$0x3] %vm3820, %v3813
        %v3822 = vsel %vm3739, %v3729, %v3681
        %v3823 = vsel %vm3742, %v3732, %v3822
        %v3824 = vsel %vm3745, %v3735, %v3823
        %v3825 = vsel %vm3748, %v3738, %v3824
        %v3826 = vsel %vm3730, %v3744, %v3741
        %v3827 = vsel %vm3733, %v3747, %v3826
        %v3828 = vsel %vm3736, %v3697, %v3827
        %v3829 = vsel %vm3739, %v3750, %v3828
        %v3830 = vsel %vm3742, %v3752, %v3829
        %v3831 = vsel %vm3745, %v3754, %v3830
        %v3832 = vsel %vm3748, %v3756, %v3831
        %v3833 = vsel %vm3730, %v3760, %v3758
        %v3834 = vsel %vm3733, %v3762, %v3833
        %3835 = vrot.lane.b32.xlu0 %v3825, 24
        %v3836 = vpop.permute.xlu0 %3835
        %3837 = vrot.lane.b32.xlu0 %v3832, 24
        %v3838 = vpop.permute.xlu0 %3837
        %3839 = vrot.lane.b32.xlu0 %v3834, 24
        %v3840 = vpop.permute.xlu0 %3839
        %vm3844 = vcmask 261315
        %3845 = vst.msk [vmem:[%s217 - $0x3] sm:$0xf8] %vm3844, %v3836
        %3846 = vst.msk [vmem:[%s217 + $0x5] sm:$0xff] %vm2724, %v3838
        %vm3847 = vcmask 256192
        %3848 = vst.msk [vmem:[%s217 + $0xd] sm:$0x7] %vm3847, %v3840
        %v3849 = vsel %vm3742, %v3729, %v3681
        %v3850 = vsel %vm3745, %v3732, %v3849
        %v3851 = vsel %vm3748, %v3735, %v3850
        %v3852 = vsel %vm3730, %v3741, %v3738
        %v3853 = vsel %vm3733, %v3744, %v3852
        %v3854 = vsel %vm3736, %v3747, %v3853
        %v3855 = vsel %vm3739, %v3697, %v3854
        %v3856 = vsel %vm3742, %v3750, %v3855
        %v3857 = vsel %vm3745, %v3752, %v3856
        %v3858 = vsel %vm3748, %v3754, %v3857
        %v3859 = vsel %vm3730, %v3758, %v3756
        %v3860 = vsel %vm3733, %v3760, %v3859
        %v3861 = vsel %vm3736, %v3762, %v3860
        %3862 = vrot.lane.b32.xlu0 %v3851, 32
        %v3863 = vpop.permute.xlu0 %3862
        %3864 = vrot.lane.b32.xlu0 %v3858, 32
        %v3865 = vpop.permute.xlu0 %3864
        %3866 = vrot.lane.b32.xlu0 %v3861, 32
        %v3867 = vpop.permute.xlu0 %3866
        %vm3871 = vcmask 326916
        %3872 = vst.msk [vmem:[%s217 - $0x4] sm:$0xf0] %vm3871, %v3863
        %3873 = vst.msk [vmem:[%s217 + $0x4] sm:$0xff] %vm2859, %v3865
        %vm3874 = vcmask 322816
        %3875 = vst.msk [vmem:[%s217 + $0xc] sm:$0xf] %vm3874, %v3867
        %v3876 = vsel %vm3745, %v3729, %v3681
        %v3877 = vsel %vm3748, %v3732, %v3876
        %v3878 = vsel %vm3730, %v3738, %v3735
        %v3879 = vsel %vm3733, %v3741, %v3878
        %v3880 = vsel %vm3736, %v3744, %v3879
        %v3881 = vsel %vm3739, %v3747, %v3880
        %v3882 = vsel %vm3742, %v3697, %v3881
        %v3883 = vsel %vm3745, %v3750, %v3882
        %v3884 = vsel %vm3748, %v3752, %v3883
        %v3885 = vsel %vm3730, %v3756, %v3754
        %v3886 = vsel %vm3733, %v3758, %v3885
        %v3887 = vsel %vm3736, %v3760, %v3886
        %v3888 = vsel %vm3739, %v3762, %v3887
        %3889 = vrot.lane.b32.xlu0 %v3877, 40
        %v3890 = vpop.permute.xlu0 %3889
        %3891 = vrot.lane.b32.xlu0 %v3884, 40
        %v3892 = vpop.permute.xlu0 %3891
        %3893 = vrot.lane.b32.xlu0 %v3888, 40
        %v3894 = vpop.permute.xlu0 %3893
        %vm3898 = vcmask 392517
        %3899 = vst.msk [vmem:[%s217 - $0x5] sm:$0xe0] %vm3898, %v3890
        %3900 = vst.msk [vmem:[%s217 + $0x3] sm:$0xff] %vm2993, %v3892
        %vm3901 = vcmask 389440
        %3902 = vst.msk [vmem:[%s217 + $0xb] sm:$0x1f] %vm3901, %v3894
        %v3903 = vsel %vm3748, %v3729, %v3681
        %v3904 = vsel %vm3730, %v3735, %v3732
        %v3905 = vsel %vm3733, %v3738, %v3904
        %v3906 = vsel %vm3736, %v3741, %v3905
        %v3907 = vsel %vm3739, %v3744, %v3906
        %v3908 = vsel %vm3742, %v3747, %v3907
        %v3909 = vsel %vm3745, %v3697, %v3908
        %v3910 = vsel %vm3748, %v3750, %v3909
        %v3911 = vsel %vm3730, %v3754, %v3752
        %v3912 = vsel %vm3733, %v3756, %v3911
        %v3913 = vsel %vm3736, %v3758, %v3912
        %v3914 = vsel %vm3739, %v3760, %v3913
        %v3915 = vsel %vm3742, %v3762, %v3914
        %3916 = vrot.lane.b32.xlu0 %v3903, 48
        %v3917 = vpop.permute.xlu0 %3916
        %3918 = vrot.lane.b32.xlu0 %v3910, 48
        %v3919 = vpop.permute.xlu0 %3918
        %3920 = vrot.lane.b32.xlu0 %v3915, 48
        %v3921 = vpop.permute.xlu0 %3920
        %vm3925 = vcmask 458118
        %3926 = vst.msk [vmem:[%s217 - $0x6] sm:$0xc0] %vm3925, %v3917
        %3927 = vst.msk [vmem:[%s217 + $0x2] sm:$0xff] %vm3124, %v3919
        %vm3928 = vcmask 456064
        %3929 = vst.msk [vmem:[%s217 + $0xa] sm:$0x3f] %vm3928, %v3921
        %v3930 = vsel %vm3730, %v3732, %v3729
        %v3931 = vsel %vm3733, %v3735, %v3930
        %v3932 = vsel %vm3736, %v3738, %v3931
        %v3933 = vsel %vm3739, %v3741, %v3932
        %v3934 = vsel %vm3742, %v3744, %v3933
        %v3935 = vsel %vm3745, %v3747, %v3934
        %v3936 = vsel %vm3748, %v3697, %v3935
        %v3937 = vsel %vm3730, %v3752, %v3750
        %v3938 = vsel %vm3733, %v3754, %v3937
        %v3939 = vsel %vm3736, %v3756, %v3938
        %v3940 = vsel %vm3739, %v3758, %v3939
        %v3941 = vsel %vm3742, %v3760, %v3940
        %v3942 = vsel %vm3745, %v3762, %v3941
        %3943 = vrot.lane.b32.xlu0 %v3681, 56
        %v3944 = vpop.permute.xlu0 %3943
        %3945 = vrot.lane.b32.xlu0 %v3936, 56
        %v3946 = vpop.permute.xlu0 %3945
        %3947 = vrot.lane.b32.xlu0 %v3942, 56
        %v3948 = vpop.permute.xlu0 %3947
        %vm3952 = vcmask 523719
        %3953 = vst.msk [vmem:[%s217 - $0x7] sm:$0x80] %vm3952, %v3944
        %3954 = vst.msk [vmem:[%s217 + $0x1] sm:$0xff] %vm3259, %v3946
        %vm3955 = vcmask 522688
        %3956 = vst.msk [vmem:[%s217 + $0x9] sm:$0x7f] %vm3955, %v3948
        %v3973 = vrot.slane %v3684, 7
        %v3974 = vsel %vm3730, %v3973, %v3682
        %v3975 = vrot.slane %v3686, 6
        %v3976 = vsel %vm3733, %v3975, %v3974
        %v3977 = vrot.slane %v3688, 5
        %v3978 = vsel %vm3736, %v3977, %v3976
        %v3979 = vrot.slane %v3690, 4
        %v3980 = vsel %vm3739, %v3979, %v3978
        %v3981 = vrot.slane %v3692, 3
        %v3982 = vsel %vm3742, %v3981, %v3980
        %v3983 = vrot.slane %v3694, 2
        %v3984 = vsel %vm3745, %v3983, %v3982
        %v3985 = vrot.slane %v3696, 1
        %v3986 = vsel %vm3748, %v3985, %v3984
        %v3987 = vrot.slane %v3700, 7
        %v3988 = vsel %vm3730, %v3987, %v3698
        %v3989 = vrot.slane %v3702, 6
        %v3990 = vsel %vm3733, %v3989, %v3988
        %v3991 = vrot.slane %v3704, 5
        %v3992 = vsel %vm3736, %v3991, %v3990
        %v3993 = vrot.slane %v3706, 4
        %v3994 = vsel %vm3739, %v3993, %v3992
        %v3995 = vrot.slane %v3708, 3
        %v3996 = vsel %vm3742, %v3995, %v3994
        %v3997 = vrot.slane %v3710, 2
        %v3998 = vsel %vm3745, %v3997, %v3996
        %v3999 = vrot.slane %v3712, 1
        %v4000 = vsel %vm3748, %v3999, %v3998
        %4001 = vrot.lane.b32.xlu0 %v3986, 64
        %v4002 = vpop.permute.xlu0 %4001
        %4003 = vrot.lane.b32.xlu0 %v4000, 64
        %v4004 = vpop.permute.xlu0 %4003
        %4007 = vst.msk [vmem:[%s217] sm:$0xff] %vm3393, %v4002
        %4008 = vst.msk [vmem:[%s217 + $0x8] sm:$0xff] %vm3393, %v4004
        %v4009 = vsel %vm3733, %v3973, %v3682
        %v4010 = vsel %vm3736, %v3975, %v4009
        %v4011 = vsel %vm3739, %v3977, %v4010
        %v4012 = vsel %vm3742, %v3979, %v4011
        %v4013 = vsel %vm3745, %v3981, %v4012
        %v4014 = vsel %vm3748, %v3983, %v4013
        %v4015 = vsel %vm3730, %v3698, %v3985
        %v4016 = vsel %vm3733, %v3987, %v4015
        %v4017 = vsel %vm3736, %v3989, %v4016
        %v4018 = vsel %vm3739, %v3991, %v4017
        %v4019 = vsel %vm3742, %v3993, %v4018
        %v4020 = vsel %vm3745, %v3995, %v4019
        %v4021 = vsel %vm3748, %v3997, %v4020
        %4022 = vrot.lane.b32.xlu0 %v4014, 72
        %v4023 = vpop.permute.xlu0 %4022
        %4024 = vrot.lane.b32.xlu0 %v4021, 72
        %v4025 = vpop.permute.xlu0 %4024
        %4026 = vrot.lane.b32.xlu0 %v3999, 72
        %v4027 = vpop.permute.xlu0 %4026
        %vm4031 = vcmask 654913
        %4032 = vst.msk [vmem:[%s217 - $0x1] sm:$0xfe] %vm4031, %v4023
        %vm4033 = vcmask 654912
        %4034 = vst.msk [vmem:[%s217 + $0x7] sm:$0xff] %vm4033, %v4025
        %vm4035 = vcmask 647744
        %4036 = vst.msk [vmem:[%s217 + $0xf] sm:$0x1] %vm4035, %v4027
        %v4037 = vsel %vm3736, %v3973, %v3682
        %v4038 = vsel %vm3739, %v3975, %v4037
        %v4039 = vsel %vm3742, %v3977, %v4038
        %v4040 = vsel %vm3745, %v3979, %v4039
        %v4041 = vsel %vm3748, %v3981, %v4040
        %v4042 = vsel %vm3730, %v3985, %v3983
        %v4043 = vsel %vm3733, %v3698, %v4042
        %v4044 = vsel %vm3736, %v3987, %v4043
        %v4045 = vsel %vm3739, %v3989, %v4044
        %v4046 = vsel %vm3742, %v3991, %v4045
        %v4047 = vsel %vm3745, %v3993, %v4046
        %v4048 = vsel %vm3748, %v3995, %v4047
        %v4049 = vsel %vm3730, %v3999, %v3997
        %4050 = vrot.lane.b32.xlu0 %v4041, 80
        %v4051 = vpop.permute.xlu0 %4050
        %4052 = vrot.lane.b32.xlu0 %v4048, 80
        %v4053 = vpop.permute.xlu0 %4052
        %4054 = vrot.lane.b32.xlu0 %v4049, 80
        %v4055 = vpop.permute.xlu0 %4054
        %vm4059 = vcmask 720514
        %4060 = vst.msk [vmem:[%s217 - $0x2] sm:$0xfc] %vm4059, %v4051
        %vm4061 = vcmask 720512
        %4062 = vst.msk [vmem:[%s217 + $0x6] sm:$0xff] %vm4061, %v4053
        %vm4063 = vcmask 714368
        %4064 = vst.msk [vmem:[%s217 + $0xe] sm:$0x3] %vm4063, %v4055
        %v4065 = vsel %vm3739, %v3973, %v3682
        %v4066 = vsel %vm3742, %v3975, %v4065
        %v4067 = vsel %vm3745, %v3977, %v4066
        %v4068 = vsel %vm3748, %v3979, %v4067
        %v4069 = vsel %vm3730, %v3983, %v3981
        %v4070 = vsel %vm3733, %v3985, %v4069
        %v4071 = vsel %vm3736, %v3698, %v4070
        %v4072 = vsel %vm3739, %v3987, %v4071
        %v4073 = vsel %vm3742, %v3989, %v4072
        %v4074 = vsel %vm3745, %v3991, %v4073
        %v4075 = vsel %vm3748, %v3993, %v4074
        %v4076 = vsel %vm3730, %v3997, %v3995
        %v4077 = vsel %vm3733, %v3999, %v4076
        %4078 = vrot.lane.b32.xlu0 %v4068, 88
        %v4079 = vpop.permute.xlu0 %4078
        %4080 = vrot.lane.b32.xlu0 %v4075, 88
        %v4081 = vpop.permute.xlu0 %4080
        %4082 = vrot.lane.b32.xlu0 %v4077, 88
        %v4083 = vpop.permute.xlu0 %4082
        %vm4087 = vcmask 786115
        %4088 = vst.msk [vmem:[%s217 - $0x3] sm:$0xf8] %vm4087, %v4079
        %vm4089 = vcmask 786112
        %4090 = vst.msk [vmem:[%s217 + $0x5] sm:$0xff] %vm4089, %v4081
        %vm4091 = vcmask 780992
        %4092 = vst.msk [vmem:[%s217 + $0xd] sm:$0x7] %vm4091, %v4083
        %v4093 = vsel %vm3742, %v3973, %v3682
        %v4094 = vsel %vm3745, %v3975, %v4093
        %v4095 = vsel %vm3748, %v3977, %v4094
        %v4096 = vsel %vm3730, %v3981, %v3979
        %v4097 = vsel %vm3733, %v3983, %v4096
        %v4098 = vsel %vm3736, %v3985, %v4097
        %v4099 = vsel %vm3739, %v3698, %v4098
        %v4100 = vsel %vm3742, %v3987, %v4099
        %v4101 = vsel %vm3745, %v3989, %v4100
        %v4102 = vsel %vm3748, %v3991, %v4101
        %v4103 = vsel %vm3730, %v3995, %v3993
        %v4104 = vsel %vm3733, %v3997, %v4103
        %v4105 = vsel %vm3736, %v3999, %v4104
        %4106 = vrot.lane.b32.xlu0 %v4095, 96
        %v4107 = vpop.permute.xlu0 %4106
        %4108 = vrot.lane.b32.xlu0 %v4102, 96
        %v4109 = vpop.permute.xlu0 %4108
        %4110 = vrot.lane.b32.xlu0 %v4105, 96
        %v4111 = vpop.permute.xlu0 %4110
        %vm4115 = vcmask 851716
        %4116 = vst.msk [vmem:[%s217 - $0x4] sm:$0xf0] %vm4115, %v4107
        %vm4117 = vcmask 851712
        %4118 = vst.msk [vmem:[%s217 + $0x4] sm:$0xff] %vm4117, %v4109
        %vm4119 = vcmask 847616
        %4120 = vst.msk [vmem:[%s217 + $0xc] sm:$0xf] %vm4119, %v4111
        %v4121 = vsel %vm3745, %v3973, %v3682
        %v4122 = vsel %vm3748, %v3975, %v4121
        %v4123 = vsel %vm3730, %v3979, %v3977
        %v4124 = vsel %vm3733, %v3981, %v4123
        %v4125 = vsel %vm3736, %v3983, %v4124
        %v4126 = vsel %vm3739, %v3985, %v4125
        %v4127 = vsel %vm3742, %v3698, %v4126
        %v4128 = vsel %vm3745, %v3987, %v4127
        %v4129 = vsel %vm3748, %v3989, %v4128
        %v4130 = vsel %vm3730, %v3993, %v3991
        %v4131 = vsel %vm3733, %v3995, %v4130
        %v4132 = vsel %vm3736, %v3997, %v4131
        %v4133 = vsel %vm3739, %v3999, %v4132
        %4134 = vrot.lane.b32.xlu0 %v4122, 104
        %v4135 = vpop.permute.xlu0 %4134
        %4136 = vrot.lane.b32.xlu0 %v4129, 104
        %v4137 = vpop.permute.xlu0 %4136
        %4138 = vrot.lane.b32.xlu0 %v4133, 104
        %v4139 = vpop.permute.xlu0 %4138
        %vm4143 = vcmask 917317
        %4144 = vst.msk [vmem:[%s217 - $0x5] sm:$0xe0] %vm4143, %v4135
        %vm4145 = vcmask 917312
        %4146 = vst.msk [vmem:[%s217 + $0x3] sm:$0xff] %vm4145, %v4137
        %vm4147 = vcmask 914240
        %4148 = vst.msk [vmem:[%s217 + $0xb] sm:$0x1f] %vm4147, %v4139
        %v4149 = vsel %vm3748, %v3973, %v3682
        %v4150 = vsel %vm3730, %v3977, %v3975
        %v4151 = vsel %vm3733, %v3979, %v4150
        %v4152 = vsel %vm3736, %v3981, %v4151
        %v4153 = vsel %vm3739, %v3983, %v4152
        %v4154 = vsel %vm3742, %v3985, %v4153
        %v4155 = vsel %vm3745, %v3698, %v4154
        %v4156 = vsel %vm3748, %v3987, %v4155
        %v4157 = vsel %vm3730, %v3991, %v3989
        %v4158 = vsel %vm3733, %v3993, %v4157
        %v4159 = vsel %vm3736, %v3995, %v4158
        %v4160 = vsel %vm3739, %v3997, %v4159
        %v4161 = vsel %vm3742, %v3999, %v4160
        %4162 = vrot.lane.b32.xlu0 %v4149, 112
        %v4163 = vpop.permute.xlu0 %4162
        %4164 = vrot.lane.b32.xlu0 %v4156, 112
        %v4165 = vpop.permute.xlu0 %4164
        %4166 = vrot.lane.b32.xlu0 %v4161, 112
        %v4167 = vpop.permute.xlu0 %4166
        %vm4171 = vcmask 982918
        %4172 = vst.msk [vmem:[%s217 - $0x6] sm:$0xc0] %vm4171, %v4163
        %vm4173 = vcmask 982912
        %4174 = vst.msk [vmem:[%s217 + $0x2] sm:$0xff] %vm4173, %v4165
        %vm4175 = vcmask 980864
        %4176 = vst.msk [vmem:[%s217 + $0xa] sm:$0x3f] %vm4175, %v4167
        %v4177 = vsel %vm3730, %v3975, %v3973
        %v4178 = vsel %vm3733, %v3977, %v4177
        %v4179 = vsel %vm3736, %v3979, %v4178
        %v4180 = vsel %vm3739, %v3981, %v4179
        %v4181 = vsel %vm3742, %v3983, %v4180
        %v4182 = vsel %vm3745, %v3985, %v4181
        %v4183 = vsel %vm3748, %v3698, %v4182
        %v4184 = vsel %vm3730, %v3989, %v3987
        %v4185 = vsel %vm3733, %v3991, %v4184
        %v4186 = vsel %vm3736, %v3993, %v4185
        %v4187 = vsel %vm3739, %v3995, %v4186
        %v4188 = vsel %vm3742, %v3997, %v4187
        %v4189 = vsel %vm3745, %v3999, %v4188
        %4190 = vrot.lane.b32.xlu0 %v3682, 120
        %v4191 = vpop.permute.xlu0 %4190
        %4192 = vrot.lane.b32.xlu0 %v4183, 120
        %v4193 = vpop.permute.xlu0 %4192
        %4194 = vrot.lane.b32.xlu0 %v4189, 120
        %v4195 = vpop.permute.xlu0 %4194
        %vm4199 = vcmask 1048519
        %4200 = vst.msk [vmem:[%s217 - $0x7] sm:$0x80] %vm4199, %v4191
        %vm4201 = vcmask 1048512
        %4202 = vst.msk [vmem:[%s217 + $0x1] sm:$0xff] %vm4201, %v4193
        %vm4203 = vcmask 1047488
        %4204 = vst.msk [vmem:[%s217 + $0x9] sm:$0x7f] %vm4203, %v4195
        %s4205 = sand.u32 %s137, 1
        %s4206 = scalar_lea.sflag [#allocation7], %s4205
        %s4207 = sand.u32 %s137, 1
        %s4208 = smul.addr %s4207, 16
        %s4209 = scalar_lea.vmem [#allocation6], %s4208
        // Predicated region
        $region41: #{tpu_custom_call.1} parent=39 // pred_check
          %p4210 = pneg %p147
        $region42: #{tpu_custom_call.1} parent=39 // pred_check_branch
          %4212 = sbr.rel (%p4210) target = $region44
        $region43: #{tpu_custom_call.1} parent=39 // pred_region
          %4214 = vsyncadd %s4206, 0
          %s4215 = smul.addr %s19, 2
          %s4216 = smul.addr %s4215, 8
          %s4217 = scalar_lea.hbm %s5, %s4216
          %s4218 = sshll.u32 %s4209, 4
          %s4219 = int_to_ptr.vmem [resolvable:$true] %s4218
          %s4220 = sshll.u32 %s4217, 4
          %s4221 = int_to_ptr.hbm [resolvable:$true] %s4220
          %4226 = dma.vmem_to_hbm [thread:$0]  %s4219, 256, %s4221, %s4206, 128, 128, 8
        $region44: #{tpu_custom_call.1} parent=39 // pred_fallthru
          _
      $region40: #{tpu_custom_call.1} parent=5 // pred_fallthru
        _
      %p4227 = scmp.le.s32.totalorder 2, %s14
      // Predicated region
      $region45: #{tpu_custom_call.1} parent=5 // pred_check
        %p4228 = pneg %p4227
      $region46: #{tpu_custom_call.1} parent=5 // pred_check_branch
        %4230 = sbr.rel (%p4228) target = $region48
      $region47: #{tpu_custom_call.1} parent=5 // pred_region
        %s4231 = ssub.s32 %s14, 2
        // Predicated region
        $region49: #{tpu_custom_call.1} parent=47 // pred_check
          %p4232 = pneg %p153
        $region50: #{tpu_custom_call.1} parent=47 // pred_check_branch
          %4234 = sbr.rel (%p4232) target = $region52
        $region51: #{tpu_custom_call.1} parent=47 // pred_region
          %s4235 = sand.u32 %s138, 1
          %s4236 = scalar_lea.sflag [#allocation7], %s4235
          %s4237 = sand.u32 %s138, 1
          %s4238 = smul.addr %s4237, 16
          %s4239 = scalar_lea.vmem [#allocation6], %s4238
          %4241 = dma.done %s4236, 256
        $region52: #{tpu_custom_call.1} parent=47 // pred_fallthru
          _
      $region48: #{tpu_custom_call.1} parent=5 // pred_fallthru
        _
    $region6: #{tpu_custom_call.1} parent=1 // loop_footer
      %s18 = sadd.s32 1, %s14
    $region7: #{tpu_custom_call.1} parent=1 // loop_footer_branch
      %13 = sbr.rel target = $region3
    $region8: #{tpu_custom_call.1} parent=1 // loop_exit
      _
    %4242 = vsyncpa [#allocation7], 1
    %s4243 = scalar_lea.sflag [#allocation7], 1
    %4244 = vsyncpa %s4243, 1

</llo_original>
